<compile_context>
chip_gen: v7x
topology: tpu7x:2x2x1
jax: 0.10.0
libtpu: 0.0.40
codegen_flags: <defaults>
</compile_context>

<pallas_src>
import functools

import jax
import jax.numpy as jnp
from jax.experimental import pallas as pl
from jax.experimental.pallas import tpu as pltpu

# ----------------------------- small BERT config ----------------------------
VOCAB = 128
HIDDEN = 128
NUM_HEADS = 2
HEAD_DIM = HIDDEN // NUM_HEADS
INTERMEDIATE = 256
NUM_LAYERS = 2
MAX_POS = 32
LN_EPS = 1e-12


def _sigmoid(z):
    return 1.0 / (1.0 + jnp.exp(-z))


def _gelu_tanh(y):
    # TODO(synk): HF BERT default is erf-GELU; tanh-approx GELU used here
    # (matches gelu_new / torch gelu(approximate='tanh')).
    c = 0.7978845608028654  # sqrt(2/pi)
    return 0.5 * y * (1.0 + jnp.tanh(c * (y + 0.044715 * y * y * y)))


def _layernorm(y, gamma, beta, eps):
    mu = jnp.mean(y, axis=-1, keepdims=True)
    yc = y - mu
    var = jnp.mean(yc * yc, axis=-1, keepdims=True)
    inv = jax.lax.rsqrt(var + eps)
    return yc * inv * gamma + beta


# ----------------------------- Pallas kernels -------------------------------
def _linear_kernel(x_ref, w_ref, b_ref, o_ref):
    y = jnp.dot(x_ref[...], w_ref[...], preferred_element_type=jnp.float32)
    o_ref[...] = (y + b_ref[...]).astype(o_ref.dtype)


def linear(x, w, b):
    # x: (M, K), w: (K, N), b: (N,) -> (M, N). Tiny shapes: whole operands in
    # VMEM, single invocation (no grid).  TODO(synk): add M-tiled BlockSpec +
    # 'parallel' grid before scaling B*S into the hundreds (v7x 64 MiB VMEM).
    M, _ = x.shape
    N = w.shape[1]
    return pl.pallas_call(
        _linear_kernel,
        out_shape=jax.ShapeDtypeStruct((M, N), jnp.float32),
    )(x, w, b.reshape(1, N))


def _layernorm_kernel(x_ref, g_ref, b_ref, o_ref, *, eps):
    x = x_ref[...].astype(jnp.float32)
    o_ref[...] = _layernorm(x, g_ref[...], b_ref[...], eps).astype(o_ref.dtype)


def layernorm(x, gamma, beta, eps=LN_EPS):
    M, H = x.shape
    return pl.pallas_call(
        functools.partial(_layernorm_kernel, eps=eps),
        out_shape=jax.ShapeDtypeStruct((M, H), jnp.float32),
    )(x, gamma.reshape(1, H), beta.reshape(1, H))


def _attn_block_kernel(qkv_ref, res_ref, wo_ref, bo_ref, g_ref, beta_ref, o_ref,
                       *, num_heads, hidden, scale, eps):
    # Fused: multi-head attention (heads folded, lane-dense (S, H) context)
    #        + output projection + residual + LayerNorm, one batch per step.
    qkv = qkv_ref[0]                         # (S, 3H)
    q = qkv[:, 0 * hidden:1 * hidden] * scale  # fold softmax scale into q
    k = qkv[:, 1 * hidden:2 * hidden]
    v = qkv[:, 2 * hidden:3 * hidden]
    d = hidden // num_heads

    ctx_heads = []
    for h in range(num_heads):
        qh = q[:, h * d:(h + 1) * d]         # (S, d)
        kh = k[:, h * d:(h + 1) * d]
        vh = v[:, h * d:(h + 1) * d]
        s = jnp.einsum("qd,kd->qk", qh, kh, preferred_element_type=jnp.float32)
        m = jnp.max(s, axis=-1, keepdims=True)
        p = jnp.exp(s - m)
        denom = jnp.sum(p, axis=-1, keepdims=True)
        p = p * pl.reciprocal(denom, approx=True)
        ctx_heads.append(jnp.dot(p, vh, preferred_element_type=jnp.float32))
    ctx = jnp.concatenate(ctx_heads, axis=-1)  # (S, H), lane-dense

    y = (jnp.dot(ctx, wo_ref[...], preferred_element_type=jnp.float32)
         + bo_ref[...] + res_ref[0])
    o_ref[0] = _layernorm(y, g_ref[...], beta_ref[...], eps).astype(o_ref.dtype)


def attention_block(qkv, x_res, wo, bo, gamma, beta):
    # qkv: (B, S, 3H), x_res: (B, S, H) -> (B, S, H)
    B, S, H3 = qkv.shape
    H = x_res.shape[-1]
    scale = 1.0 / float(H // NUM_HEADS) ** 0.5
    return pl.pallas_call(
        functools.partial(_attn_block_kernel, num_heads=NUM_HEADS, hidden=H,
                          scale=scale, eps=LN_EPS),
        out_shape=jax.ShapeDtypeStruct((B, S, H), jnp.float32),
        grid=(B,),
        in_specs=[
            pl.BlockSpec((1, S, H3), lambda b: (b, 0, 0)),
            pl.BlockSpec((1, S, H), lambda b: (b, 0, 0)),
            pl.BlockSpec((H, H), lambda b: (0, 0)),
            pl.BlockSpec((1, H), lambda b: (0, 0)),
            pl.BlockSpec((1, H), lambda b: (0, 0)),
            pl.BlockSpec((1, H), lambda b: (0, 0)),
        ],
        out_specs=pl.BlockSpec((1, S, H), lambda b: (b, 0, 0)),
        compiler_params=pltpu.CompilerParams(dimension_semantics=("parallel",)),
    )(qkv, x_res, wo, bo.reshape(1, H), gamma.reshape(1, H), beta.reshape(1, H))


def _ffn_block_kernel(x_ref, w1_ref, b1_ref, w2_ref, b2_ref, g_ref, beta_ref,
                      o_ref, *, eps):
    # Fused: intermediate matmul + GELU + output matmul + residual + LayerNorm.
    x = x_ref[...]
    h = jnp.dot(x, w1_ref[...], preferred_element_type=jnp.float32) + b1_ref[...]
    h = _gelu_tanh(h)
    y = (jnp.dot(h, w2_ref[...], preferred_element_type=jnp.float32)
         + b2_ref[...] + x)
    o_ref[...] = _layernorm(y, g_ref[...], beta_ref[...], eps).astype(o_ref.dtype)


def ffn_block(x, w1, b1, w2, b2, gamma, beta):
    M, H = x.shape
    I = w1.shape[1]
    return pl.pallas_call(
        functools.partial(_ffn_block_kernel, eps=LN_EPS),
        out_shape=jax.ShapeDtypeStruct((M, H), jnp.float32),
    )(x, w1, b1.reshape(1, I), w2, b2.reshape(1, H),
      gamma.reshape(1, H), beta.reshape(1, H))


def _lstm_kernel(xg_ref, whh_ref, o_ref, *, batch, seq, hidden):
    # Single invocation: input gates precomputed outside (time-major rows
    # t*B + b); only the h_prev @ W_hh^T matmul remains in the serial loop.
    # h/c live in registers; all timestep outputs stored once (dense 16x128).
    whh = whh_ref[...]                        # (H, 4H)
    xg = xg_ref[...]                          # (S*B, 4H)
    h = jnp.zeros((batch, hidden), jnp.float32)
    c = jnp.zeros((batch, hidden), jnp.float32)
    outs = []
    for t in range(seq):
        gates = (xg[t * batch:(t + 1) * batch, :]
                 + jnp.dot(h, whh, preferred_element_type=jnp.float32))
        i_g = _sigmoid(gates[:, 0 * hidden:1 * hidden])
        f_g = _sigmoid(gates[:, 1 * hidden:2 * hidden])
        g_g = jnp.tanh(gates[:, 2 * hidden:3 * hidden])
        o_g = _sigmoid(gates[:, 3 * hidden:4 * hidden])
        c = f_g * c + i_g * g_g
        h = o_g * jnp.tanh(c)
        outs.append(h)
    o_ref[...] = jnp.concatenate(outs, axis=0).astype(o_ref.dtype)


def lstm_forward(x, w_ih, w_hh, b_ih, b_hh):
    # x: (B, S, H) batch-first; PyTorch gate order i, f, g, o; zero init state.
    B, S, H = x.shape
    # Hoist input projection out of the recurrence: one (B*S, H) @ (H, 4H).
    xg = linear(x.reshape(B * S, H), jnp.transpose(w_ih), b_ih + b_hh)  # (B*S, 4H)
    # Time-major rows (t*B + b) so each step reads a contiguous slice.
    xg_tm = xg.reshape(B, S, 4 * H).transpose(1, 0, 2).reshape(S * B, 4 * H)
    out = pl.pallas_call(
        functools.partial(_lstm_kernel, batch=B, seq=S, hidden=H),
        out_shape=jax.ShapeDtypeStruct((S * B, H), jnp.float32),
    )(xg_tm, jnp.transpose(w_hh))
    return out.reshape(S, B, H).transpose(1, 0, 2)  # back to (B, S, H)


# ----------------------------- model glue (plain JAX) -----------------------
def bert_layer(x, p, B, S):
    # x: (B*S, H)
    qkv = linear(x, p["w_qkv"], p["b_qkv"])                 # fused Q|K|V, (B*S, 3H)
    x3 = x.reshape(B, S, HIDDEN)
    x3 = attention_block(qkv.reshape(B, S, 3 * HIDDEN), x3,
                         p["wo"], p["bo"], p["ln1_g"], p["ln1_b"])
    x = x3.reshape(B * S, HIDDEN)
    x = ffn_block(x, p["w_inter"], p["b_inter"], p["w_out"], p["b_out"],
                  p["ln2_g"], p["ln2_b"])
    return x


def bert_lstm_forward(token_ids, params):
    B, S = token_ids.shape
    # Embeddings: word + position + token_type(=0). Gather stays in plain JAX.
    emb = (
        jnp.take(params["word_emb"], token_ids, axis=0)
        + params["pos_emb"][:S][None, :, :]
        + params["type_emb"][0][None, None, :]
    )
    # TODO(synk): no attention_mask support (assumes unpadded sequences, like
    # the reference call self.bert(x)[0] with ids only).
    x = emb.reshape(B * S, HIDDEN)
    x = layernorm(x, params["emb_ln_g"], params["emb_ln_b"])
    for layer in params["layers"]:
        x = bert_layer(x, layer, B, S)
    seq_out = x.reshape(B, S, HIDDEN)  # == self.bert(x)[0]
    out = lstm_forward(
        seq_out,
        params["lstm_w_ih"],
        params["lstm_w_hh"],
        params["lstm_b_ih"],
        params["lstm_b_hh"],
    )
    return out  # (B, S, H), matches `x, _ = self.rnn(x); return x`


def init_params(key):
    keys = list(jax.random.split(key, 32))
    it = iter(keys)

    def nrm(shape):
        return jax.random.normal(next(it), shape, jnp.float32) * 0.02

    params = {
        "word_emb": nrm((VOCAB, HIDDEN)),
        "pos_emb": nrm((MAX_POS, HIDDEN)),
        "type_emb": nrm((2, HIDDEN)),
        "emb_ln_g": jnp.ones((HIDDEN,), jnp.float32),
        "emb_ln_b": jnp.zeros((HIDDEN,), jnp.float32),
        "layers": [],
    }
    for _ in range(NUM_LAYERS):
        layer = {
            # Q, K, V weights fused along the output dim: [wq | wk | wv].
            "w_qkv": nrm((HIDDEN, 3 * HIDDEN)),
            "b_qkv": jnp.zeros((3 * HIDDEN,), jnp.float32),
            "wo": nrm((HIDDEN, HIDDEN)), "bo": jnp.zeros((HIDDEN,), jnp.float32),
            "ln1_g": jnp.ones((HIDDEN,), jnp.float32),
            "ln1_b": jnp.zeros((HIDDEN,), jnp.float32),
            "w_inter": nrm((HIDDEN, INTERMEDIATE)),
            "b_inter": jnp.zeros((INTERMEDIATE,), jnp.float32),
            "w_out": nrm((INTERMEDIATE, HIDDEN)),
            "b_out": jnp.zeros((HIDDEN,), jnp.float32),
            "ln2_g": jnp.ones((HIDDEN,), jnp.float32),
            "ln2_b": jnp.zeros((HIDDEN,), jnp.float32),
        }
        params["layers"].append(layer)

    # LSTM params, PyTorch default init: U(-1/sqrt(H), 1/sqrt(H)).
    bound = 1.0 / (HIDDEN ** 0.5)

    def uni(shape):
        return jax.random.uniform(next(it), shape, jnp.float32, -bound, bound)

    params["lstm_w_ih"] = uni((4 * HIDDEN, HIDDEN))
    params["lstm_w_hh"] = uni((4 * HIDDEN, HIDDEN))
    params["lstm_b_ih"] = uni((4 * HIDDEN,))
    params["lstm_b_hh"] = uni((4 * HIDDEN,))
    return params


if __name__ == "__main__":
    key = jax.random.PRNGKey(0)
    kp, kx = jax.random.split(key)
    params = init_params(kp)

    B, S = 2, 8
    token_ids = jax.random.randint(kx, (B, S), 0, VOCAB, dtype=jnp.int32)

    fwd = jax.jit(bert_lstm_forward)
    out = fwd(token_ids, params)
    out = jax.block_until_ready(out)
    assert out.shape == (B, S, HIDDEN), out.shape
    assert out.dtype == jnp.float32
    print("KERNEL_OK")
</pallas_src>

<mosaic_0001>
module attributes {stable_mosaic.version = 11 : i64} {
  func.func @_linear_kernel(%arg0: memref<16x128xf32, #tpu.memory_space<vmem>>, %arg1: memref<128x384xf32, #tpu.memory_space<vmem>>, %arg2: memref<1x384xf32, #tpu.memory_space<vmem>>, %arg3: memref<16x384xf32, #tpu.memory_space<vmem>>) attributes {dimension_semantics = [], scalar_prefetch = 0 : i64, scratch_operands = 0 : i64, tpu.core_type = #tpu.core_type<tc>} {
    %c0 = arith.constant 0 : index
    %c0_0 = arith.constant 0 : index
    %0 = vector.load %arg0[%c0, %c0_0] : memref<16x128xf32, #tpu.memory_space<vmem>>, vector<16x128xf32>
    %c0_1 = arith.constant 0 : index
    %c0_2 = arith.constant 0 : index
    %1 = vector.load %arg1[%c0_1, %c0_2] : memref<128x384xf32, #tpu.memory_space<vmem>>, vector<128x384xf32>
    %cst = arith.constant dense<0.000000e+00> : vector<16x384xf32>
    %2 = tpu.matmul %0, %1, %cst {dimension_numbers = #tpu.dot_dimension_numbers<[1], [0], [0], [1], [0, 0, 1, 1], [], []>} : vector<16x128xf32>, vector<128x384xf32>, vector<16x384xf32> -> vector<16x384xf32>
    %c0_3 = arith.constant 0 : index
    %c0_4 = arith.constant 0 : index
    %3 = vector.load %arg2[%c0_3, %c0_4] : memref<1x384xf32, #tpu.memory_space<vmem>>, vector<1x384xf32>
    %4 = vector.broadcast %3 : vector<1x384xf32> to vector<16x384xf32>
    %5 = arith.addf %2, %4 : vector<16x384xf32>
    %c0_5 = arith.constant 0 : index
    %c0_6 = arith.constant 0 : index
    %6 = vector.load %arg3[%c0_5, %c0_6] : memref<16x384xf32, #tpu.memory_space<vmem>>, vector<16x384xf32>
    tpu.vector_store %arg3[%c0_5, %c0_6], %5 {strides = array<i32>} : memref<16x384xf32, #tpu.memory_space<vmem>>, vector<16x384xf32>,
    return
  }
}

module attributes {stable_mosaic.version = 11 : i64} {
  func.func @_layernorm_kernel(%arg0: memref<16x128xf32, #tpu.memory_space<vmem>>, %arg1: memref<1x128xf32, #tpu.memory_space<vmem>>, %arg2: memref<1x128xf32, #tpu.memory_space<vmem>>, %arg3: memref<16x128xf32, #tpu.memory_space<vmem>>) attributes {dimension_semantics = [], scalar_prefetch = 0 : i64, scratch_operands = 0 : i64, tpu.core_type = #tpu.core_type<tc>} {
    %c0 = arith.constant 0 : index
    %c0_0 = arith.constant 0 : index
    %0 = vector.load %arg0[%c0, %c0_0] : memref<16x128xf32, #tpu.memory_space<vmem>>, vector<16x128xf32>
    %c0_1 = arith.constant 0 : index
    %c0_2 = arith.constant 0 : index
    %1 = vector.load %arg1[%c0_1, %c0_2] : memref<1x128xf32, #tpu.memory_space<vmem>>, vector<1x128xf32>
    %c0_3 = arith.constant 0 : index
    %c0_4 = arith.constant 0 : index
    %2 = vector.load %arg2[%c0_3, %c0_4] : memref<1x128xf32, #tpu.memory_space<vmem>>, vector<1x128xf32>
    %cst = arith.constant dense<0.000000e+00> : vector<16xf32>
    %3 = vector.multi_reduction <add>, %0, %cst [1] : vector<16x128xf32> to vector<16xf32>
    %4 = vector.shape_cast %3 : vector<16xf32> to vector<16x1xf32>
    %cst_5 = arith.constant 1.280000e+02 : f32
    %5 = vector.broadcast %cst_5 : f32 to vector<16x1xf32>
    %6 = arith.divf %4, %5 : vector<16x1xf32>
    %7 = vector.broadcast %6 : vector<16x1xf32> to vector<16x128xf32>
    %8 = arith.subf %0, %7 : vector<16x128xf32>
    %9 = arith.mulf %8, %8 : vector<16x128xf32>
    %cst_6 = arith.constant dense<0.000000e+00> : vector<16xf32>
    %10 = vector.multi_reduction <add>, %9, %cst_6 [1] : vector<16x128xf32> to vector<16xf32>
    %11 = vector.shape_cast %10 : vector<16xf32> to vector<16x1xf32>
    %cst_7 = arith.constant 1.280000e+02 : f32
    %12 = vector.broadcast %cst_7 : f32 to vector<16x1xf32>
    %13 = arith.divf %11, %12 : vector<16x1xf32>
    %cst_8 = arith.constant 9.99999996E-13 : f32
    %14 = vector.broadcast %cst_8 : f32 to vector<16x1xf32>
    %15 = arith.addf %13, %14 : vector<16x1xf32>
    %16 = math.rsqrt %15 : vector<16x1xf32>
    %17 = vector.broadcast %16 : vector<16x1xf32> to vector<16x128xf32>
    %18 = arith.mulf %8, %17 : vector<16x128xf32>
    %19 = vector.broadcast %1 : vector<1x128xf32> to vector<16x128xf32>
    %20 = arith.mulf %18, %19 : vector<16x128xf32>
    %21 = vector.broadcast %2 : vector<1x128xf32> to vector<16x128xf32>
    %22 = arith.addf %20, %21 : vector<16x128xf32>
    %c0_9 = arith.constant 0 : index
    %c0_10 = arith.constant 0 : index
    %23 = vector.load %arg3[%c0_9, %c0_10] : memref<16x128xf32, #tpu.memory_space<vmem>>, vector<16x128xf32>
    tpu.vector_store %arg3[%c0_9, %c0_10], %22 {strides = array<i32>} : memref<16x128xf32, #tpu.memory_space<vmem>>, vector<16x128xf32>,
    return
  }
}

module attributes {stable_mosaic.version = 11 : i64} {
  func.func @_ffn_block_kernel(%arg0: memref<16x128xf32, #tpu.memory_space<vmem>>, %arg1: memref<128x256xf32, #tpu.memory_space<vmem>>, %arg2: memref<1x256xf32, #tpu.memory_space<vmem>>, %arg3: memref<256x128xf32, #tpu.memory_space<vmem>>, %arg4: memref<1x128xf32, #tpu.memory_space<vmem>>, %arg5: memref<1x128xf32, #tpu.memory_space<vmem>>, %arg6: memref<1x128xf32, #tpu.memory_space<vmem>>, %arg7: memref<16x128xf32, #tpu.memory_space<vmem>>) attributes {dimension_semantics = [], scalar_prefetch = 0 : i64, scratch_operands = 0 : i64, tpu.core_type = #tpu.core_type<tc>} {
    %c0 = arith.constant 0 : index
    %c0_0 = arith.constant 0 : index
    %0 = vector.load %arg0[%c0, %c0_0] : memref<16x128xf32, #tpu.memory_space<vmem>>, vector<16x128xf32>
    %c0_1 = arith.constant 0 : index
    %c0_2 = arith.constant 0 : index
    %1 = vector.load %arg1[%c0_1, %c0_2] : memref<128x256xf32, #tpu.memory_space<vmem>>, vector<128x256xf32>
    %cst = arith.constant dense<0.000000e+00> : vector<16x256xf32>
    %2 = tpu.matmul %0, %1, %cst {dimension_numbers = #tpu.dot_dimension_numbers<[1], [0], [0], [1], [0, 0, 1, 1], [], []>} : vector<16x128xf32>, vector<128x256xf32>, vector<16x256xf32> -> vector<16x256xf32>
    %c0_3 = arith.constant 0 : index
    %c0_4 = arith.constant 0 : index
    %3 = vector.load %arg2[%c0_3, %c0_4] : memref<1x256xf32, #tpu.memory_space<vmem>>, vector<1x256xf32>
    %4 = vector.broadcast %3 : vector<1x256xf32> to vector<16x256xf32>
    %5 = arith.addf %2, %4 : vector<16x256xf32>
    %cst_5 = arith.constant 5.000000e-01 : f32
    %6 = vector.broadcast %cst_5 : f32 to vector<16x256xf32>
    %7 = arith.mulf %6, %5 : vector<16x256xf32>
    %cst_6 = arith.constant 4.471500e-02 : f32
    %8 = vector.broadcast %cst_6 : f32 to vector<16x256xf32>
    %9 = arith.mulf %8, %5 : vector<16x256xf32>
    %10 = arith.mulf %9, %5 : vector<16x256xf32>
    %11 = arith.mulf %10, %5 : vector<16x256xf32>
    %12 = arith.addf %5, %11 : vector<16x256xf32>
    %cst_7 = arith.constant 0.797884583 : f32
    %13 = vector.broadcast %cst_7 : f32 to vector<16x256xf32>
    %14 = arith.mulf %13, %12 : vector<16x256xf32>
    %15 = math.tanh %14 : vector<16x256xf32>
    %cst_8 = arith.constant 1.000000e+00 : f32
    %16 = vector.broadcast %cst_8 : f32 to vector<16x256xf32>
    %17 = arith.addf %16, %15 : vector<16x256xf32>
    %18 = arith.mulf %7, %17 : vector<16x256xf32>
    %c0_9 = arith.constant 0 : index
    %c0_10 = arith.constant 0 : index
    %19 = vector.load %arg3[%c0_9, %c0_10] : memref<256x128xf32, #tpu.memory_space<vmem>>, vector<256x128xf32>
    %cst_11 = arith.constant dense<0.000000e+00> : vector<16x128xf32>
    %20 = tpu.matmul %18, %19, %cst_11 {dimension_numbers = #tpu.dot_dimension_numbers<[1], [0], [0], [1], [0, 0, 1, 1], [], []>} : vector<16x256xf32>, vector<256x128xf32>, vector<16x128xf32> -> vector<16x128xf32>
    %c0_12 = arith.constant 0 : index
    %c0_13 = arith.constant 0 : index
    %21 = vector.load %arg4[%c0_12, %c0_13] : memref<1x128xf32, #tpu.memory_space<vmem>>, vector<1x128xf32>
    %22 = vector.broadcast %21 : vector<1x128xf32> to vector<16x128xf32>
    %23 = arith.addf %20, %22 : vector<16x128xf32>
    %24 = arith.addf %23, %0 : vector<16x128xf32>
    %c0_14 = arith.constant 0 : index
    %c0_15 = arith.constant 0 : index
    %25 = vector.load %arg5[%c0_14, %c0_15] : memref<1x128xf32, #tpu.memory_space<vmem>>, vector<1x128xf32>
    %c0_16 = arith.constant 0 : index
    %c0_17 = arith.constant 0 : index
    %26 = vector.load %arg6[%c0_16, %c0_17] : memref<1x128xf32, #tpu.memory_space<vmem>>, vector<1x128xf32>
    %cst_18 = arith.constant dense<0.000000e+00> : vector<16xf32>
    %27 = vector.multi_reduction <add>, %24, %cst_18 [1] : vector<16x128xf32> to vector<16xf32>
    %28 = vector.shape_cast %27 : vector<16xf32> to vector<16x1xf32>
    %cst_19 = arith.constant 1.280000e+02 : f32
    %29 = vector.broadcast %cst_19 : f32 to vector<16x1xf32>
    %30 = arith.divf %28, %29 : vector<16x1xf32>
    %31 = vector.broadcast %30 : vector<16x1xf32> to vector<16x128xf32>
    %32 = arith.subf %24, %31 : vector<16x128xf32>
    %33 = arith.mulf %32, %32 : vector<16x128xf32>
    %cst_20 = arith.constant dense<0.000000e+00> : vector<16xf32>
    %34 = vector.multi_reduction <add>, %33, %cst_20 [1] : vector<16x128xf32> to vector<16xf32>
    %35 = vector.shape_cast %34 : vector<16xf32> to vector<16x1xf32>
    %cst_21 = arith.constant 1.280000e+02 : f32
    %36 = vector.broadcast %cst_21 : f32 to vector<16x1xf32>
    %37 = arith.divf %35, %36 : vector<16x1xf32>
    %cst_22 = arith.constant 9.99999996E-13 : f32
    %38 = vector.broadcast %cst_22 : f32 to vector<16x1xf32>
    %39 = arith.addf %37, %38 : vector<16x1xf32>
    %40 = math.rsqrt %39 : vector<16x1xf32>
    %41 = vector.broadcast %40 : vector<16x1xf32> to vector<16x128xf32>
    %42 = arith.mulf %32, %41 : vector<16x128xf32>
    %43 = vector.broadcast %25 : vector<1x128xf32> to vector<16x128xf32>
    %44 = arith.mulf %42, %43 : vector<16x128xf32>
    %45 = vector.broadcast %26 : vector<1x128xf32> to vector<16x128xf32>
    %46 = arith.addf %44, %45 : vector<16x128xf32>
    %c0_23 = arith.constant 0 : index
    %c0_24 = arith.constant 0 : index
    %47 = vector.load %arg7[%c0_23, %c0_24] : memref<16x128xf32, #tpu.memory_space<vmem>>, vector<16x128xf32>
    tpu.vector_store %arg7[%c0_23, %c0_24], %46 {strides = array<i32>} : memref<16x128xf32, #tpu.memory_space<vmem>>, vector<16x128xf32>,
    return
  }
}

module attributes {stable_mosaic.version = 11 : i64} {
  func.func @_attn_block_kernel(%arg0: i32, %arg1: memref<1x8x384xf32, #tpu.memory_space<vmem>>, %arg2: memref<1x8x128xf32, #tpu.memory_space<vmem>>, %arg3: memref<128x128xf32, #tpu.memory_space<vmem>>, %arg4: memref<1x128xf32, #tpu.memory_space<vmem>>, %arg5: memref<1x128xf32, #tpu.memory_space<vmem>>, %arg6: memref<1x128xf32, #tpu.memory_space<vmem>>, %arg7: memref<1x8x128xf32, #tpu.memory_space<vmem>>) attributes {dimension_semantics = [#tpu.dimension_semantics<parallel>], iteration_bounds = array<i64: 2>, scalar_prefetch = 0 : i64, scratch_operands = 0 : i64, tpu.core_type = #tpu.core_type<tc>, window_params = [{transform_indices = @transform_0, window_bounds = array<i64: 1, 8, 384>}, {transform_indices = @transform_1, window_bounds = array<i64: 1, 8, 128>}, {pipeline_mode = #tpu.pipeline_mode<synchronous>, transform_indices = @transform_2, window_bounds = array<i64: 128, 128>}, {pipeline_mode = #tpu.pipeline_mode<synchronous>, transform_indices = @transform_3, window_bounds = array<i64: 1, 128>}, {pipeline_mode = #tpu.pipeline_mode<synchronous>, transform_indices = @transform_4, window_bounds = array<i64: 1, 128>}, {pipeline_mode = #tpu.pipeline_mode<synchronous>, transform_indices = @transform_5, window_bounds = array<i64: 1, 128>}, {transform_indices = @transform_6, window_bounds = array<i64: 1, 8, 128>}]} {
    %c0 = arith.constant 0 : index
    %c0_0 = arith.constant 0 : index
    %c0_1 = arith.constant 0 : index
    %0 = vector.load %arg1[%c0, %c0_0, %c0_1] : memref<1x8x384xf32, #tpu.memory_space<vmem>>, vector<1x8x384xf32>
    %1 = vector.shape_cast %0 : vector<1x8x384xf32> to vector<8x384xf32>
    %2 = vector.extract_strided_slice %1 {offsets = [0, 0], sizes = [8, 128], strides = [1, 1]} : vector<8x384xf32> to vector<8x128xf32>
    %cst = arith.constant 1.250000e-01 : f32
    %3 = vector.broadcast %cst : f32 to vector<8x128xf32>
    %4 = arith.mulf %2, %3 : vector<8x128xf32>
    %5 = vector.extract_strided_slice %1 {offsets = [0, 128], sizes = [8, 128], strides = [1, 1]} : vector<8x384xf32> to vector<8x128xf32>
    %6 = vector.extract_strided_slice %1 {offsets = [0, 256], sizes = [8, 128], strides = [1, 1]} : vector<8x384xf32> to vector<8x128xf32>
    %7 = vector.extract_strided_slice %4 {offsets = [0, 0], sizes = [8, 64], strides = [1, 1]} : vector<8x128xf32> to vector<8x64xf32>
    %8 = vector.extract_strided_slice %5 {offsets = [0, 0], sizes = [8, 64], strides = [1, 1]} : vector<8x128xf32> to vector<8x64xf32>
    %9 = vector.extract_strided_slice %6 {offsets = [0, 0], sizes = [8, 64], strides = [1, 1]} : vector<8x128xf32> to vector<8x64xf32>
    "tpu.trace_start"() <{level = 10 : i32, message = "qd,kd->qk"}> : () -> ()
    %cst_2 = arith.constant dense<0.000000e+00> : vector<8x8xf32>
    %10 = tpu.matmul %7, %8, %cst_2 {dimension_numbers = #tpu.dot_dimension_numbers<[1], [1], [0], [0], [0, 0, 1, 0], [], []>} : vector<8x64xf32>, vector<8x64xf32>, vector<8x8xf32> -> vector<8x8xf32>
    "tpu.trace_stop"() : () -> ()
    %cst_3 = arith.constant dense<0xFF800000> : vector<8xf32>
    %11 = vector.multi_reduction <maximumf>, %10, %cst_3 [1] : vector<8x8xf32> to vector<8xf32>
    %12 = vector.shape_cast %11 : vector<8xf32> to vector<8x1xf32>
    %13 = vector.broadcast %12 : vector<8x1xf32> to vector<8x8xf32>
    %14 = arith.subf %10, %13 : vector<8x8xf32>
    %15 = math.exp %14 : vector<8x8xf32>
    %cst_4 = arith.constant dense<0.000000e+00> : vector<8xf32>
    %16 = vector.multi_reduction <add>, %15, %cst_4 [1] : vector<8x8xf32> to vector<8xf32>
    %17 = vector.shape_cast %16 : vector<8xf32> to vector<8x1xf32>
    %18 = tpu.reciprocal %17 {approx = true} : vector<8x1xf32> -> vector<8x1xf32>
    %19 = vector.broadcast %18 : vector<8x1xf32> to vector<8x8xf32>
    %20 = arith.mulf %15, %19 : vector<8x8xf32>
    %cst_5 = arith.constant dense<0.000000e+00> : vector<8x64xf32>
    %21 = tpu.matmul %20, %9, %cst_5 {dimension_numbers = #tpu.dot_dimension_numbers<[1], [0], [0], [1], [0, 0, 1, 1], [], []>} : vector<8x8xf32>, vector<8x64xf32>, vector<8x64xf32> -> vector<8x64xf32>
    %22 = vector.extract_strided_slice %4 {offsets = [0, 64], sizes = [8, 64], strides = [1, 1]} : vector<8x128xf32> to vector<8x64xf32>
    %23 = vector.extract_strided_slice %5 {offsets = [0, 64], sizes = [8, 64], strides = [1, 1]} : vector<8x128xf32> to vector<8x64xf32>
    %24 = vector.extract_strided_slice %6 {offsets = [0, 64], sizes = [8, 64], strides = [1, 1]} : vector<8x128xf32> to vector<8x64xf32>
    "tpu.trace_start"() <{level = 10 : i32, message = "qd,kd->qk"}> : () -> ()
    %cst_6 = arith.constant dense<0.000000e+00> : vector<8x8xf32>
    %25 = tpu.matmul %22, %23, %cst_6 {dimension_numbers = #tpu.dot_dimension_numbers<[1], [1], [0], [0], [0, 0, 1, 0], [], []>} : vector<8x64xf32>, vector<8x64xf32>, vector<8x8xf32> -> vector<8x8xf32>
    "tpu.trace_stop"() : () -> ()
    %cst_7 = arith.constant dense<0xFF800000> : vector<8xf32>
    %26 = vector.multi_reduction <maximumf>, %25, %cst_7 [1] : vector<8x8xf32> to vector<8xf32>
    %27 = vector.shape_cast %26 : vector<8xf32> to vector<8x1xf32>
    %28 = vector.broadcast %27 : vector<8x1xf32> to vector<8x8xf32>
    %29 = arith.subf %25, %28 : vector<8x8xf32>
    %30 = math.exp %29 : vector<8x8xf32>
    %cst_8 = arith.constant dense<0.000000e+00> : vector<8xf32>
    %31 = vector.multi_reduction <add>, %30, %cst_8 [1] : vector<8x8xf32> to vector<8xf32>
    %32 = vector.shape_cast %31 : vector<8xf32> to vector<8x1xf32>
    %33 = tpu.reciprocal %32 {approx = true} : vector<8x1xf32> -> vector<8x1xf32>
    %34 = vector.broadcast %33 : vector<8x1xf32> to vector<8x8xf32>
    %35 = arith.mulf %30, %34 : vector<8x8xf32>
    %cst_9 = arith.constant dense<0.000000e+00> : vector<8x64xf32>
    %36 = tpu.matmul %35, %24, %cst_9 {dimension_numbers = #tpu.dot_dimension_numbers<[1], [0], [0], [1], [0, 0, 1, 1], [], []>} : vector<8x8xf32>, vector<8x64xf32>, vector<8x64xf32> -> vector<8x64xf32>
    %37 = tpu.concatenate %21, %36 in 1 : vector<8x64xf32>, vector<8x64xf32> -> vector<8x128xf32>
    %c0_10 = arith.constant 0 : index
    %c0_11 = arith.constant 0 : index
    %38 = vector.load %arg3[%c0_10, %c0_11] : memref<128x128xf32, #tpu.memory_space<vmem>>, vector<128x128xf32>
    %cst_12 = arith.constant dense<0.000000e+00> : vector<8x128xf32>
    %39 = tpu.matmul %37, %38, %cst_12 {dimension_numbers = #tpu.dot_dimension_numbers<[1], [0], [0], [1], [0, 0, 1, 1], [], []>} : vector<8x128xf32>, vector<128x128xf32>, vector<8x128xf32> -> vector<8x128xf32>
    %c0_13 = arith.constant 0 : index
    %c0_14 = arith.constant 0 : index
    %40 = vector.load %arg4[%c0_13, %c0_14] : memref<1x128xf32, #tpu.memory_space<vmem>>, vector<1x128xf32>
    %41 = vector.broadcast %40 : vector<1x128xf32> to vector<8x128xf32>
    %42 = arith.addf %39, %41 : vector<8x128xf32>
    %c0_15 = arith.constant 0 : index
    %c0_16 = arith.constant 0 : index
    %c0_17 = arith.constant 0 : index
    %43 = vector.load %arg2[%c0_15, %c0_16, %c0_17] : memref<1x8x128xf32, #tpu.memory_space<vmem>>, vector<1x8x128xf32>
    %44 = vector.shape_cast %43 : vector<1x8x128xf32> to vector<8x128xf32>
    %45 = arith.addf %42, %44 : vector<8x128xf32>
    %c0_18 = arith.constant 0 : index
    %c0_19 = arith.constant 0 : index
    %46 = vector.load %arg5[%c0_18, %c0_19] : memref<1x128xf32, #tpu.memory_space<vmem>>, vector<1x128xf32>
    %c0_20 = arith.constant 0 : index
    %c0_21 = arith.constant 0 : index
    %47 = vector.load %arg6[%c0_20, %c0_21] : memref<1x128xf32, #tpu.memory_space<vmem>>, vector<1x128xf32>
    %cst_22 = arith.constant dense<0.000000e+00> : vector<8xf32>
    %48 = vector.multi_reduction <add>, %45, %cst_22 [1] : vector<8x128xf32> to vector<8xf32>
    %49 = vector.shape_cast %48 : vector<8xf32> to vector<8x1xf32>
    %cst_23 = arith.constant 1.280000e+02 : f32
    %50 = vector.broadcast %cst_23 : f32 to vector<8x1xf32>
    %51 = arith.divf %49, %50 : vector<8x1xf32>
    %52 = vector.broadcast %51 : vector<8x1xf32> to vector<8x128xf32>
    %53 = arith.subf %45, %52 : vector<8x128xf32>
    %54 = arith.mulf %53, %53 : vector<8x128xf32>
    %cst_24 = arith.constant dense<0.000000e+00> : vector<8xf32>
    %55 = vector.multi_reduction <add>, %54, %cst_24 [1] : vector<8x128xf32> to vector<8xf32>
    %56 = vector.shape_cast %55 : vector<8xf32> to vector<8x1xf32>
    %cst_25 = arith.constant 1.280000e+02 : f32
    %57 = vector.broadcast %cst_25 : f32 to vector<8x1xf32>
    %58 = arith.divf %56, %57 : vector<8x1xf32>
    %cst_26 = arith.constant 9.99999996E-13 : f32
    %59 = vector.broadcast %cst_26 : f32 to vector<8x1xf32>
    %60 = arith.addf %58, %59 : vector<8x1xf32>
    %61 = math.rsqrt %60 : vector<8x1xf32>
    %62 = vector.broadcast %61 : vector<8x1xf32> to vector<8x128xf32>
    %63 = arith.mulf %53, %62 : vector<8x128xf32>
    %64 = vector.broadcast %46 : vector<1x128xf32> to vector<8x128xf32>
    %65 = arith.mulf %63, %64 : vector<8x128xf32>
    %66 = vector.broadcast %47 : vector<1x128xf32> to vector<8x128xf32>
    %67 = arith.addf %65, %66 : vector<8x128xf32>
    %c0_27 = arith.constant 0 : index
    %c0_28 = arith.constant 0 : index
    %c0_29 = arith.constant 0 : index
    %68 = vector.load %arg7[%c0_27, %c0_28, %c0_29] : memref<1x8x128xf32, #tpu.memory_space<vmem>>, vector<1x8x128xf32>
    %69 = vector.shape_cast %68 : vector<1x8x128xf32> to vector<8x128xf32>
    %70 = vector.shape_cast %67 : vector<8x128xf32> to vector<1x8x128xf32>
    tpu.vector_store %arg7[%c0_27, %c0_28, %c0_29], %70 {strides = array<i32>} : memref<1x8x128xf32, #tpu.memory_space<vmem>>, vector<1x8x128xf32>,
    return
  }
  func.func @transform_0(%arg0: i32) -> (i32, i32, i32) {
    %c0_i32 = arith.constant 0 : i32
    %c0_i32_0 = arith.constant 0 : i32
    %c0_i32_1 = arith.constant 0 : i32
    return %arg0, %c0_i32, %c0_i32_0 : i32, i32, i32
  }
  func.func @transform_1(%arg0: i32) -> (i32, i32, i32) {
    %c0_i32 = arith.constant 0 : i32
    %c0_i32_0 = arith.constant 0 : i32
    %c0_i32_1 = arith.constant 0 : i32
    return %arg0, %c0_i32, %c0_i32_0 : i32, i32, i32
  }
  func.func @transform_2(%arg0: i32) -> (i32, i32) {
    %c0_i32 = arith.constant 0 : i32
    %c0_i32_0 = arith.constant 0 : i32
    %c0_i32_1 = arith.constant 0 : i32
    return %c0_i32, %c0_i32_0 : i32, i32
  }
  func.func @transform_3(%arg0: i32) -> (i32, i32) {
    %c0_i32 = arith.constant 0 : i32
    %c0_i32_0 = arith.constant 0 : i32
    %c0_i32_1 = arith.constant 0 : i32
    return %c0_i32, %c0_i32_0 : i32, i32
  }
  func.func @transform_4(%arg0: i32) -> (i32, i32) {
    %c0_i32 = arith.constant 0 : i32
    %c0_i32_0 = arith.constant 0 : i32
    %c0_i32_1 = arith.constant 0 : i32
    return %c0_i32, %c0_i32_0 : i32, i32
  }
  func.func @transform_5(%arg0: i32) -> (i32, i32) {
    %c0_i32 = arith.constant 0 : i32
    %c0_i32_0 = arith.constant 0 : i32
    %c0_i32_1 = arith.constant 0 : i32
    return %c0_i32, %c0_i32_0 : i32, i32
  }
  func.func @transform_6(%arg0: i32) -> (i32, i32, i32) {
    %c0_i32 = arith.constant 0 : i32
    %c0_i32_0 = arith.constant 0 : i32
    %c0_i32_1 = arith.constant 0 : i32
    return %arg0, %c0_i32, %c0_i32_0 : i32, i32, i32
  }
}

module attributes {stable_mosaic.version = 11 : i64} {
  func.func @_linear_kernel(%arg0: memref<16x128xf32, #tpu.memory_space<vmem>>, %arg1: memref<128x384xf32, #tpu.memory_space<vmem>>, %arg2: memref<1x384xf32, #tpu.memory_space<vmem>>, %arg3: memref<16x384xf32, #tpu.memory_space<vmem>>) attributes {dimension_semantics = [], scalar_prefetch = 0 : i64, scratch_operands = 0 : i64, tpu.core_type = #tpu.core_type<tc>} {
    %c0 = arith.constant 0 : index
    %c0_0 = arith.constant 0 : index
    %0 = vector.load %arg0[%c0, %c0_0] : memref<16x128xf32, #tpu.memory_space<vmem>>, vector<16x128xf32>
    %c0_1 = arith.constant 0 : index
    %c0_2 = arith.constant 0 : index
    %1 = vector.load %arg1[%c0_1, %c0_2] : memref<128x384xf32, #tpu.memory_space<vmem>>, vector<128x384xf32>
    %cst = arith.constant dense<0.000000e+00> : vector<16x384xf32>
    %2 = tpu.matmul %0, %1, %cst {dimension_numbers = #tpu.dot_dimension_numbers<[1], [0], [0], [1], [0, 0, 1, 1], [], []>} : vector<16x128xf32>, vector<128x384xf32>, vector<16x384xf32> -> vector<16x384xf32>
    %c0_3 = arith.constant 0 : index
    %c0_4 = arith.constant 0 : index
    %3 = vector.load %arg2[%c0_3, %c0_4] : memref<1x384xf32, #tpu.memory_space<vmem>>, vector<1x384xf32>
    %4 = vector.broadcast %3 : vector<1x384xf32> to vector<16x384xf32>
    %5 = arith.addf %2, %4 : vector<16x384xf32>
    %c0_5 = arith.constant 0 : index
    %c0_6 = arith.constant 0 : index
    %6 = vector.load %arg3[%c0_5, %c0_6] : memref<16x384xf32, #tpu.memory_space<vmem>>, vector<16x384xf32>
    tpu.vector_store %arg3[%c0_5, %c0_6], %5 {strides = array<i32>} : memref<16x384xf32, #tpu.memory_space<vmem>>, vector<16x384xf32>,
    return
  }
}

module attributes {stable_mosaic.version = 11 : i64} {
  func.func @_lstm_kernel(%arg0: memref<16x512xf32, #tpu.memory_space<vmem>>, %arg1: memref<128x512xf32, #tpu.memory_space<vmem>>, %arg2: memref<16x128xf32, #tpu.memory_space<vmem>>) attributes {dimension_semantics = [], scalar_prefetch = 0 : i64, scratch_operands = 0 : i64, tpu.core_type = #tpu.core_type<tc>} {
    %c0 = arith.constant 0 : index
    %c0_0 = arith.constant 0 : index
    %0 = vector.load %arg1[%c0, %c0_0] : memref<128x512xf32, #tpu.memory_space<vmem>>, vector<128x512xf32>
    %c0_1 = arith.constant 0 : index
    %c0_2 = arith.constant 0 : index
    %1 = vector.load %arg0[%c0_1, %c0_2] : memref<16x512xf32, #tpu.memory_space<vmem>>, vector<16x512xf32>
    %cst = arith.constant 0.000000e+00 : f32
    %2 = vector.broadcast %cst : f32 to vector<2x128xf32>
    %cst_3 = arith.constant 0.000000e+00 : f32
    %3 = vector.broadcast %cst_3 : f32 to vector<2x128xf32>
    %4 = vector.extract_strided_slice %1 {offsets = [0, 0], sizes = [2, 512], strides = [1, 1]} : vector<16x512xf32> to vector<2x512xf32>
    %cst_4 = arith.constant dense<0.000000e+00> : vector<2x512xf32>
    %5 = tpu.matmul %2, %0, %cst_4 {dimension_numbers = #tpu.dot_dimension_numbers<[1], [0], [0], [1], [0, 0, 1, 1], [], []>} : vector<2x128xf32>, vector<128x512xf32>, vector<2x512xf32> -> vector<2x512xf32>
    %6 = arith.addf %4, %5 : vector<2x512xf32>
    %7 = vector.extract_strided_slice %6 {offsets = [0, 0], sizes = [2, 128], strides = [1, 1]} : vector<2x512xf32> to vector<2x128xf32>
    %cst_5 = arith.constant 0.000000e+00 : f32
    %8 = vector.broadcast %cst_5 : f32 to vector<2x128xf32>
    %9 = arith.subf %8, %7 : vector<2x128xf32>
    %10 = math.exp %9 : vector<2x128xf32>
    %cst_6 = arith.constant 1.000000e+00 : f32
    %11 = vector.broadcast %cst_6 : f32 to vector<2x128xf32>
    %12 = arith.addf %11, %10 : vector<2x128xf32>
    %cst_7 = arith.constant 1.000000e+00 : f32
    %13 = vector.broadcast %cst_7 : f32 to vector<2x128xf32>
    %14 = arith.divf %13, %12 : vector<2x128xf32>
    %15 = vector.extract_strided_slice %6 {offsets = [0, 128], sizes = [2, 128], strides = [1, 1]} : vector<2x512xf32> to vector<2x128xf32>
    %cst_8 = arith.constant 0.000000e+00 : f32
    %16 = vector.broadcast %cst_8 : f32 to vector<2x128xf32>
    %17 = arith.subf %16, %15 : vector<2x128xf32>
    %18 = math.exp %17 : vector<2x128xf32>
    %cst_9 = arith.constant 1.000000e+00 : f32
    %19 = vector.broadcast %cst_9 : f32 to vector<2x128xf32>
    %20 = arith.addf %19, %18 : vector<2x128xf32>
    %cst_10 = arith.constant 1.000000e+00 : f32
    %21 = vector.broadcast %cst_10 : f32 to vector<2x128xf32>
    %22 = arith.divf %21, %20 : vector<2x128xf32>
    %23 = vector.extract_strided_slice %6 {offsets = [0, 256], sizes = [2, 128], strides = [1, 1]} : vector<2x512xf32> to vector<2x128xf32>
    %24 = math.tanh %23 : vector<2x128xf32>
    %25 = vector.extract_strided_slice %6 {offsets = [0, 384], sizes = [2, 128], strides = [1, 1]} : vector<2x512xf32> to vector<2x128xf32>
    %cst_11 = arith.constant 0.000000e+00 : f32
    %26 = vector.broadcast %cst_11 : f32 to vector<2x128xf32>
    %27 = arith.subf %26, %25 : vector<2x128xf32>
    %28 = math.exp %27 : vector<2x128xf32>
    %cst_12 = arith.constant 1.000000e+00 : f32
    %29 = vector.broadcast %cst_12 : f32 to vector<2x128xf32>
    %30 = arith.addf %29, %28 : vector<2x128xf32>
    %cst_13 = arith.constant 1.000000e+00 : f32
    %31 = vector.broadcast %cst_13 : f32 to vector<2x128xf32>
    %32 = arith.divf %31, %30 : vector<2x128xf32>
    %33 = arith.mulf %22, %3 : vector<2x128xf32>
    %34 = arith.mulf %14, %24 : vector<2x128xf32>
    %35 = arith.addf %33, %34 : vector<2x128xf32>
    %36 = math.tanh %35 : vector<2x128xf32>
    %37 = arith.mulf %32, %36 : vector<2x128xf32>
    %38 = vector.extract_strided_slice %1 {offsets = [2, 0], sizes = [2, 512], strides = [1, 1]} : vector<16x512xf32> to vector<2x512xf32>
    %cst_14 = arith.constant dense<0.000000e+00> : vector<2x512xf32>
    %39 = tpu.matmul %37, %0, %cst_14 {dimension_numbers = #tpu.dot_dimension_numbers<[1], [0], [0], [1], [0, 0, 1, 1], [], []>} : vector<2x128xf32>, vector<128x512xf32>, vector<2x512xf32> -> vector<2x512xf32>
    %40 = arith.addf %38, %39 : vector<2x512xf32>
    %41 = vector.extract_strided_slice %40 {offsets = [0, 0], sizes = [2, 128], strides = [1, 1]} : vector<2x512xf32> to vector<2x128xf32>
    %cst_15 = arith.constant 0.000000e+00 : f32
    %42 = vector.broadcast %cst_15 : f32 to vector<2x128xf32>
    %43 = arith.subf %42, %41 : vector<2x128xf32>
    %44 = math.exp %43 : vector<2x128xf32>
    %cst_16 = arith.constant 1.000000e+00 : f32
    %45 = vector.broadcast %cst_16 : f32 to vector<2x128xf32>
    %46 = arith.addf %45, %44 : vector<2x128xf32>
    %cst_17 = arith.constant 1.000000e+00 : f32
    %47 = vector.broadcast %cst_17 : f32 to vector<2x128xf32>
    %48 = arith.divf %47, %46 : vector<2x128xf32>
    %49 = vector.extract_strided_slice %40 {offsets = [0, 128], sizes = [2, 128], strides = [1, 1]} : vector<2x512xf32> to vector<2x128xf32>
    %cst_18 = arith.constant 0.000000e+00 : f32
    %50 = vector.broadcast %cst_18 : f32 to vector<2x128xf32>
    %51 = arith.subf %50, %49 : vector<2x128xf32>
    %52 = math.exp %51 : vector<2x128xf32>
    %cst_19 = arith.constant 1.000000e+00 : f32
    %53 = vector.broadcast %cst_19 : f32 to vector<2x128xf32>
    %54 = arith.addf %53, %52 : vector<2x128xf32>
    %cst_20 = arith.constant 1.000000e+00 : f32
    %55 = vector.broadcast %cst_20 : f32 to vector<2x128xf32>
    %56 = arith.divf %55, %54 : vector<2x128xf32>
    %57 = vector.extract_strided_slice %40 {offsets = [0, 256], sizes = [2, 128], strides = [1, 1]} : vector<2x512xf32> to vector<2x128xf32>
    %58 = math.tanh %57 : vector<2x128xf32>
    %59 = vector.extract_strided_slice %40 {offsets = [0, 384], sizes = [2, 128], strides = [1, 1]} : vector<2x512xf32> to vector<2x128xf32>
    %cst_21 = arith.constant 0.000000e+00 : f32
    %60 = vector.broadcast %cst_21 : f32 to vector<2x128xf32>
    %61 = arith.subf %60, %59 : vector<2x128xf32>
    %62 = math.exp %61 : vector<2x128xf32>
    %cst_22 = arith.constant 1.000000e+00 : f32
    %63 = vector.broadcast %cst_22 : f32 to vector<2x128xf32>
    %64 = arith.addf %63, %62 : vector<2x128xf32>
    %cst_23 = arith.constant 1.000000e+00 : f32
    %65 = vector.broadcast %cst_23 : f32 to vector<2x128xf32>
    %66 = arith.divf %65, %64 : vector<2x128xf32>
    %67 = arith.mulf %56, %35 : vector<2x128xf32>
    %68 = arith.mulf %48, %58 : vector<2x128xf32>
    %69 = arith.addf %67, %68 : vector<2x128xf32>
    %70 = math.tanh %69 : vector<2x128xf32>
    %71 = arith.mulf %66, %70 : vector<2x128xf32>
    %72 = vector.extract_strided_slice %1 {offsets = [4, 0], sizes = [2, 512], strides = [1, 1]} : vector<16x512xf32> to vector<2x512xf32>
    %cst_24 = arith.constant dense<0.000000e+00> : vector<2x512xf32>
    %73 = tpu.matmul %71, %0, %cst_24 {dimension_numbers = #tpu.dot_dimension_numbers<[1], [0], [0], [1], [0, 0, 1, 1], [], []>} : vector<2x128xf32>, vector<128x512xf32>, vector<2x512xf32> -> vector<2x512xf32>
    %74 = arith.addf %72, %73 : vector<2x512xf32>
    %75 = vector.extract_strided_slice %74 {offsets = [0, 0], sizes = [2, 128], strides = [1, 1]} : vector<2x512xf32> to vector<2x128xf32>
    %cst_25 = arith.constant 0.000000e+00 : f32
    %76 = vector.broadcast %cst_25 : f32 to vector<2x128xf32>
    %77 = arith.subf %76, %75 : vector<2x128xf32>
    %78 = math.exp %77 : vector<2x128xf32>
    %cst_26 = arith.constant 1.000000e+00 : f32
    %79 = vector.broadcast %cst_26 : f32 to vector<2x128xf32>
    %80 = arith.addf %79, %78 : vector<2x128xf32>
    %cst_27 = arith.constant 1.000000e+00 : f32
    %81 = vector.broadcast %cst_27 : f32 to vector<2x128xf32>
    %82 = arith.divf %81, %80 : vector<2x128xf32>
    %83 = vector.extract_strided_slice %74 {offsets = [0, 128], sizes = [2, 128], strides = [1, 1]} : vector<2x512xf32> to vector<2x128xf32>
    %cst_28 = arith.constant 0.000000e+00 : f32
    %84 = vector.broadcast %cst_28 : f32 to vector<2x128xf32>
    %85 = arith.subf %84, %83 : vector<2x128xf32>
    %86 = math.exp %85 : vector<2x128xf32>
    %cst_29 = arith.constant 1.000000e+00 : f32
    %87 = vector.broadcast %cst_29 : f32 to vector<2x128xf32>
    %88 = arith.addf %87, %86 : vector<2x128xf32>
    %cst_30 = arith.constant 1.000000e+00 : f32
    %89 = vector.broadcast %cst_30 : f32 to vector<2x128xf32>
    %90 = arith.divf %89, %88 : vector<2x128xf32>
    %91 = vector.extract_strided_slice %74 {offsets = [0, 256], sizes = [2, 128], strides = [1, 1]} : vector<2x512xf32> to vector<2x128xf32>
    %92 = math.tanh %91 : vector<2x128xf32>
    %93 = vector.extract_strided_slice %74 {offsets = [0, 384], sizes = [2, 128], strides = [1, 1]} : vector<2x512xf32> to vector<2x128xf32>
    %cst_31 = arith.constant 0.000000e+00 : f32
    %94 = vector.broadcast %cst_31 : f32 to vector<2x128xf32>
    %95 = arith.subf %94, %93 : vector<2x128xf32>
    %96 = math.exp %95 : vector<2x128xf32>
    %cst_32 = arith.constant 1.000000e+00 : f32
    %97 = vector.broadcast %cst_32 : f32 to vector<2x128xf32>
    %98 = arith.addf %97, %96 : vector<2x128xf32>
    %cst_33 = arith.constant 1.000000e+00 : f32
    %99 = vector.broadcast %cst_33 : f32 to vector<2x128xf32>
    %100 = arith.divf %99, %98 : vector<2x128xf32>
    %101 = arith.mulf %90, %69 : vector<2x128xf32>
    %102 = arith.mulf %82, %92 : vector<2x128xf32>
    %103 = arith.addf %101, %102 : vector<2x128xf32>
    %104 = math.tanh %103 : vector<2x128xf32>
    %105 = arith.mulf %100, %104 : vector<2x128xf32>
    %106 = vector.extract_strided_slice %1 {offsets = [6, 0], sizes = [2, 512], strides = [1, 1]} : vector<16x512xf32> to vector<2x512xf32>
    %cst_34 = arith.constant dense<0.000000e+00> : vector<2x512xf32>
    %107 = tpu.matmul %105, %0, %cst_34 {dimension_numbers = #tpu.dot_dimension_numbers<[1], [0], [0], [1], [0, 0, 1, 1], [], []>} : vector<2x128xf32>, vector<128x512xf32>, vector<2x512xf32> -> vector<2x512xf32>
    %108 = arith.addf %106, %107 : vector<2x512xf32>
    %109 = vector.extract_strided_slice %108 {offsets = [0, 0], sizes = [2, 128], strides = [1, 1]} : vector<2x512xf32> to vector<2x128xf32>
    %cst_35 = arith.constant 0.000000e+00 : f32
    %110 = vector.broadcast %cst_35 : f32 to vector<2x128xf32>
    %111 = arith.subf %110, %109 : vector<2x128xf32>
    %112 = math.exp %111 : vector<2x128xf32>
    %cst_36 = arith.constant 1.000000e+00 : f32
    %113 = vector.broadcast %cst_36 : f32 to vector<2x128xf32>
    %114 = arith.addf %113, %112 : vector<2x128xf32>
    %cst_37 = arith.constant 1.000000e+00 : f32
    %115 = vector.broadcast %cst_37 : f32 to vector<2x128xf32>
    %116 = arith.divf %115, %114 : vector<2x128xf32>
    %117 = vector.extract_strided_slice %108 {offsets = [0, 128], sizes = [2, 128], strides = [1, 1]} : vector<2x512xf32> to vector<2x128xf32>
    %cst_38 = arith.constant 0.000000e+00 : f32
    %118 = vector.broadcast %cst_38 : f32 to vector<2x128xf32>
    %119 = arith.subf %118, %117 : vector<2x128xf32>
    %120 = math.exp %119 : vector<2x128xf32>
    %cst_39 = arith.constant 1.000000e+00 : f32
    %121 = vector.broadcast %cst_39 : f32 to vector<2x128xf32>
    %122 = arith.addf %121, %120 : vector<2x128xf32>
    %cst_40 = arith.constant 1.000000e+00 : f32
    %123 = vector.broadcast %cst_40 : f32 to vector<2x128xf32>
    %124 = arith.divf %123, %122 : vector<2x128xf32>
    %125 = vector.extract_strided_slice %108 {offsets = [0, 256], sizes = [2, 128], strides = [1, 1]} : vector<2x512xf32> to vector<2x128xf32>
    %126 = math.tanh %125 : vector<2x128xf32>
    %127 = vector.extract_strided_slice %108 {offsets = [0, 384], sizes = [2, 128], strides = [1, 1]} : vector<2x512xf32> to vector<2x128xf32>
    %cst_41 = arith.constant 0.000000e+00 : f32
    %128 = vector.broadcast %cst_41 : f32 to vector<2x128xf32>
    %129 = arith.subf %128, %127 : vector<2x128xf32>
    %130 = math.exp %129 : vector<2x128xf32>
    %cst_42 = arith.constant 1.000000e+00 : f32
    %131 = vector.broadcast %cst_42 : f32 to vector<2x128xf32>
    %132 = arith.addf %131, %130 : vector<2x128xf32>
    %cst_43 = arith.constant 1.000000e+00 : f32
    %133 = vector.broadcast %cst_43 : f32 to vector<2x128xf32>
    %134 = arith.divf %133, %132 : vector<2x128xf32>
    %135 = arith.mulf %124, %103 : vector<2x128xf32>
    %136 = arith.mulf %116, %126 : vector<2x128xf32>
    %137 = arith.addf %135, %136 : vector<2x128xf32>
    %138 = math.tanh %137 : vector<2x128xf32>
    %139 = arith.mulf %134, %138 : vector<2x128xf32>
    %140 = vector.extract_strided_slice %1 {offsets = [8, 0], sizes = [2, 512], strides = [1, 1]} : vector<16x512xf32> to vector<2x512xf32>
    %cst_44 = arith.constant dense<0.000000e+00> : vector<2x512xf32>
    %141 = tpu.matmul %139, %0, %cst_44 {dimension_numbers = #tpu.dot_dimension_numbers<[1], [0], [0], [1], [0, 0, 1, 1], [], []>} : vector<2x128xf32>, vector<128x512xf32>, vector<2x512xf32> -> vector<2x512xf32>
    %142 = arith.addf %140, %141 : vector<2x512xf32>
    %143 = vector.extract_strided_slice %142 {offsets = [0, 0], sizes = [2, 128], strides = [1, 1]} : vector<2x512xf32> to vector<2x128xf32>
    %cst_45 = arith.constant 0.000000e+00 : f32
    %144 = vector.broadcast %cst_45 : f32 to vector<2x128xf32>
    %145 = arith.subf %144, %143 : vector<2x128xf32>
    %146 = math.exp %145 : vector<2x128xf32>
    %cst_46 = arith.constant 1.000000e+00 : f32
    %147 = vector.broadcast %cst_46 : f32 to vector<2x128xf32>
    %148 = arith.addf %147, %146 : vector<2x128xf32>
    %cst_47 = arith.constant 1.000000e+00 : f32
    %149 = vector.broadcast %cst_47 : f32 to vector<2x128xf32>
    %150 = arith.divf %149, %148 : vector<2x128xf32>
    %151 = vector.extract_strided_slice %142 {offsets = [0, 128], sizes = [2, 128], strides = [1, 1]} : vector<2x512xf32> to vector<2x128xf32>
    %cst_48 = arith.constant 0.000000e+00 : f32
    %152 = vector.broadcast %cst_48 : f32 to vector<2x128xf32>
    %153 = arith.subf %152, %151 : vector<2x128xf32>
    %154 = math.exp %153 : vector<2x128xf32>
    %cst_49 = arith.constant 1.000000e+00 : f32
    %155 = vector.broadcast %cst_49 : f32 to vector<2x128xf32>
    %156 = arith.addf %155, %154 : vector<2x128xf32>
    %cst_50 = arith.constant 1.000000e+00 : f32
    %157 = vector.broadcast %cst_50 : f32 to vector<2x128xf32>
    %158 = arith.divf %157, %156 : vector<2x128xf32>
    %159 = vector.extract_strided_slice %142 {offsets = [0, 256], sizes = [2, 128], strides = [1, 1]} : vector<2x512xf32> to vector<2x128xf32>
    %160 = math.tanh %159 : vector<2x128xf32>
    %161 = vector.extract_strided_slice %142 {offsets = [0, 384], sizes = [2, 128], strides = [1, 1]} : vector<2x512xf32> to vector<2x128xf32>
    %cst_51 = arith.constant 0.000000e+00 : f32
    %162 = vector.broadcast %cst_51 : f32 to vector<2x128xf32>
    %163 = arith.subf %162, %161 : vector<2x128xf32>
    %164 = math.exp %163 : vector<2x128xf32>
    %cst_52 = arith.constant 1.000000e+00 : f32
    %165 = vector.broadcast %cst_52 : f32 to vector<2x128xf32>
    %166 = arith.addf %165, %164 : vector<2x128xf32>
    %cst_53 = arith.constant 1.000000e+00 : f32
    %167 = vector.broadcast %cst_53 : f32 to vector<2x128xf32>
    %168 = arith.divf %167, %166 : vector<2x128xf32>
    %169 = arith.mulf %158, %137 : vector<2x128xf32>
    %170 = arith.mulf %150, %160 : vector<2x128xf32>
    %171 = arith.addf %169, %170 : vector<2x128xf32>
    %172 = math.tanh %171 : vector<2x128xf32>
    %173 = arith.mulf %168, %172 : vector<2x128xf32>
    %174 = vector.extract_strided_slice %1 {offsets = [10, 0], sizes = [2, 512], strides = [1, 1]} : vector<16x512xf32> to vector<2x512xf32>
    %cst_54 = arith.constant dense<0.000000e+00> : vector<2x512xf32>
    %175 = tpu.matmul %173, %0, %cst_54 {dimension_numbers = #tpu.dot_dimension_numbers<[1], [0], [0], [1], [0, 0, 1, 1], [], []>} : vector<2x128xf32>, vector<128x512xf32>, vector<2x512xf32> -> vector<2x512xf32>
    %176 = arith.addf %174, %175 : vector<2x512xf32>
    %177 = vector.extract_strided_slice %176 {offsets = [0, 0], sizes = [2, 128], strides = [1, 1]} : vector<2x512xf32> to vector<2x128xf32>
    %cst_55 = arith.constant 0.000000e+00 : f32
    %178 = vector.broadcast %cst_55 : f32 to vector<2x128xf32>
    %179 = arith.subf %178, %177 : vector<2x128xf32>
    %180 = math.exp %179 : vector<2x128xf32>
    %cst_56 = arith.constant 1.000000e+00 : f32
    %181 = vector.broadcast %cst_56 : f32 to vector<2x128xf32>
    %182 = arith.addf %181, %180 : vector<2x128xf32>
    %cst_57 = arith.constant 1.000000e+00 : f32
    %183 = vector.broadcast %cst_57 : f32 to vector<2x128xf32>
    %184 = arith.divf %183, %182 : vector<2x128xf32>
    %185 = vector.extract_strided_slice %176 {offsets = [0, 128], sizes = [2, 128], strides = [1, 1]} : vector<2x512xf32> to vector<2x128xf32>
    %cst_58 = arith.constant 0.000000e+00 : f32
    %186 = vector.broadcast %cst_58 : f32 to vector<2x128xf32>
    %187 = arith.subf %186, %185 : vector<2x128xf32>
    %188 = math.exp %187 : vector<2x128xf32>
    %cst_59 = arith.constant 1.000000e+00 : f32
    %189 = vector.broadcast %cst_59 : f32 to vector<2x128xf32>
    %190 = arith.addf %189, %188 : vector<2x128xf32>
    %cst_60 = arith.constant 1.000000e+00 : f32
    %191 = vector.broadcast %cst_60 : f32 to vector<2x128xf32>
    %192 = arith.divf %191, %190 : vector<2x128xf32>
    %193 = vector.extract_strided_slice %176 {offsets = [0, 256], sizes = [2, 128], strides = [1, 1]} : vector<2x512xf32> to vector<2x128xf32>
    %194 = math.tanh %193 : vector<2x128xf32>
    %195 = vector.extract_strided_slice %176 {offsets = [0, 384], sizes = [2, 128], strides = [1, 1]} : vector<2x512xf32> to vector<2x128xf32>
    %cst_61 = arith.constant 0.000000e+00 : f32
    %196 = vector.broadcast %cst_61 : f32 to vector<2x128xf32>
    %197 = arith.subf %196, %195 : vector<2x128xf32>
    %198 = math.exp %197 : vector<2x128xf32>
    %cst_62 = arith.constant 1.000000e+00 : f32
    %199 = vector.broadcast %cst_62 : f32 to vector<2x128xf32>
    %200 = arith.addf %199, %198 : vector<2x128xf32>
    %cst_63 = arith.constant 1.000000e+00 : f32
    %201 = vector.broadcast %cst_63 : f32 to vector<2x128xf32>
    %202 = arith.divf %201, %200 : vector<2x128xf32>
    %203 = arith.mulf %192, %171 : vector<2x128xf32>
    %204 = arith.mulf %184, %194 : vector<2x128xf32>
    %205 = arith.addf %203, %204 : vector<2x128xf32>
    %206 = math.tanh %205 : vector<2x128xf32>
    %207 = arith.mulf %202, %206 : vector<2x128xf32>
    %208 = vector.extract_strided_slice %1 {offsets = [12, 0], sizes = [2, 512], strides = [1, 1]} : vector<16x512xf32> to vector<2x512xf32>
    %cst_64 = arith.constant dense<0.000000e+00> : vector<2x512xf32>
    %209 = tpu.matmul %207, %0, %cst_64 {dimension_numbers = #tpu.dot_dimension_numbers<[1], [0], [0], [1], [0, 0, 1, 1], [], []>} : vector<2x128xf32>, vector<128x512xf32>, vector<2x512xf32> -> vector<2x512xf32>
    %210 = arith.addf %208, %209 : vector<2x512xf32>
    %211 = vector.extract_strided_slice %210 {offsets = [0, 0], sizes = [2, 128], strides = [1, 1]} : vector<2x512xf32> to vector<2x128xf32>
    %cst_65 = arith.constant 0.000000e+00 : f32
    %212 = vector.broadcast %cst_65 : f32 to vector<2x128xf32>
    %213 = arith.subf %212, %211 : vector<2x128xf32>
    %214 = math.exp %213 : vector<2x128xf32>
    %cst_66 = arith.constant 1.000000e+00 : f32
    %215 = vector.broadcast %cst_66 : f32 to vector<2x128xf32>
    %216 = arith.addf %215, %214 : vector<2x128xf32>
    %cst_67 = arith.constant 1.000000e+00 : f32
    %217 = vector.broadcast %cst_67 : f32 to vector<2x128xf32>
    %218 = arith.divf %217, %216 : vector<2x128xf32>
    %219 = vector.extract_strided_slice %210 {offsets = [0, 128], sizes = [2, 128], strides = [1, 1]} : vector<2x512xf32> to vector<2x128xf32>
    %cst_68 = arith.constant 0.000000e+00 : f32
    %220 = vector.broadcast %cst_68 : f32 to vector<2x128xf32>
    %221 = arith.subf %220, %219 : vector<2x128xf32>
    %222 = math.exp %221 : vector<2x128xf32>
    %cst_69 = arith.constant 1.000000e+00 : f32
    %223 = vector.broadcast %cst_69 : f32 to vector<2x128xf32>
    %224 = arith.addf %223, %222 : vector<2x128xf32>
    %cst_70 = arith.constant 1.000000e+00 : f32
    %225 = vector.broadcast %cst_70 : f32 to vector<2x128xf32>
    %226 = arith.divf %225, %224 : vector<2x128xf32>
    %227 = vector.extract_strided_slice %210 {offsets = [0, 256], sizes = [2, 128], strides = [1, 1]} : vector<2x512xf32> to vector<2x128xf32>
    %228 = math.tanh %227 : vector<2x128xf32>
    %229 = vector.extract_strided_slice %210 {offsets = [0, 384], sizes = [2, 128], strides = [1, 1]} : vector<2x512xf32> to vector<2x128xf32>
    %cst_71 = arith.constant 0.000000e+00 : f32
    %230 = vector.broadcast %cst_71 : f32 to vector<2x128xf32>
    %231 = arith.subf %230, %229 : vector<2x128xf32>
    %232 = math.exp %231 : vector<2x128xf32>
    %cst_72 = arith.constant 1.000000e+00 : f32
    %233 = vector.broadcast %cst_72 : f32 to vector<2x128xf32>
    %234 = arith.addf %233, %232 : vector<2x128xf32>
    %cst_73 = arith.constant 1.000000e+00 : f32
    %235 = vector.broadcast %cst_73 : f32 to vector<2x128xf32>
    %236 = arith.divf %235, %234 : vector<2x128xf32>
    %237 = arith.mulf %226, %205 : vector<2x128xf32>
    %238 = arith.mulf %218, %228 : vector<2x128xf32>
    %239 = arith.addf %237, %238 : vector<2x128xf32>
    %240 = math.tanh %239 : vector<2x128xf32>
    %241 = arith.mulf %236, %240 : vector<2x128xf32>
    %242 = vector.extract_strided_slice %1 {offsets = [14, 0], sizes = [2, 512], strides = [1, 1]} : vector<16x512xf32> to vector<2x512xf32>
    %cst_74 = arith.constant dense<0.000000e+00> : vector<2x512xf32>
    %243 = tpu.matmul %241, %0, %cst_74 {dimension_numbers = #tpu.dot_dimension_numbers<[1], [0], [0], [1], [0, 0, 1, 1], [], []>} : vector<2x128xf32>, vector<128x512xf32>, vector<2x512xf32> -> vector<2x512xf32>
    %244 = arith.addf %242, %243 : vector<2x512xf32>
    %245 = vector.extract_strided_slice %244 {offsets = [0, 0], sizes = [2, 128], strides = [1, 1]} : vector<2x512xf32> to vector<2x128xf32>
    %cst_75 = arith.constant 0.000000e+00 : f32
    %246 = vector.broadcast %cst_75 : f32 to vector<2x128xf32>
    %247 = arith.subf %246, %245 : vector<2x128xf32>
    %248 = math.exp %247 : vector<2x128xf32>
    %cst_76 = arith.constant 1.000000e+00 : f32
    %249 = vector.broadcast %cst_76 : f32 to vector<2x128xf32>
    %250 = arith.addf %249, %248 : vector<2x128xf32>
    %cst_77 = arith.constant 1.000000e+00 : f32
    %251 = vector.broadcast %cst_77 : f32 to vector<2x128xf32>
    %252 = arith.divf %251, %250 : vector<2x128xf32>
    %253 = vector.extract_strided_slice %244 {offsets = [0, 128], sizes = [2, 128], strides = [1, 1]} : vector<2x512xf32> to vector<2x128xf32>
    %cst_78 = arith.constant 0.000000e+00 : f32
    %254 = vector.broadcast %cst_78 : f32 to vector<2x128xf32>
    %255 = arith.subf %254, %253 : vector<2x128xf32>
    %256 = math.exp %255 : vector<2x128xf32>
    %cst_79 = arith.constant 1.000000e+00 : f32
    %257 = vector.broadcast %cst_79 : f32 to vector<2x128xf32>
    %258 = arith.addf %257, %256 : vector<2x128xf32>
    %cst_80 = arith.constant 1.000000e+00 : f32
    %259 = vector.broadcast %cst_80 : f32 to vector<2x128xf32>
    %260 = arith.divf %259, %258 : vector<2x128xf32>
    %261 = vector.extract_strided_slice %244 {offsets = [0, 256], sizes = [2, 128], strides = [1, 1]} : vector<2x512xf32> to vector<2x128xf32>
    %262 = math.tanh %261 : vector<2x128xf32>
    %263 = vector.extract_strided_slice %244 {offsets = [0, 384], sizes = [2, 128], strides = [1, 1]} : vector<2x512xf32> to vector<2x128xf32>
    %cst_81 = arith.constant 0.000000e+00 : f32
    %264 = vector.broadcast %cst_81 : f32 to vector<2x128xf32>
    %265 = arith.subf %264, %263 : vector<2x128xf32>
    %266 = math.exp %265 : vector<2x128xf32>
    %cst_82 = arith.constant 1.000000e+00 : f32
    %267 = vector.broadcast %cst_82 : f32 to vector<2x128xf32>
    %268 = arith.addf %267, %266 : vector<2x128xf32>
    %cst_83 = arith.constant 1.000000e+00 : f32
    %269 = vector.broadcast %cst_83 : f32 to vector<2x128xf32>
    %270 = arith.divf %269, %268 : vector<2x128xf32>
    %271 = arith.mulf %260, %239 : vector<2x128xf32>
    %272 = arith.mulf %252, %262 : vector<2x128xf32>
    %273 = arith.addf %271, %272 : vector<2x128xf32>
    %274 = math.tanh %273 : vector<2x128xf32>
    %275 = arith.mulf %270, %274 : vector<2x128xf32>
    %276 = tpu.concatenate %37, %71, %105, %139, %173, %207, %241, %275 in 0 : vector<2x128xf32>, vector<2x128xf32>, vector<2x128xf32>, vector<2x128xf32>, vector<2x128xf32>, vector<2x128xf32>, vector<2x128xf32>, vector<2x128xf32> -> vector<16x128xf32>
    %c0_84 = arith.constant 0 : index
    %c0_85 = arith.constant 0 : index
    %277 = vector.load %arg2[%c0_84, %c0_85] : memref<16x128xf32, #tpu.memory_space<vmem>>, vector<16x128xf32>
    tpu.vector_store %arg2[%c0_84, %c0_85], %276 {strides = array<i32>} : memref<16x128xf32, #tpu.memory_space<vmem>>, vector<16x128xf32>,
    return
  }
}

module attributes {stable_mosaic.version = 11 : i64} {
  func.func @_linear_kernel(%arg0: memref<16x128xf32, #tpu.memory_space<vmem>>, %arg1: memref<128x512xf32, #tpu.memory_space<vmem>>, %arg2: memref<1x512xf32, #tpu.memory_space<vmem>>, %arg3: memref<16x512xf32, #tpu.memory_space<vmem>>) attributes {dimension_semantics = [], scalar_prefetch = 0 : i64, scratch_operands = 0 : i64, tpu.core_type = #tpu.core_type<tc>} {
    %c0 = arith.constant 0 : index
    %c0_0 = arith.constant 0 : index
    %0 = vector.load %arg0[%c0, %c0_0] : memref<16x128xf32, #tpu.memory_space<vmem>>, vector<16x128xf32>
    %c0_1 = arith.constant 0 : index
    %c0_2 = arith.constant 0 : index
    %1 = vector.load %arg1[%c0_1, %c0_2] : memref<128x512xf32, #tpu.memory_space<vmem>>, vector<128x512xf32>
    %cst = arith.constant dense<0.000000e+00> : vector<16x512xf32>
    %2 = tpu.matmul %0, %1, %cst {dimension_numbers = #tpu.dot_dimension_numbers<[1], [0], [0], [1], [0, 0, 1, 1], [], []>} : vector<16x128xf32>, vector<128x512xf32>, vector<16x512xf32> -> vector<16x512xf32>
    %c0_3 = arith.constant 0 : index
    %c0_4 = arith.constant 0 : index
    %3 = vector.load %arg2[%c0_3, %c0_4] : memref<1x512xf32, #tpu.memory_space<vmem>>, vector<1x512xf32>
    %4 = vector.broadcast %3 : vector<1x512xf32> to vector<16x512xf32>
    %5 = arith.addf %2, %4 : vector<16x512xf32>
    %c0_5 = arith.constant 0 : index
    %c0_6 = arith.constant 0 : index
    %6 = vector.load %arg3[%c0_5, %c0_6] : memref<16x512xf32, #tpu.memory_space<vmem>>, vector<16x512xf32>
    tpu.vector_store %arg3[%c0_5, %c0_6], %5 {strides = array<i32>} : memref<16x512xf32, #tpu.memory_space<vmem>>, vector<16x512xf32>,
    return
  }
}

</mosaic_0001>

<llo_original>
// kernel: bert_lstm_forward.9
$region0: #{bert_lstm_forward.9}
  #allocation0 [shape = 'u32[]', space=smem, size = 0x4, offset = 0x4, fixed_abs, tag = 'smem constant byte address 0x4 - core index']
  #allocation1 [shape = 'u32[144,128]{1,0:T(1,128)}', space=vmem, size = 0x12000, scoped, tag = 'internal scratch']
  %s0 = inlined_call_operand.vmem [shape: f32[16,128], index: 0, kind: input, shape index: {}]
  %s1 = inlined_call_operand.vmem [shape: f32[1,128], index: 1, kind: input, shape index: {}]
  %s2 = inlined_call_operand.vmem [shape: f32[1,128], index: 2, kind: input, shape index: {}]
  %s3 = inlined_call_operand.vmem [shape: f32[16,128], index: 3, kind: output, shape index: {}]
  %s4 = sld [smem:[#allocation0]]
  $region22: #{bert_lstm_forward.9} parent=0
    _
  %s6 = ssub.s32 1, %s4
  %s7 = scalar_select 0, %s6, %s4
  // Predicated region
  $region2: #{bert_lstm_forward.9} parent=0 // pred_check
    _
  $region3: #{bert_lstm_forward.9} parent=0 // pred_check_branch
    %9 = sbr.rel (0) target = $region5
  $region4: #{bert_lstm_forward.9} parent=0 // pred_region
    _
  $region5: #{bert_lstm_forward.9} parent=0 // pred_fallthru
    _
  // Predicated region
  $region6: #{bert_lstm_forward.9} parent=0 // pred_check
    _
  $region7: #{bert_lstm_forward.9} parent=0 // pred_check_branch
    %11 = sbr.rel (0) target = $region9
  $region8: #{bert_lstm_forward.9} parent=0 // pred_region
    _
  $region9: #{bert_lstm_forward.9} parent=0 // pred_fallthru
    _
  // Predicated region
  $region10: #{bert_lstm_forward.9} parent=0 // pred_check
    _
  $region11: #{bert_lstm_forward.9} parent=0 // pred_check_branch
    %13 = sbr.rel (0) target = $region13
  $region12: #{bert_lstm_forward.9} parent=0 // pred_region
    _
  $region13: #{bert_lstm_forward.9} parent=0 // pred_fallthru
    _
  %v14 = vld [vmem:[%s0] sm:$0xff]
  %v15 = vld [vmem:[%s0 + $0x8] sm:$0xff]
  %v16 = vld [vmem:[%s1] sm:$0x1]
  %v17 = vld [vmem:[%s2] sm:$0x1]
  %18 = vadd.xlane.f32.xlu0 %v14
  %v19 = vpop.xlane.xlu0 %18
  %20 = vadd.xlane.f32.xlu0 %v15
  %v21 = vpop.xlane.xlu0 %20
  %v22 = vrcp.pop 128.0
  %v23 = vmul.f32 %v19, %v22
  %v24 = vmul.f32 %v21, %v22
  %v25 = vsub.f32 %v14, %v23
  %v26 = vsub.f32 %v15, %v24
  %v27 = vmul.f32 %v25, %v25
  %v28 = vmul.f32 %v26, %v26
  %29 = vadd.xlane.f32.xlu0 %v27
  %v30 = vpop.xlane.xlu0 %29
  %31 = vadd.xlane.f32.xlu0 %v28
  %v32 = vpop.xlane.xlu0 %31
  %v33 = vmul.f32 %v30, %v22
  %v34 = vmul.f32 %v32, %v22
  %v35 = vadd.f32 %v33, 1e-12
  %v36 = vadd.f32 %v34, 1e-12
  %v37 = vrsqrt.pop %v35
  %v38 = vrsqrt.pop %v36
  %v39 = vmul.f32 %v25, %v37
  %v40 = vmul.f32 %v26, %v38
  %v42 = vlaneseq
  %v43 = vshrl.u32 %v42, 7
  %v44 = vsub.s32 0, %v43
  %v45 = vrot.slane %v16, %v44
  %v47 = vmul.f32 %v39, %v45
  %v48 = vmul.f32 %v40, %v45
  %v50 = vlaneseq
  %v51 = vshrl.u32 %v50, 7
  %v52 = vsub.s32 0, %v51
  %v53 = vrot.slane %v17, %v52
  %v55 = vadd.f32 %v47, %v53
  %v56 = vadd.f32 %v48, %v53
  %57 = vst [vmem:[%s3] sm:$0xff] %v55
  %58 = vst [vmem:[%s3 + $0x8] sm:$0xff] %v56
  // Predicated region
  $region14: #{bert_lstm_forward.9} parent=0 // pred_check
    _
  $region15: #{bert_lstm_forward.9} parent=0 // pred_check_branch
    %60 = sbr.rel (0) target = $region17
  $region16: #{bert_lstm_forward.9} parent=0 // pred_region
    _
  $region17: #{bert_lstm_forward.9} parent=0 // pred_fallthru
    _
  // Predicated region
  $region18: #{bert_lstm_forward.9} parent=0 // pred_check
    _
  $region19: #{bert_lstm_forward.9} parent=0 // pred_check_branch
    %62 = sbr.rel (0) target = $region21
  $region20: #{bert_lstm_forward.9} parent=0 // pred_region
    _
  $region21: #{bert_lstm_forward.9} parent=0 // pred_fallthru
    _

// kernel: bert_lstm_forward.10
$region0: #{bert_lstm_forward.10}
  #allocation0 [shape = 'u32[]', space=smem, size = 0x4, offset = 0x4, fixed_abs, tag = 'smem constant byte address 0x4 - core index']
  #allocation1 [shape = 'u32[144,128]{1,0:T(1,128)}', space=vmem, size = 0x12000, scoped, tag = 'internal scratch']
  %s0 = inlined_call_operand.vmem [shape: f32[16,128], index: 0, kind: input, shape index: {}]
  %s1 = inlined_call_operand.hbm [shape: f32[128,384], index: 1, kind: input, shape index: {}]
  %s2 = inlined_call_operand.vmem [shape: f32[1,384], index: 2, kind: input, shape index: {}]
  %s3 = inlined_call_operand.vmem [shape: f32[16,384], index: 3, kind: output, shape index: {}]
  %s4 = sld [smem:[#allocation0]]
  $region26: #{bert_lstm_forward.10} parent=0
    _
  %s6 = ssub.s32 1, %s4
  %s7 = scalar_select 0, %s6, %s4
  $region1: #{bert_lstm_forward.10} parent=0
    #allocation2 [shape = 'u8[196608]{0}', space=vmem, size = 0x30000, scoped, tag = 'input window, operand 1, single buffered']
    #allocation3 [shape = 's32[1]{0}', space=sflag, size = 0x4, scoped, tag = 'scoped memory for bert_lstm_forward.10']
    %8 = vsyncpa [#allocation3], 0
    // Predicated region
    $region2: #{bert_lstm_forward.10} parent=1 // pred_check
      _
    $region3: #{bert_lstm_forward.10} parent=1 // pred_check_branch
      %10 = sbr.rel (0) target = $region5
    $region4: #{bert_lstm_forward.10} parent=1 // pred_region
      _
    $region5: #{bert_lstm_forward.10} parent=1 // pred_fallthru
      _
    // Predicated region
    $region6: #{bert_lstm_forward.10} parent=1 // pred_check
      _
    $region7: #{bert_lstm_forward.10} parent=1 // pred_check_branch
      %12 = sbr.rel (0) target = $region9
    $region8: #{bert_lstm_forward.10} parent=1 // pred_region
      %s14 = ssub.s32 6144, 6144
      %15 = vsyncadd [#allocation3], %s14
      %s16 = sshll.u32 [#allocation2], 4
      %s17 = int_to_ptr.vmem [resolvable:$true] %s16
      %22 = dma.hbm_to_vmem [thread:$0]  %s1, 6144, %s17, [#allocation3], 384, 384, 24
    $region9: #{bert_lstm_forward.10} parent=1 // pred_fallthru
      _
    // Predicated region
    $region10: #{bert_lstm_forward.10} parent=1 // pred_check
      _
    $region11: #{bert_lstm_forward.10} parent=1 // pred_check_branch
      %24 = sbr.rel (0) target = $region13
    $region12: #{bert_lstm_forward.10} parent=1 // pred_region
      _
    $region13: #{bert_lstm_forward.10} parent=1 // pred_fallthru
      _
    // Predicated region
    $region14: #{bert_lstm_forward.10} parent=1 // pred_check
      _
    $region15: #{bert_lstm_forward.10} parent=1 // pred_check_branch
      %26 = sbr.rel (0) target = $region17
    $region16: #{bert_lstm_forward.10} parent=1 // pred_region
      %27 = dma.done [#allocation3], 6144
    $region17: #{bert_lstm_forward.10} parent=1 // pred_fallthru
      _
    %v28 = vld [vmem:[%s0] sm:$0xff]
    %v29 = vld [vmem:[%s0 + $0x8] sm:$0xff]
    %v30 = vld [vmem:[#allocation2] sm:$0xff]
    %v31 = vld [vmem:[#allocation2 + $0x8] sm:$0xff]
    %v32 = vld [vmem:[#allocation2 + $0x10] sm:$0xff]
    %v33 = vld [vmem:[#allocation2 + $0x18] sm:$0xff]
    %v34 = vld [vmem:[#allocation2 + $0x20] sm:$0xff]
    %v35 = vld [vmem:[#allocation2 + $0x28] sm:$0xff]
    %v36 = vld [vmem:[#allocation2 + $0x30] sm:$0xff]
    %v37 = vld [vmem:[#allocation2 + $0x38] sm:$0xff]
    %v38 = vld [vmem:[#allocation2 + $0x40] sm:$0xff]
    %v39 = vld [vmem:[#allocation2 + $0x48] sm:$0xff]
    %v40 = vld [vmem:[#allocation2 + $0x50] sm:$0xff]
    %v41 = vld [vmem:[#allocation2 + $0x58] sm:$0xff]
    %v42 = vld [vmem:[#allocation2 + $0x60] sm:$0xff]
    %v43 = vld [vmem:[#allocation2 + $0x68] sm:$0xff]
    %v44 = vld [vmem:[#allocation2 + $0x70] sm:$0xff]
    %v45 = vld [vmem:[#allocation2 + $0x78] sm:$0xff]
    %v46 = vld [vmem:[#allocation2 + $0x80] sm:$0xff]
    %v47 = vld [vmem:[#allocation2 + $0x88] sm:$0xff]
    %v48 = vld [vmem:[#allocation2 + $0x90] sm:$0xff]
    %v49 = vld [vmem:[#allocation2 + $0x98] sm:$0xff]
    %v50 = vld [vmem:[#allocation2 + $0xa0] sm:$0xff]
    %v51 = vld [vmem:[#allocation2 + $0xa8] sm:$0xff]
    %v52 = vld [vmem:[#allocation2 + $0xb0] sm:$0xff]
    %v53 = vld [vmem:[#allocation2 + $0xb8] sm:$0xff]
    %v54 = vld [vmem:[#allocation2 + $0xc0] sm:$0xff]
    %v55 = vld [vmem:[#allocation2 + $0xc8] sm:$0xff]
    %v56 = vld [vmem:[#allocation2 + $0xd0] sm:$0xff]
    %v57 = vld [vmem:[#allocation2 + $0xd8] sm:$0xff]
    %v58 = vld [vmem:[#allocation2 + $0xe0] sm:$0xff]
    %v59 = vld [vmem:[#allocation2 + $0xe8] sm:$0xff]
    %v60 = vld [vmem:[#allocation2 + $0xf0] sm:$0xff]
    %v61 = vld [vmem:[#allocation2 + $0xf8] sm:$0xff]
    %v62 = vld [vmem:[#allocation2 + $0x100] sm:$0xff]
    %v63 = vld [vmem:[#allocation2 + $0x108] sm:$0xff]
    %v64 = vld [vmem:[#allocation2 + $0x110] sm:$0xff]
    %v65 = vld [vmem:[#allocation2 + $0x118] sm:$0xff]
    %v66 = vld [vmem:[#allocation2 + $0x120] sm:$0xff]
    %v67 = vld [vmem:[#allocation2 + $0x128] sm:$0xff]
    %v68 = vld [vmem:[#allocation2 + $0x130] sm:$0xff]
    %v69 = vld [vmem:[#allocation2 + $0x138] sm:$0xff]
    %v70 = vld [vmem:[#allocation2 + $0x140] sm:$0xff]
    %v71 = vld [vmem:[#allocation2 + $0x148] sm:$0xff]
    %v72 = vld [vmem:[#allocation2 + $0x150] sm:$0xff]
    %v73 = vld [vmem:[#allocation2 + $0x158] sm:$0xff]
    %v74 = vld [vmem:[#allocation2 + $0x160] sm:$0xff]
    %v75 = vld [vmem:[#allocation2 + $0x168] sm:$0xff]
    %v76 = vld [vmem:[#allocation2 + $0x170] sm:$0xff]
    %v77 = vld [vmem:[#allocation2 + $0x178] sm:$0xff]
    %v78 = vld [vmem:[%s2] sm:$0x7]
    %v80 = vlaneseq
    %v81 = vshrl.u32 %v80, 7
    %v82 = vsub.s32 0, %v81
    %v83 = vrot.slane %v78, %v82
    %v84 = vlaneseq
    %v85 = vshrl.u32 %v84, 7
    %v86 = vsub.s32 1, %v85
    %v87 = vrot.slane %v78, %v86
    %v88 = vlaneseq
    %v89 = vshrl.u32 %v88, 7
    %v90 = vsub.s32 2, %v89
    %v91 = vrot.slane %v78, %v90
    %95 = vmatprep.subr.mxu0 %v31
    %96 = vmatpush1.msra.mxu0 %v30
    %97 = vmatprep.subr.mxu0 %v34
    %98 = vmatpush1.msra.mxu0 %v33
    %99 = vmatprep.subr.mxu0 %v37
    %100 = vmatpush1.msra.mxu0 %v36
    %101 = vmatprep.subr.mxu0 %v40
    %102 = vmatpush1.msra.mxu0 %v39
    %103 = vmatprep.subr.mxu0 %v43
    %104 = vmatpush1.msra.mxu0 %v42
    %105 = vmatprep.subr.mxu0 %v46
    %106 = vmatpush1.msra.mxu0 %v45
    %107 = vmatprep.subr.mxu0 %v49
    %108 = vmatpush1.msra.mxu0 %v48
    %109 = vmatprep.subr.mxu0 %v52
    %110 = vmatpush1.msra.mxu0 %v51
    %111 = vmatprep.subr.mxu0 %v55
    %112 = vmatpush1.msra.mxu0 %v54
    %113 = vmatprep.subr.mxu0 %v58
    %114 = vmatpush1.msra.mxu0 %v57
    %115 = vmatprep.subr.mxu0 %v61
    %116 = vmatpush1.msra.mxu0 %v60
    %117 = vmatprep.subr.mxu0 %v64
    %118 = vmatpush1.msra.mxu0 %v63
    %119 = vmatprep.subr.mxu0 %v67
    %120 = vmatpush1.msra.mxu0 %v66
    %121 = vmatprep.subr.mxu0 %v70
    %122 = vmatpush1.msra.mxu0 %v69
    %123 = vmatprep.subr.mxu0 %v73
    %124 = vmatpush1.msra.mxu0 %v72
    %125 = vmatprep.subr.mxu0 %v76
    %126 = vmatpush1.msra.mxu0 %v75
    %127 = vmatprep.subr.mxu0 0.0
    %128 = vmatpush1.msra.mxu0 0.0
    %129 = vmatprep.subr.mxu0 0.0
    %130 = vmatpush1.msra.mxu0 0.0
    %131 = vmatprep.subr.mxu0 0.0
    %132 = vmatpush1.msra.mxu0 0.0
    %133 = vmatprep.subr.mxu0 0.0
    %134 = vmatpush1.msra.mxu0 0.0
    %135 = vmatprep.subr.mxu0 0.0
    %136 = vmatpush1.msra.mxu0 0.0
    %137 = vmatprep.subr.mxu0 0.0
    %138 = vmatpush1.msra.mxu0 0.0
    %139 = vmatprep.subr.mxu0 0.0
    %140 = vmatpush1.msra.mxu0 0.0
    %141 = vmatprep.subr.mxu0 0.0
    %142 = vmatpush1.msra.mxu0 0.0
    %143 = vmatprep.subr.mxu0 0.0
    %144 = vmatpush1.msra.mxu0 0.0
    %145 = vmatprep.subr.mxu0 0.0
    %146 = vmatpush1.msra.mxu0 0.0
    %147 = vmatprep.subr.mxu0 0.0
    %148 = vmatpush1.msra.mxu0 0.0
    %149 = vmatprep.subr.mxu0 0.0
    %150 = vmatpush1.msra.mxu0 0.0
    %151 = vmatprep.subr.mxu0 0.0
    %152 = vmatpush1.msra.mxu0 0.0
    %153 = vmatprep.subr.mxu0 0.0
    %154 = vmatpush1.msra.mxu0 0.0
    %155 = vmatprep.subr.mxu0 0.0
    %156 = vmatpush1.msra.mxu0 0.0
    %157 = vmatprep.subr.mxu0 0.0
    %158 = vmatpush1.msra.mxu0 0.0
    %159 = vmatprep.mubr.f32.mxu0 0.0
    %160 = vmatmul.mubr.f32.gmra.mrb[0].mxu0 %v28
    %v161 = vpop.f32.mrb[0].mxu0
    %v162 = vadd.f32 %v83, %v161
    %v163 = vpop.f32.mrb[0].mxu0
    %v164 = vadd.f32 %v87, %v163
    %165 = vmatprep.mubr.f32.mxu0 0.0
    %166 = vmatmul.mubr.f32.gmra.mrb[0].mxu0 %v29
    %v167 = vpop.f32.mrb[0].mxu0
    %v168 = vadd.f32 %v83, %v167
    %v169 = vpop.f32.mrb[0].mxu0
    %v170 = vadd.f32 %v87, %v169
    %171 = vdwg.mxu0
    %172 = vmatprep.subr.mxu0 0.0
    %173 = vmatpush1.msra.mxu0 %v32
    %174 = vmatprep.subr.mxu0 0.0
    %175 = vmatpush1.msra.mxu0 %v35
    %176 = vmatprep.subr.mxu0 0.0
    %177 = vmatpush1.msra.mxu0 %v38
    %178 = vmatprep.subr.mxu0 0.0
    %179 = vmatpush1.msra.mxu0 %v41
    %180 = vmatprep.subr.mxu0 0.0
    %181 = vmatpush1.msra.mxu0 %v44
    %182 = vmatprep.subr.mxu0 0.0
    %183 = vmatpush1.msra.mxu0 %v47
    %184 = vmatprep.subr.mxu0 0.0
    %185 = vmatpush1.msra.mxu0 %v50
    %186 = vmatprep.subr.mxu0 0.0
    %187 = vmatpush1.msra.mxu0 %v53
    %188 = vmatprep.subr.mxu0 0.0
    %189 = vmatpush1.msra.mxu0 %v56
    %190 = vmatprep.subr.mxu0 0.0
    %191 = vmatpush1.msra.mxu0 %v59
    %192 = vmatprep.subr.mxu0 0.0
    %193 = vmatpush1.msra.mxu0 %v62
    %194 = vmatprep.subr.mxu0 0.0
    %195 = vmatpush1.msra.mxu0 %v65
    %196 = vmatprep.subr.mxu0 0.0
    %197 = vmatpush1.msra.mxu0 %v68
    %198 = vmatprep.subr.mxu0 0.0
    %199 = vmatpush1.msra.mxu0 %v71
    %200 = vmatprep.subr.mxu0 0.0
    %201 = vmatpush1.msra.mxu0 %v74
    %202 = vmatprep.subr.mxu0 0.0
    %203 = vmatpush1.msra.mxu0 %v77
    %204 = vmatprep.subr.mxu0 0.0
    %205 = vmatpush1.msra.mxu0 0.0
    %206 = vmatprep.subr.mxu0 0.0
    %207 = vmatpush1.msra.mxu0 0.0
    %208 = vmatprep.subr.mxu0 0.0
    %209 = vmatpush1.msra.mxu0 0.0
    %210 = vmatprep.subr.mxu0 0.0
    %211 = vmatpush1.msra.mxu0 0.0
    %212 = vmatprep.subr.mxu0 0.0
    %213 = vmatpush1.msra.mxu0 0.0
    %214 = vmatprep.subr.mxu0 0.0
    %215 = vmatpush1.msra.mxu0 0.0
    %216 = vmatprep.subr.mxu0 0.0
    %217 = vmatpush1.msra.mxu0 0.0
    %218 = vmatprep.subr.mxu0 0.0
    %219 = vmatpush1.msra.mxu0 0.0
    %220 = vmatprep.subr.mxu0 0.0
    %221 = vmatpush1.msra.mxu0 0.0
    %222 = vmatprep.subr.mxu0 0.0
    %223 = vmatpush1.msra.mxu0 0.0
    %224 = vmatprep.subr.mxu0 0.0
    %225 = vmatpush1.msra.mxu0 0.0
    %226 = vmatprep.subr.mxu0 0.0
    %227 = vmatpush1.msra.mxu0 0.0
    %228 = vmatprep.subr.mxu0 0.0
    %229 = vmatpush1.msra.mxu0 0.0
    %230 = vmatprep.subr.mxu0 0.0
    %231 = vmatpush1.msra.mxu0 0.0
    %232 = vmatprep.subr.mxu0 0.0
    %233 = vmatpush1.msra.mxu0 0.0
    %234 = vmatprep.subr.mxu0 0.0
    %235 = vmatpush1.msra.mxu0 0.0
    %236 = vmatprep.mubr.f32.mxu0 0.0
    %237 = vmatmul.mubr.f32.gmra.mrb[0].mxu0 %v28
    %v238 = vpop.f32.mrb[0].mxu0
    %v239 = vadd.f32 %v91, %v238
    %v240 = vpop.f32.mrb[0].mxu0
    %241 = vmatprep.mubr.f32.mxu0 0.0
    %242 = vmatmul.mubr.f32.gmra.mrb[0].mxu0 %v29
    %v243 = vpop.f32.mrb[0].mxu0
    %v244 = vadd.f32 %v91, %v243
    %v245 = vpop.f32.mrb[0].mxu0
    %246 = vdwg.mxu0
    %247 = vst [vmem:[%s3] sm:$0xff] %v162
    %248 = vst [vmem:[%s3 + $0x8] sm:$0xff] %v164
    %249 = vst [vmem:[%s3 + $0x10] sm:$0xff] %v239
    %250 = vst [vmem:[%s3 + $0x18] sm:$0xff] %v168
    %251 = vst [vmem:[%s3 + $0x20] sm:$0xff] %v170
    %252 = vst [vmem:[%s3 + $0x28] sm:$0xff] %v244
    // Predicated region
    $region18: #{bert_lstm_forward.10} parent=1 // pred_check
      _
    $region19: #{bert_lstm_forward.10} parent=1 // pred_check_branch
      %254 = sbr.rel (0) target = $region21
    $region20: #{bert_lstm_forward.10} parent=1 // pred_region
      _
    $region21: #{bert_lstm_forward.10} parent=1 // pred_fallthru
      _
    // Predicated region
    $region22: #{bert_lstm_forward.10} parent=1 // pred_check
      _
    $region23: #{bert_lstm_forward.10} parent=1 // pred_check_branch
      %256 = sbr.rel (0) target = $region25
    $region24: #{bert_lstm_forward.10} parent=1 // pred_region
      _
    $region25: #{bert_lstm_forward.10} parent=1 // pred_fallthru
      _
    %257 = vsyncpa [#allocation3], 1

// kernel: bert_lstm_forward.12
$region0: #{bert_lstm_forward.12}
  #allocation0 [shape = 'u32[]', space=smem, size = 0x4, offset = 0x4, fixed_abs, tag = 'smem constant byte address 0x4 - core index']
  #allocation1 [shape = 'u32[144,128]{1,0:T(1,128)}', space=vmem, size = 0x12000, scoped, tag = 'internal scratch']
  %s0 = inlined_call_operand.vmem [shape: f32[16,128], index: 0, kind: input, shape index: {}]
  %s1 = inlined_call_operand.vmem [shape: f32[128,256], index: 1, kind: input, shape index: {}]
  %s2 = inlined_call_operand.vmem [shape: f32[1,256], index: 2, kind: input, shape index: {}]
  %s3 = inlined_call_operand.vmem [shape: f32[256,128], index: 3, kind: input, shape index: {}]
  %s4 = inlined_call_operand.vmem [shape: f32[1,128], index: 4, kind: input, shape index: {}]
  %s5 = inlined_call_operand.vmem [shape: f32[1,128], index: 5, kind: input, shape index: {}]
  %s6 = inlined_call_operand.vmem [shape: f32[1,128], index: 6, kind: input, shape index: {}]
  %s7 = inlined_call_operand.vmem [shape: f32[16,128], index: 7, kind: output, shape index: {}]
  %s8 = sld [smem:[#allocation0]]
  $region38: #{bert_lstm_forward.12} parent=0
    _
  %s10 = ssub.s32 1, %s8
  %s11 = scalar_select 0, %s10, %s8
  // Predicated region
  $region2: #{bert_lstm_forward.12} parent=0 // pred_check
    _
  $region3: #{bert_lstm_forward.12} parent=0 // pred_check_branch
    %13 = sbr.rel (0) target = $region5
  $region4: #{bert_lstm_forward.12} parent=0 // pred_region
    _
  $region5: #{bert_lstm_forward.12} parent=0 // pred_fallthru
    _
  // Predicated region
  $region6: #{bert_lstm_forward.12} parent=0 // pred_check
    _
  $region7: #{bert_lstm_forward.12} parent=0 // pred_check_branch
    %15 = sbr.rel (0) target = $region9
  $region8: #{bert_lstm_forward.12} parent=0 // pred_region
    _
  $region9: #{bert_lstm_forward.12} parent=0 // pred_fallthru
    _
  // Predicated region
  $region10: #{bert_lstm_forward.12} parent=0 // pred_check
    _
  $region11: #{bert_lstm_forward.12} parent=0 // pred_check_branch
    %17 = sbr.rel (0) target = $region13
  $region12: #{bert_lstm_forward.12} parent=0 // pred_region
    _
  $region13: #{bert_lstm_forward.12} parent=0 // pred_fallthru
    _
  // Predicated region
  $region14: #{bert_lstm_forward.12} parent=0 // pred_check
    _
  $region15: #{bert_lstm_forward.12} parent=0 // pred_check_branch
    %19 = sbr.rel (0) target = $region17
  $region16: #{bert_lstm_forward.12} parent=0 // pred_region
    _
  $region17: #{bert_lstm_forward.12} parent=0 // pred_fallthru
    _
  // Predicated region
  $region18: #{bert_lstm_forward.12} parent=0 // pred_check
    _
  $region19: #{bert_lstm_forward.12} parent=0 // pred_check_branch
    %21 = sbr.rel (0) target = $region21
  $region20: #{bert_lstm_forward.12} parent=0 // pred_region
    _
  $region21: #{bert_lstm_forward.12} parent=0 // pred_fallthru
    _
  // Predicated region
  $region22: #{bert_lstm_forward.12} parent=0 // pred_check
    _
  $region23: #{bert_lstm_forward.12} parent=0 // pred_check_branch
    %23 = sbr.rel (0) target = $region25
  $region24: #{bert_lstm_forward.12} parent=0 // pred_region
    _
  $region25: #{bert_lstm_forward.12} parent=0 // pred_fallthru
    _
  // Predicated region
  $region26: #{bert_lstm_forward.12} parent=0 // pred_check
    _
  $region27: #{bert_lstm_forward.12} parent=0 // pred_check_branch
    %25 = sbr.rel (0) target = $region29
  $region28: #{bert_lstm_forward.12} parent=0 // pred_region
    _
  $region29: #{bert_lstm_forward.12} parent=0 // pred_fallthru
    _
  %v26 = vld [vmem:[%s0] sm:$0xff]
  %v27 = vld [vmem:[%s0 + $0x8] sm:$0xff]
  %v28 = vld [vmem:[%s1] sm:$0xff]
  %v29 = vld [vmem:[%s1 + $0x8] sm:$0xff]
  %v30 = vld [vmem:[%s1 + $0x10] sm:$0xff]
  %v31 = vld [vmem:[%s1 + $0x18] sm:$0xff]
  %v32 = vld [vmem:[%s1 + $0x20] sm:$0xff]
  %v33 = vld [vmem:[%s1 + $0x28] sm:$0xff]
  %v34 = vld [vmem:[%s1 + $0x30] sm:$0xff]
  %v35 = vld [vmem:[%s1 + $0x38] sm:$0xff]
  %v36 = vld [vmem:[%s1 + $0x40] sm:$0xff]
  %v37 = vld [vmem:[%s1 + $0x48] sm:$0xff]
  %v38 = vld [vmem:[%s1 + $0x50] sm:$0xff]
  %v39 = vld [vmem:[%s1 + $0x58] sm:$0xff]
  %v40 = vld [vmem:[%s1 + $0x60] sm:$0xff]
  %v41 = vld [vmem:[%s1 + $0x68] sm:$0xff]
  %v42 = vld [vmem:[%s1 + $0x70] sm:$0xff]
  %v43 = vld [vmem:[%s1 + $0x78] sm:$0xff]
  %v44 = vld [vmem:[%s1 + $0x80] sm:$0xff]
  %v45 = vld [vmem:[%s1 + $0x88] sm:$0xff]
  %v46 = vld [vmem:[%s1 + $0x90] sm:$0xff]
  %v47 = vld [vmem:[%s1 + $0x98] sm:$0xff]
  %v48 = vld [vmem:[%s1 + $0xa0] sm:$0xff]
  %v49 = vld [vmem:[%s1 + $0xa8] sm:$0xff]
  %v50 = vld [vmem:[%s1 + $0xb0] sm:$0xff]
  %v51 = vld [vmem:[%s1 + $0xb8] sm:$0xff]
  %v52 = vld [vmem:[%s1 + $0xc0] sm:$0xff]
  %v53 = vld [vmem:[%s1 + $0xc8] sm:$0xff]
  %v54 = vld [vmem:[%s1 + $0xd0] sm:$0xff]
  %v55 = vld [vmem:[%s1 + $0xd8] sm:$0xff]
  %v56 = vld [vmem:[%s1 + $0xe0] sm:$0xff]
  %v57 = vld [vmem:[%s1 + $0xe8] sm:$0xff]
  %v58 = vld [vmem:[%s1 + $0xf0] sm:$0xff]
  %v59 = vld [vmem:[%s1 + $0xf8] sm:$0xff]
  %v60 = vld [vmem:[%s2] sm:$0x3]
  %v62 = vlaneseq
  %v63 = vshrl.u32 %v62, 7
  %v64 = vsub.s32 0, %v63
  %v65 = vrot.slane %v60, %v64
  %v66 = vlaneseq
  %v67 = vshrl.u32 %v66, 7
  %v68 = vsub.s32 1, %v67
  %v69 = vrot.slane %v60, %v68
  %72 = vmatprep.subr.mxu0 %v29
  %73 = vmatpush1.msra.mxu0 %v28
  %74 = vmatprep.subr.mxu0 %v31
  %75 = vmatpush1.msra.mxu0 %v30
  %76 = vmatprep.subr.mxu0 %v33
  %77 = vmatpush1.msra.mxu0 %v32
  %78 = vmatprep.subr.mxu0 %v35
  %79 = vmatpush1.msra.mxu0 %v34
  %80 = vmatprep.subr.mxu0 %v37
  %81 = vmatpush1.msra.mxu0 %v36
  %82 = vmatprep.subr.mxu0 %v39
  %83 = vmatpush1.msra.mxu0 %v38
  %84 = vmatprep.subr.mxu0 %v41
  %85 = vmatpush1.msra.mxu0 %v40
  %86 = vmatprep.subr.mxu0 %v43
  %87 = vmatpush1.msra.mxu0 %v42
  %88 = vmatprep.subr.mxu0 %v45
  %89 = vmatpush1.msra.mxu0 %v44
  %90 = vmatprep.subr.mxu0 %v47
  %91 = vmatpush1.msra.mxu0 %v46
  %92 = vmatprep.subr.mxu0 %v49
  %93 = vmatpush1.msra.mxu0 %v48
  %94 = vmatprep.subr.mxu0 %v51
  %95 = vmatpush1.msra.mxu0 %v50
  %96 = vmatprep.subr.mxu0 %v53
  %97 = vmatpush1.msra.mxu0 %v52
  %98 = vmatprep.subr.mxu0 %v55
  %99 = vmatpush1.msra.mxu0 %v54
  %100 = vmatprep.subr.mxu0 %v57
  %101 = vmatpush1.msra.mxu0 %v56
  %102 = vmatprep.subr.mxu0 %v59
  %103 = vmatpush1.msra.mxu0 %v58
  %104 = vmatprep.subr.mxu0 0.0
  %105 = vmatpush1.msra.mxu0 0.0
  %106 = vmatprep.subr.mxu0 0.0
  %107 = vmatpush1.msra.mxu0 0.0
  %108 = vmatprep.subr.mxu0 0.0
  %109 = vmatpush1.msra.mxu0 0.0
  %110 = vmatprep.subr.mxu0 0.0
  %111 = vmatpush1.msra.mxu0 0.0
  %112 = vmatprep.subr.mxu0 0.0
  %113 = vmatpush1.msra.mxu0 0.0
  %114 = vmatprep.subr.mxu0 0.0
  %115 = vmatpush1.msra.mxu0 0.0
  %116 = vmatprep.subr.mxu0 0.0
  %117 = vmatpush1.msra.mxu0 0.0
  %118 = vmatprep.subr.mxu0 0.0
  %119 = vmatpush1.msra.mxu0 0.0
  %120 = vmatprep.subr.mxu0 0.0
  %121 = vmatpush1.msra.mxu0 0.0
  %122 = vmatprep.subr.mxu0 0.0
  %123 = vmatpush1.msra.mxu0 0.0
  %124 = vmatprep.subr.mxu0 0.0
  %125 = vmatpush1.msra.mxu0 0.0
  %126 = vmatprep.subr.mxu0 0.0
  %127 = vmatpush1.msra.mxu0 0.0
  %128 = vmatprep.subr.mxu0 0.0
  %129 = vmatpush1.msra.mxu0 0.0
  %130 = vmatprep.subr.mxu0 0.0
  %131 = vmatpush1.msra.mxu0 0.0
  %132 = vmatprep.subr.mxu0 0.0
  %133 = vmatpush1.msra.mxu0 0.0
  %134 = vmatprep.subr.mxu0 0.0
  %135 = vmatpush1.msra.mxu0 0.0
  %136 = vmatprep.mubr.f32.mxu0 0.0
  %137 = vmatmul.mubr.f32.gmra.mrb[0].mxu0 %v26
  %v138 = vpop.f32.mrb[0].mxu0
  %v139 = vadd.f32 %v65, %v138
  %v140 = vpop.f32.mrb[0].mxu0
  %v141 = vadd.f32 %v69, %v140
  %142 = vmatprep.mubr.f32.mxu0 0.0
  %143 = vmatmul.mubr.f32.gmra.mrb[0].mxu0 %v27
  %v144 = vpop.f32.mrb[0].mxu0
  %v145 = vadd.f32 %v65, %v144
  %v146 = vpop.f32.mrb[0].mxu0
  %v147 = vadd.f32 %v69, %v146
  %148 = vdwg.mxu0
  %v149 = vmul.f32 %v139, 0.5
  %v150 = vmul.f32 %v141, 0.5
  %v151 = vmul.f32 %v145, 0.5
  %v152 = vmul.f32 %v147, 0.5
  %v153 = vmul.f32 %v139, 0.044715
  %v154 = vmul.f32 %v141, 0.044715
  %v155 = vmul.f32 %v145, 0.044715
  %v156 = vmul.f32 %v147, 0.044715
  %v157 = vmul.f32 %v153, %v139
  %v158 = vmul.f32 %v154, %v141
  %v159 = vmul.f32 %v155, %v145
  %v160 = vmul.f32 %v156, %v147
  %v161 = vmul.f32 %v157, %v139
  %v162 = vmul.f32 %v158, %v141
  %v163 = vmul.f32 %v159, %v145
  %v164 = vmul.f32 %v160, %v147
  %v165 = vadd.f32 %v139, %v161
  %v166 = vadd.f32 %v141, %v162
  %v167 = vadd.f32 %v145, %v163
  %v168 = vadd.f32 %v147, %v164
  %v169 = vmul.f32 %v165, 0.7978846
  %v170 = vmul.f32 %v166, 0.7978846
  %v171 = vmul.f32 %v167, 0.7978846
  %v172 = vmul.f32 %v168, 0.7978846
  %v173 = vtanh.pop %v169
  %v174 = vtanh.pop %v170
  %v175 = vtanh.pop %v171
  %v176 = vtanh.pop %v172
  %v177 = vadd.f32 %v173, 1.0
  %v178 = vadd.f32 %v174, 1.0
  %v179 = vadd.f32 %v175, 1.0
  %v180 = vadd.f32 %v176, 1.0
  %v181 = vmul.f32 %v149, %v177
  %v182 = vmul.f32 %v150, %v178
  %v183 = vmul.f32 %v151, %v179
  %v184 = vmul.f32 %v152, %v180
  %v185 = vld [vmem:[%s3] sm:$0xff]
  %v186 = vld [vmem:[%s3 + $0x8] sm:$0xff]
  %v187 = vld [vmem:[%s3 + $0x10] sm:$0xff]
  %v188 = vld [vmem:[%s3 + $0x18] sm:$0xff]
  %v189 = vld [vmem:[%s3 + $0x20] sm:$0xff]
  %v190 = vld [vmem:[%s3 + $0x28] sm:$0xff]
  %v191 = vld [vmem:[%s3 + $0x30] sm:$0xff]
  %v192 = vld [vmem:[%s3 + $0x38] sm:$0xff]
  %v193 = vld [vmem:[%s3 + $0x40] sm:$0xff]
  %v194 = vld [vmem:[%s3 + $0x48] sm:$0xff]
  %v195 = vld [vmem:[%s3 + $0x50] sm:$0xff]
  %v196 = vld [vmem:[%s3 + $0x58] sm:$0xff]
  %v197 = vld [vmem:[%s3 + $0x60] sm:$0xff]
  %v198 = vld [vmem:[%s3 + $0x68] sm:$0xff]
  %v199 = vld [vmem:[%s3 + $0x70] sm:$0xff]
  %v200 = vld [vmem:[%s3 + $0x78] sm:$0xff]
  %v201 = vld [vmem:[%s3 + $0x80] sm:$0xff]
  %v202 = vld [vmem:[%s3 + $0x88] sm:$0xff]
  %v203 = vld [vmem:[%s3 + $0x90] sm:$0xff]
  %v204 = vld [vmem:[%s3 + $0x98] sm:$0xff]
  %v205 = vld [vmem:[%s3 + $0xa0] sm:$0xff]
  %v206 = vld [vmem:[%s3 + $0xa8] sm:$0xff]
  %v207 = vld [vmem:[%s3 + $0xb0] sm:$0xff]
  %v208 = vld [vmem:[%s3 + $0xb8] sm:$0xff]
  %v209 = vld [vmem:[%s3 + $0xc0] sm:$0xff]
  %v210 = vld [vmem:[%s3 + $0xc8] sm:$0xff]
  %v211 = vld [vmem:[%s3 + $0xd0] sm:$0xff]
  %v212 = vld [vmem:[%s3 + $0xd8] sm:$0xff]
  %v213 = vld [vmem:[%s3 + $0xe0] sm:$0xff]
  %v214 = vld [vmem:[%s3 + $0xe8] sm:$0xff]
  %v215 = vld [vmem:[%s3 + $0xf0] sm:$0xff]
  %v216 = vld [vmem:[%s3 + $0xf8] sm:$0xff]
  %v217 = vld [vmem:[%s4] sm:$0x1]
  %v219 = vlaneseq
  %v220 = vshrl.u32 %v219, 7
  %v221 = vsub.s32 0, %v220
  %v222 = vrot.slane %v217, %v221
  %224 = vmatprep.subr.mxu0 0.0
  %225 = vmatpush1.msra.mxu0 %v185
  %226 = vmatprep.subr.mxu0 0.0
  %227 = vmatpush1.msra.mxu0 %v186
  %228 = vmatprep.subr.mxu0 0.0
  %229 = vmatpush1.msra.mxu0 %v187
  %230 = vmatprep.subr.mxu0 0.0
  %231 = vmatpush1.msra.mxu0 %v188
  %232 = vmatprep.subr.mxu0 0.0
  %233 = vmatpush1.msra.mxu0 %v189
  %234 = vmatprep.subr.mxu0 0.0
  %235 = vmatpush1.msra.mxu0 %v190
  %236 = vmatprep.subr.mxu0 0.0
  %237 = vmatpush1.msra.mxu0 %v191
  %238 = vmatprep.subr.mxu0 0.0
  %239 = vmatpush1.msra.mxu0 %v192
  %240 = vmatprep.subr.mxu0 0.0
  %241 = vmatpush1.msra.mxu0 %v193
  %242 = vmatprep.subr.mxu0 0.0
  %243 = vmatpush1.msra.mxu0 %v194
  %244 = vmatprep.subr.mxu0 0.0
  %245 = vmatpush1.msra.mxu0 %v195
  %246 = vmatprep.subr.mxu0 0.0
  %247 = vmatpush1.msra.mxu0 %v196
  %248 = vmatprep.subr.mxu0 0.0
  %249 = vmatpush1.msra.mxu0 %v197
  %250 = vmatprep.subr.mxu0 0.0
  %251 = vmatpush1.msra.mxu0 %v198
  %252 = vmatprep.subr.mxu0 0.0
  %253 = vmatpush1.msra.mxu0 %v199
  %254 = vmatprep.subr.mxu0 0.0
  %255 = vmatpush1.msra.mxu0 %v200
  %256 = vmatprep.subr.mxu0 0.0
  %257 = vmatpush1.msra.mxu0 %v201
  %258 = vmatprep.subr.mxu0 0.0
  %259 = vmatpush1.msra.mxu0 %v202
  %260 = vmatprep.subr.mxu0 0.0
  %261 = vmatpush1.msra.mxu0 %v203
  %262 = vmatprep.subr.mxu0 0.0
  %263 = vmatpush1.msra.mxu0 %v204
  %264 = vmatprep.subr.mxu0 0.0
  %265 = vmatpush1.msra.mxu0 %v205
  %266 = vmatprep.subr.mxu0 0.0
  %267 = vmatpush1.msra.mxu0 %v206
  %268 = vmatprep.subr.mxu0 0.0
  %269 = vmatpush1.msra.mxu0 %v207
  %270 = vmatprep.subr.mxu0 0.0
  %271 = vmatpush1.msra.mxu0 %v208
  %272 = vmatprep.subr.mxu0 0.0
  %273 = vmatpush1.msra.mxu0 %v209
  %274 = vmatprep.subr.mxu0 0.0
  %275 = vmatpush1.msra.mxu0 %v210
  %276 = vmatprep.subr.mxu0 0.0
  %277 = vmatpush1.msra.mxu0 %v211
  %278 = vmatprep.subr.mxu0 0.0
  %279 = vmatpush1.msra.mxu0 %v212
  %280 = vmatprep.subr.mxu0 0.0
  %281 = vmatpush1.msra.mxu0 %v213
  %282 = vmatprep.subr.mxu0 0.0
  %283 = vmatpush1.msra.mxu0 %v214
  %284 = vmatprep.subr.mxu0 0.0
  %285 = vmatpush1.msra.mxu0 %v215
  %286 = vmatprep.subr.mxu0 0.0
  %287 = vmatpush1.msra.mxu0 %v216
  %288 = vmatprep.mubr.f32.mxu0 %v182
  %289 = vmatmul.mubr.f32.gmra.mrb[0].mxu0 %v181
  %v290 = vpop.f32.mrb[0].mxu0
  %v291 = vadd.f32 %v222, %v290
  %v292 = vpop.f32.mrb[0].mxu0
  %293 = vmatprep.mubr.f32.mxu0 %v184
  %294 = vmatmul.mubr.f32.gmra.mrb[0].mxu0 %v183
  %v295 = vpop.f32.mrb[0].mxu0
  %v296 = vadd.f32 %v222, %v295
  %v297 = vpop.f32.mrb[0].mxu0
  %298 = vdwg.mxu0
  %v299 = vadd.f32 %v291, %v26
  %v300 = vadd.f32 %v296, %v27
  %v301 = vld [vmem:[%s5] sm:$0x1]
  %v302 = vld [vmem:[%s6] sm:$0x1]
  %303 = vadd.xlane.f32.xlu0 %v299
  %v304 = vpop.xlane.xlu0 %303
  %305 = vadd.xlane.f32.xlu0 %v300
  %v306 = vpop.xlane.xlu0 %305
  %v307 = vrcp.pop 128.0
  %v308 = vmul.f32 %v304, %v307
  %v309 = vmul.f32 %v306, %v307
  %v310 = vsub.f32 %v299, %v308
  %v311 = vsub.f32 %v300, %v309
  %v312 = vmul.f32 %v310, %v310
  %v313 = vmul.f32 %v311, %v311
  %314 = vadd.xlane.f32.xlu0 %v312
  %v315 = vpop.xlane.xlu0 %314
  %316 = vadd.xlane.f32.xlu0 %v313
  %v317 = vpop.xlane.xlu0 %316
  %v318 = vmul.f32 %v315, %v307
  %v319 = vmul.f32 %v317, %v307
  %v320 = vadd.f32 %v318, 1e-12
  %v321 = vadd.f32 %v319, 1e-12
  %v322 = vrsqrt.pop %v320
  %v323 = vrsqrt.pop %v321
  %v324 = vmul.f32 %v310, %v322
  %v325 = vmul.f32 %v311, %v323
  %v327 = vlaneseq
  %v328 = vshrl.u32 %v327, 7
  %v329 = vsub.s32 0, %v328
  %v330 = vrot.slane %v301, %v329
  %v332 = vmul.f32 %v324, %v330
  %v333 = vmul.f32 %v325, %v330
  %v335 = vlaneseq
  %v336 = vshrl.u32 %v335, 7
  %v337 = vsub.s32 0, %v336
  %v338 = vrot.slane %v302, %v337
  %v340 = vadd.f32 %v332, %v338
  %v341 = vadd.f32 %v333, %v338
  %342 = vst [vmem:[%s7] sm:$0xff] %v340
  %343 = vst [vmem:[%s7 + $0x8] sm:$0xff] %v341
  // Predicated region
  $region30: #{bert_lstm_forward.12} parent=0 // pred_check
    _
  $region31: #{bert_lstm_forward.12} parent=0 // pred_check_branch
    %345 = sbr.rel (0) target = $region33
  $region32: #{bert_lstm_forward.12} parent=0 // pred_region
    _
  $region33: #{bert_lstm_forward.12} parent=0 // pred_fallthru
    _
  // Predicated region
  $region34: #{bert_lstm_forward.12} parent=0 // pred_check
    _
  $region35: #{bert_lstm_forward.12} parent=0 // pred_check_branch
    %347 = sbr.rel (0) target = $region37
  $region36: #{bert_lstm_forward.12} parent=0 // pred_region
    _
  $region37: #{bert_lstm_forward.12} parent=0 // pred_fallthru
    _

// kernel: bert_lstm_forward.11
$region0: #{bert_lstm_forward.11}
  #allocation0 [shape = 'u32[]', space=smem, size = 0x4, offset = 0x4, fixed_abs, tag = 'smem constant byte address 0x4 - core index']
  #allocation1 [shape = 'u32[144,128]{1,0:T(1,128)}', space=vmem, size = 0x12000, scoped, tag = 'internal scratch']
  %s0 = inlined_call_operand.vmem [shape: f32[2,8,384], index: 0, kind: input, shape index: {}]
  %s1 = inlined_call_operand.vmem [shape: f32[2,8,128], index: 1, kind: input, shape index: {}]
  %s2 = inlined_call_operand.vmem [shape: f32[128,128], index: 2, kind: input, shape index: {}]
  %s3 = inlined_call_operand.vmem [shape: f32[1,128], index: 3, kind: input, shape index: {}]
  %s4 = inlined_call_operand.vmem [shape: f32[1,128], index: 4, kind: input, shape index: {}]
  %s5 = inlined_call_operand.vmem [shape: f32[1,128], index: 5, kind: input, shape index: {}]
  %s6 = inlined_call_operand.vmem [shape: f32[2,8,128], index: 6, kind: output, shape index: {}]
  %s7 = sld [smem:[#allocation0]]
  $region57: #{bert_lstm_forward.11} parent=0
    _
  %s9 = ssub.s32 1, %s7
  %s10 = scalar_select 0, %s9, %s7
  loop: start=0, step=1, limit=4
  $region2: #{bert_lstm_forward.11} parent=0 // loop_pre_header
    _
  $region3: #{bert_lstm_forward.11} parent=0 // loop_header
    %s12 = sphi 0, %s16
    %p13 = scmp.ge.s32.totalorder %s12, 4
    %s22 = sphi 0, %s24
    %s25 = sphi 0, %s22
    %s26 = sphi 0, %s25
    %s42 = sphi 0, %s26
    %s48 = sphi 0, %s50
    %s51 = sphi 0, %s48
    %s52 = sphi 0, %s51
    %s68 = sphi 0, %s52
    %s72 = sphi 0, %s72
    %s74 = sphi 0, %s72
    %s75 = sphi 0, %s74
    %s89 = sphi 0, %s75
    %s93 = sphi 0, %s93
    %s95 = sphi 0, %s93
    %s96 = sphi 0, %s95
    %s110 = sphi 0, %s96
    %s114 = sphi 0, %s114
    %s116 = sphi 0, %s114
    %s117 = sphi 0, %s116
    %s131 = sphi 0, %s117
    %s135 = sphi 0, %s135
    %s137 = sphi 0, %s135
    %s138 = sphi 0, %s137
    %s152 = sphi 0, %s138
    %s158 = sphi 0, %s160
    %s161 = sphi 0, %s158
    %s162 = sphi 0, %s161
    %s178 = sphi 0, %s162
  $region4: #{bert_lstm_forward.11} parent=0 // loop_header_branch
    %15 = sbr.rel (%p13) target = $region8
  $region5: #{bert_lstm_forward.11} parent=0 // loop_body
    %s17 = ssub.s32 %s12, 1
    %s18 = ssub.s32 %s12, 2
    %s19 = sadd.s32 %s12, 1
    %s20 = ssub.s32 %s12, %s19
    %p21 = scmp.eq.s32.totalorder %s20, 0
    %s23 = sadd.s32 %s22, 1
    %s24 = scalar_select %p21, %s22, %s23
    %p27 = pneg %p21
    %p28 = scmp.eq.s32.totalorder %s12, 1
    %p29 = por %p27, %p28
    %p30 = scmp.ne.s32.totalorder %s22, %s25
    %p31 = scmp.eq.s32.totalorder %s12, 0
    %p32 = por %p30, %p31
    %p33 = scmp.ne.s32.totalorder %s22, %s25
    %p34 = scmp.eq.s32.totalorder %s17, 1
    %p35 = por %p33, %p34
    %p36 = scmp.ne.s32.totalorder %s25, %s26
    %p37 = scmp.eq.s32.totalorder %s17, 0
    %p38 = por %p36, %p37
    %p39 = scmp.ne.s32.totalorder %s25, %s26
    %p40 = scmp.eq.s32.totalorder %s18, 1
    %p41 = por %p39, %p40
    %p43 = scmp.ne.s32.totalorder %s26, %s42
    %p44 = scmp.eq.s32.totalorder %s18, 0
    %p45 = por %p43, %p44
    %s46 = ssub.s32 %s12, %s19
    %p47 = scmp.eq.s32.totalorder %s46, 0
    %s49 = sadd.s32 %s48, 1
    %s50 = scalar_select %p47, %s48, %s49
    %p53 = pneg %p47
    %p54 = scmp.eq.s32.totalorder %s12, 1
    %p55 = por %p53, %p54
    %p56 = scmp.ne.s32.totalorder %s48, %s51
    %p57 = scmp.eq.s32.totalorder %s12, 0
    %p58 = por %p56, %p57
    %p59 = scmp.ne.s32.totalorder %s48, %s51
    %p60 = scmp.eq.s32.totalorder %s17, 1
    %p61 = por %p59, %p60
    %p62 = scmp.ne.s32.totalorder %s51, %s52
    %p63 = scmp.eq.s32.totalorder %s17, 0
    %p64 = por %p62, %p63
    %p65 = scmp.ne.s32.totalorder %s51, %s52
    %p66 = scmp.eq.s32.totalorder %s18, 1
    %p67 = por %p65, %p66
    %p69 = scmp.ne.s32.totalorder %s52, %s68
    %p70 = scmp.eq.s32.totalorder %s18, 0
    %p71 = por %p69, %p70
    %s73 = sadd.s32 %s72, 1
    %p76 = scmp.eq.s32.totalorder %s12, 1
    %p77 = scmp.ne.s32.totalorder %s72, %s74
    %p78 = scmp.eq.s32.totalorder %s12, 0
    %p79 = por %p77, %p78
    %p80 = scmp.ne.s32.totalorder %s72, %s74
    %p81 = scmp.eq.s32.totalorder %s17, 1
    %p82 = por %p80, %p81
    %p83 = scmp.ne.s32.totalorder %s74, %s75
    %p84 = scmp.eq.s32.totalorder %s17, 0
    %p85 = por %p83, %p84
    %p86 = scmp.ne.s32.totalorder %s74, %s75
    %p87 = scmp.eq.s32.totalorder %s18, 1
    %p88 = por %p86, %p87
    %p90 = scmp.ne.s32.totalorder %s75, %s89
    %p91 = scmp.eq.s32.totalorder %s18, 0
    %p92 = por %p90, %p91
    %s94 = sadd.s32 %s93, 1
    %p97 = scmp.eq.s32.totalorder %s12, 1
    %p98 = scmp.ne.s32.totalorder %s93, %s95
    %p99 = scmp.eq.s32.totalorder %s12, 0
    %p100 = por %p98, %p99
    %p101 = scmp.ne.s32.totalorder %s93, %s95
    %p102 = scmp.eq.s32.totalorder %s17, 1
    %p103 = por %p101, %p102
    %p104 = scmp.ne.s32.totalorder %s95, %s96
    %p105 = scmp.eq.s32.totalorder %s17, 0
    %p106 = por %p104, %p105
    %p107 = scmp.ne.s32.totalorder %s95, %s96
    %p108 = scmp.eq.s32.totalorder %s18, 1
    %p109 = por %p107, %p108
    %p111 = scmp.ne.s32.totalorder %s96, %s110
    %p112 = scmp.eq.s32.totalorder %s18, 0
    %p113 = por %p111, %p112
    %s115 = sadd.s32 %s114, 1
    %p118 = scmp.eq.s32.totalorder %s12, 1
    %p119 = scmp.ne.s32.totalorder %s114, %s116
    %p120 = scmp.eq.s32.totalorder %s12, 0
    %p121 = por %p119, %p120
    %p122 = scmp.ne.s32.totalorder %s114, %s116
    %p123 = scmp.eq.s32.totalorder %s17, 1
    %p124 = por %p122, %p123
    %p125 = scmp.ne.s32.totalorder %s116, %s117
    %p126 = scmp.eq.s32.totalorder %s17, 0
    %p127 = por %p125, %p126
    %p128 = scmp.ne.s32.totalorder %s116, %s117
    %p129 = scmp.eq.s32.totalorder %s18, 1
    %p130 = por %p128, %p129
    %p132 = scmp.ne.s32.totalorder %s117, %s131
    %p133 = scmp.eq.s32.totalorder %s18, 0
    %p134 = por %p132, %p133
    %s136 = sadd.s32 %s135, 1
    %p139 = scmp.eq.s32.totalorder %s12, 1
    %p140 = scmp.ne.s32.totalorder %s135, %s137
    %p141 = scmp.eq.s32.totalorder %s12, 0
    %p142 = por %p140, %p141
    %p143 = scmp.ne.s32.totalorder %s135, %s137
    %p144 = scmp.eq.s32.totalorder %s17, 1
    %p145 = por %p143, %p144
    %p146 = scmp.ne.s32.totalorder %s137, %s138
    %p147 = scmp.eq.s32.totalorder %s17, 0
    %p148 = por %p146, %p147
    %p149 = scmp.ne.s32.totalorder %s137, %s138
    %p150 = scmp.eq.s32.totalorder %s18, 1
    %p151 = por %p149, %p150
    %p153 = scmp.ne.s32.totalorder %s138, %s152
    %p154 = scmp.eq.s32.totalorder %s18, 0
    %p155 = por %p153, %p154
    %s156 = ssub.s32 %s12, %s19
    %p157 = scmp.eq.s32.totalorder %s156, 0
    %s159 = sadd.s32 %s158, 1
    %s160 = scalar_select %p157, %s158, %s159
    %p163 = pneg %p157
    %p164 = scmp.eq.s32.totalorder %s12, 1
    %p165 = por %p163, %p164
    %p166 = scmp.ne.s32.totalorder %s158, %s161
    %p167 = scmp.eq.s32.totalorder %s12, 0
    %p168 = por %p166, %p167
    %p169 = scmp.ne.s32.totalorder %s158, %s161
    %p170 = scmp.eq.s32.totalorder %s17, 1
    %p171 = por %p169, %p170
    %p172 = scmp.ne.s32.totalorder %s161, %s162
    %p173 = scmp.eq.s32.totalorder %s17, 0
    %p174 = por %p172, %p173
    %p175 = scmp.ne.s32.totalorder %s161, %s162
    %p176 = scmp.eq.s32.totalorder %s18, 1
    %p177 = por %p175, %p176
    %p179 = scmp.ne.s32.totalorder %s162, %s178
    %p180 = scmp.eq.s32.totalorder %s18, 0
    %p181 = por %p179, %p180
    %p182 = scmp.le.s32.totalorder 1, %s12
    %p183 = scmp.lt.s32.totalorder %s12, 3
    %p184 = pnand %p182, %p183
    %p185 = pneg %p184
    // Predicated region
    $region9: #{bert_lstm_forward.11} parent=5 // pred_check
      _
    $region10: #{bert_lstm_forward.11} parent=5 // pred_check_branch
      %187 = sbr.rel (%p184) target = $region12
    $region11: #{bert_lstm_forward.11} parent=5 // pred_region
      %s188 = ssub.s32 %s12, 1
      // Predicated region
      $region13: #{bert_lstm_forward.11} parent=11 // pred_check
        %p189 = pneg %p85
      $region14: #{bert_lstm_forward.11} parent=11 // pred_check_branch
        %191 = sbr.rel (%p189) target = $region16
      $region15: #{bert_lstm_forward.11} parent=11 // pred_region
        _
      $region16: #{bert_lstm_forward.11} parent=11 // pred_fallthru
        _
      // Predicated region
      $region17: #{bert_lstm_forward.11} parent=11 // pred_check
        %p192 = pneg %p106
      $region18: #{bert_lstm_forward.11} parent=11 // pred_check_branch
        %194 = sbr.rel (%p192) target = $region20
      $region19: #{bert_lstm_forward.11} parent=11 // pred_region
        _
      $region20: #{bert_lstm_forward.11} parent=11 // pred_fallthru
        _
      // Predicated region
      $region21: #{bert_lstm_forward.11} parent=11 // pred_check
        %p195 = pneg %p127
      $region22: #{bert_lstm_forward.11} parent=11 // pred_check_branch
        %197 = sbr.rel (%p195) target = $region24
      $region23: #{bert_lstm_forward.11} parent=11 // pred_region
        _
      $region24: #{bert_lstm_forward.11} parent=11 // pred_fallthru
        _
      // Predicated region
      $region25: #{bert_lstm_forward.11} parent=11 // pred_check
        %p198 = pneg %p148
      $region26: #{bert_lstm_forward.11} parent=11 // pred_check_branch
        %200 = sbr.rel (%p198) target = $region28
      $region27: #{bert_lstm_forward.11} parent=11 // pred_region
        _
      $region28: #{bert_lstm_forward.11} parent=11 // pred_fallthru
        _
    $region12: #{bert_lstm_forward.11} parent=5 // pred_fallthru
      _
    %p201 = scmp.lt.s32.totalorder %s12, 2
    // Predicated region
    $region29: #{bert_lstm_forward.11} parent=5 // pred_check
      %p202 = pneg %p201
    $region30: #{bert_lstm_forward.11} parent=5 // pred_check_branch
      %204 = sbr.rel (%p202) target = $region32
    $region31: #{bert_lstm_forward.11} parent=5 // pred_region
      // Predicated region
      $region33: #{bert_lstm_forward.11} parent=31 // pred_check
        %p205 = pneg %p32
      $region34: #{bert_lstm_forward.11} parent=31 // pred_check_branch
        %207 = sbr.rel (%p205) target = $region36
      $region35: #{bert_lstm_forward.11} parent=31 // pred_region
        %p208 = scmp.lt.s32.totalorder %s12, 1
        %s209 = scalar_select %p208, %s12, 1
        %s210 = smul.addr %s209, 3
        %s211 = smul.addr %s210, 8
        %s212 = scalar_lea.vmem %s0, %s211
      $region36: #{bert_lstm_forward.11} parent=31 // pred_fallthru
        _
      // Predicated region
      $region37: #{bert_lstm_forward.11} parent=31 // pred_check
        %p213 = pneg %p58
      $region38: #{bert_lstm_forward.11} parent=31 // pred_check_branch
        %215 = sbr.rel (%p213) target = $region40
      $region39: #{bert_lstm_forward.11} parent=31 // pred_region
        %p216 = scmp.lt.s32.totalorder %s12, 1
        %s217 = scalar_select %p216, %s12, 1
        %s218 = smul.addr %s217, 8
        %s219 = scalar_lea.vmem %s1, %s218
      $region40: #{bert_lstm_forward.11} parent=31 // pred_fallthru
        _
    $region32: #{bert_lstm_forward.11} parent=5 // pred_fallthru
      _
    %p220 = scmp.le.s32.totalorder 1, %s12
    %p221 = scmp.lt.s32.totalorder %s12, 3
    %p222 = pnand %p220, %p221
    %p223 = pneg %p222
    // Predicated region
    $region41: #{bert_lstm_forward.11} parent=5 // pred_check
      _
    $region42: #{bert_lstm_forward.11} parent=5 // pred_check_branch
      %225 = sbr.rel (%p222) target = $region44
    $region43: #{bert_lstm_forward.11} parent=5 // pred_region
      %s226 = ssub.s32 %s12, 1
      %p227 = scmp.lt.s32.totalorder %s17, 1
      %s228 = scalar_select %p227, %s17, 1
      %s229 = smul.addr %s228, 3
      %s230 = smul.addr %s229, 8
      %s231 = scalar_lea.vmem %s0, %s230
      %p232 = pneg %p38
      %p233 = pneg %p35
      %p234 = scmp.lt.s32.totalorder %s17, 1
      %s235 = scalar_select %p234, %s17, 1
      %s236 = smul.addr %s235, 8
      %s237 = scalar_lea.vmem %s1, %s236
      %p238 = pneg %p64
      %p239 = pneg %p61
      %p240 = pneg %p85
      %p241 = pneg %p82
      %p242 = pneg %p106
      %p243 = pneg %p103
      %p244 = pneg %p127
      %p245 = pneg %p124
      %p246 = pneg %p148
      %p247 = pneg %p145
      %p248 = pneg %p174
      %p249 = pneg %p171
      %p250 = scmp.lt.s32.totalorder %s17, 1
      %s251 = scalar_select %p250, %s17, 1
      %s252 = smul.addr %s251, 8
      %s253 = scalar_lea.vmem %s6, %s252
      %p254 = scmp.lt.s32.totalorder %s17, 1
      %s255 = scalar_select %p254, %s17, 1
      %s256 = smul.addr %s255, 3
      %s257 = smul.addr %s256, 8
      %s258 = scalar_lea.vmem %s0, %s257
      %p259 = scmp.lt.s32.totalorder %s17, 1
      %s260 = scalar_select %p259, %s17, 1
      %s261 = smul.addr %s260, 8
      %s262 = scalar_lea.vmem %s1, %s261
      %p263 = scmp.lt.s32.totalorder %s17, 1
      %s264 = scalar_select %p263, %s17, 1
      %s265 = smul.addr %s264, 8
      %s266 = scalar_lea.vmem %s6, %s265
      %v267 = vld [vmem:[%s258] sm:$0xff]
      %v268 = vld [vmem:[%s258 + $0x8] sm:$0xff]
      %v269 = vld [vmem:[%s258 + $0x10] sm:$0xff]
      %v270 = vmul.f32 %v267, 0.125
      %vm271 = vcmask 523264
      %v273 = vsel %vm271, %v270, 0
      %v276 = vsel %vm271, %v268, 0
      %278 = vmatprep.subr.mxu0 0.0
      %279 = vmatpush1.xpose.msra.mxu0 %v276
      %280 = vmatprep.subr.mxu0 0.0
      %281 = vmatpush1.xpose.msra.mxu0 0.0
      %282 = vmatprep.subr.mxu0 0.0
      %283 = vmatpush1.xpose.msra.mxu0 0.0
      %284 = vmatprep.subr.mxu0 0.0
      %285 = vmatpush1.xpose.msra.mxu0 0.0
      %286 = vmatprep.subr.mxu0 0.0
      %287 = vmatpush1.xpose.msra.mxu0 0.0
      %288 = vmatprep.subr.mxu0 0.0
      %289 = vmatpush1.xpose.msra.mxu0 0.0
      %290 = vmatprep.subr.mxu0 0.0
      %291 = vmatpush1.xpose.msra.mxu0 0.0
      %292 = vmatprep.subr.mxu0 0.0
      %293 = vmatpush1.xpose.msra.mxu0 0.0
      %294 = vmatprep.subr.mxu0 0.0
      %295 = vmatpush1.xpose.msra.mxu0 0.0
      %296 = vmatprep.subr.mxu0 0.0
      %297 = vmatpush1.xpose.msra.mxu0 0.0
      %298 = vmatprep.subr.mxu0 0.0
      %299 = vmatpush1.xpose.msra.mxu0 0.0
      %300 = vmatprep.subr.mxu0 0.0
      %301 = vmatpush1.xpose.msra.mxu0 0.0
      %302 = vmatprep.subr.mxu0 0.0
      %303 = vmatpush1.xpose.msra.mxu0 0.0
      %304 = vmatprep.subr.mxu0 0.0
      %305 = vmatpush1.xpose.msra.mxu0 0.0
      %306 = vmatprep.subr.mxu0 0.0
      %307 = vmatpush1.xpose.msra.mxu0 0.0
      %308 = vmatprep.subr.mxu0 0.0
      %309 = vmatpush1.xpose.msra.mxu0 0.0
      %310 = vmatprep.subr.mxu0 0.0
      %311 = vmatpush1.xpose.msra.mxu0 0.0
      %312 = vmatprep.subr.mxu0 0.0
      %313 = vmatpush1.xpose.msra.mxu0 0.0
      %314 = vmatprep.subr.mxu0 0.0
      %315 = vmatpush1.xpose.msra.mxu0 0.0
      %316 = vmatprep.subr.mxu0 0.0
      %317 = vmatpush1.xpose.msra.mxu0 0.0
      %318 = vmatprep.subr.mxu0 0.0
      %319 = vmatpush1.xpose.msra.mxu0 0.0
      %320 = vmatprep.subr.mxu0 0.0
      %321 = vmatpush1.xpose.msra.mxu0 0.0
      %322 = vmatprep.subr.mxu0 0.0
      %323 = vmatpush1.xpose.msra.mxu0 0.0
      %324 = vmatprep.subr.mxu0 0.0
      %325 = vmatpush1.xpose.msra.mxu0 0.0
      %326 = vmatprep.subr.mxu0 0.0
      %327 = vmatpush1.xpose.msra.mxu0 0.0
      %328 = vmatprep.subr.mxu0 0.0
      %329 = vmatpush1.xpose.msra.mxu0 0.0
      %330 = vmatprep.subr.mxu0 0.0
      %331 = vmatpush1.xpose.msra.mxu0 0.0
      %332 = vmatprep.subr.mxu0 0.0
      %333 = vmatpush1.xpose.msra.mxu0 0.0
      %334 = vmatprep.subr.mxu0 0.0
      %335 = vmatpush1.xpose.msra.mxu0 0.0
      %336 = vmatprep.subr.mxu0 0.0
      %337 = vmatpush1.xpose.msra.mxu0 0.0
      %338 = vmatprep.subr.mxu0 0.0
      %339 = vmatpush1.xpose.msra.mxu0 0.0
      %340 = vmatprep.subr.mxu0 0.0
      %341 = vmatpush1.xpose.msra.mxu0 0.0
      %342 = vmatprep.mubr.f32.mxu0 0.0
      %343 = vmatmul.mubr.f32.gmra.mrb[0].mxu0 %v273
      %v344 = vpop.f32.mrb[0].mxu0
      %v345 = vadd.f32 0.0, %v344
      %v346 = vpop.f32.mrb[0].mxu0
      %347 = vdwg.mxu0
      %vm348 = vcmask 64512
      %v349 = vsel %vm348, %v345, -inf
      %350 = vmax.xlane.f32.xlu0 %v349
      %v351 = vpop.xlane.xlu0 %350
      %v352 = vsub.f32 %v345, %v351
      %v353 = vmul.f32 %v352, 1.442695
      %v354 = vpow.pop %v353
      %v355 = vsel %vm348, %v354, 0.0
      %356 = vadd.xlane.f32.xlu0 %v355
      %v357 = vpop.xlane.xlu0 %356
      %v358 = vrcp.pop %v357
      %v359 = vmul.f32 %v354, %v358
      %v361 = vsel %vm348, %v359, 0
      %363 = vmatprep.subr.mxu0 0.0
      %364 = vmatpush1.msra.mxu0 %v269
      %365 = vmatprep.subr.mxu0 0.0
      %366 = vmatpush1.msra.mxu0 0.0
      %367 = vmatprep.subr.mxu0 0.0
      %368 = vmatpush1.msra.mxu0 0.0
      %369 = vmatprep.subr.mxu0 0.0
      %370 = vmatpush1.msra.mxu0 0.0
      %371 = vmatprep.subr.mxu0 0.0
      %372 = vmatpush1.msra.mxu0 0.0
      %373 = vmatprep.subr.mxu0 0.0
      %374 = vmatpush1.msra.mxu0 0.0
      %375 = vmatprep.subr.mxu0 0.0
      %376 = vmatpush1.msra.mxu0 0.0
      %377 = vmatprep.subr.mxu0 0.0
      %378 = vmatpush1.msra.mxu0 0.0
      %379 = vmatprep.subr.mxu0 0.0
      %380 = vmatpush1.msra.mxu0 0.0
      %381 = vmatprep.subr.mxu0 0.0
      %382 = vmatpush1.msra.mxu0 0.0
      %383 = vmatprep.subr.mxu0 0.0
      %384 = vmatpush1.msra.mxu0 0.0
      %385 = vmatprep.subr.mxu0 0.0
      %386 = vmatpush1.msra.mxu0 0.0
      %387 = vmatprep.subr.mxu0 0.0
      %388 = vmatpush1.msra.mxu0 0.0
      %389 = vmatprep.subr.mxu0 0.0
      %390 = vmatpush1.msra.mxu0 0.0
      %391 = vmatprep.subr.mxu0 0.0
      %392 = vmatpush1.msra.mxu0 0.0
      %393 = vmatprep.subr.mxu0 0.0
      %394 = vmatpush1.msra.mxu0 0.0
      %395 = vmatprep.subr.mxu0 0.0
      %396 = vmatpush1.msra.mxu0 0.0
      %397 = vmatprep.subr.mxu0 0.0
      %398 = vmatpush1.msra.mxu0 0.0
      %399 = vmatprep.subr.mxu0 0.0
      %400 = vmatpush1.msra.mxu0 0.0
      %401 = vmatprep.subr.mxu0 0.0
      %402 = vmatpush1.msra.mxu0 0.0
      %403 = vmatprep.subr.mxu0 0.0
      %404 = vmatpush1.msra.mxu0 0.0
      %405 = vmatprep.subr.mxu0 0.0
      %406 = vmatpush1.msra.mxu0 0.0
      %407 = vmatprep.subr.mxu0 0.0
      %408 = vmatpush1.msra.mxu0 0.0
      %409 = vmatprep.subr.mxu0 0.0
      %410 = vmatpush1.msra.mxu0 0.0
      %411 = vmatprep.subr.mxu0 0.0
      %412 = vmatpush1.msra.mxu0 0.0
      %413 = vmatprep.subr.mxu0 0.0
      %414 = vmatpush1.msra.mxu0 0.0
      %415 = vmatprep.subr.mxu0 0.0
      %416 = vmatpush1.msra.mxu0 0.0
      %417 = vmatprep.subr.mxu0 0.0
      %418 = vmatpush1.msra.mxu0 0.0
      %419 = vmatprep.subr.mxu0 0.0
      %420 = vmatpush1.msra.mxu0 0.0
      %421 = vmatprep.subr.mxu0 0.0
      %422 = vmatpush1.msra.mxu0 0.0
      %423 = vmatprep.subr.mxu0 0.0
      %424 = vmatpush1.msra.mxu0 0.0
      %425 = vmatprep.subr.mxu0 0.0
      %426 = vmatpush1.msra.mxu0 0.0
      %427 = vmatprep.mubr.f32.mxu0 0.0
      %428 = vmatmul.mubr.f32.gmra.mrb[0].mxu0 %v361
      %v429 = vpop.f32.mrb[0].mxu0
      %v430 = vadd.f32 0.0, %v429
      %v431 = vpop.f32.mrb[0].mxu0
      %432 = vdwg.mxu0
      %433 = vrot.lane.b32.xlu0 %v270, 64
      %v434 = vpop.permute.xlu0 %433
      %435 = vrot.lane.b32.xlu0 %v268, 64
      %v436 = vpop.permute.xlu0 %435
      %v437 = vsel %vm271, %v434, 0
      %v439 = vsel %vm271, %v436, 0
      %441 = vmatprep.subr.mxu0 0.0
      %442 = vmatpush1.xpose.msra.mxu0 %v439
      %443 = vmatprep.subr.mxu0 0.0
      %444 = vmatpush1.xpose.msra.mxu0 0.0
      %445 = vmatprep.subr.mxu0 0.0
      %446 = vmatpush1.xpose.msra.mxu0 0.0
      %447 = vmatprep.subr.mxu0 0.0
      %448 = vmatpush1.xpose.msra.mxu0 0.0
      %449 = vmatprep.subr.mxu0 0.0
      %450 = vmatpush1.xpose.msra.mxu0 0.0
      %451 = vmatprep.subr.mxu0 0.0
      %452 = vmatpush1.xpose.msra.mxu0 0.0
      %453 = vmatprep.subr.mxu0 0.0
      %454 = vmatpush1.xpose.msra.mxu0 0.0
      %455 = vmatprep.subr.mxu0 0.0
      %456 = vmatpush1.xpose.msra.mxu0 0.0
      %457 = vmatprep.subr.mxu0 0.0
      %458 = vmatpush1.xpose.msra.mxu0 0.0
      %459 = vmatprep.subr.mxu0 0.0
      %460 = vmatpush1.xpose.msra.mxu0 0.0
      %461 = vmatprep.subr.mxu0 0.0
      %462 = vmatpush1.xpose.msra.mxu0 0.0
      %463 = vmatprep.subr.mxu0 0.0
      %464 = vmatpush1.xpose.msra.mxu0 0.0
      %465 = vmatprep.subr.mxu0 0.0
      %466 = vmatpush1.xpose.msra.mxu0 0.0
      %467 = vmatprep.subr.mxu0 0.0
      %468 = vmatpush1.xpose.msra.mxu0 0.0
      %469 = vmatprep.subr.mxu0 0.0
      %470 = vmatpush1.xpose.msra.mxu0 0.0
      %471 = vmatprep.subr.mxu0 0.0
      %472 = vmatpush1.xpose.msra.mxu0 0.0
      %473 = vmatprep.subr.mxu0 0.0
      %474 = vmatpush1.xpose.msra.mxu0 0.0
      %475 = vmatprep.subr.mxu0 0.0
      %476 = vmatpush1.xpose.msra.mxu0 0.0
      %477 = vmatprep.subr.mxu0 0.0
      %478 = vmatpush1.xpose.msra.mxu0 0.0
      %479 = vmatprep.subr.mxu0 0.0
      %480 = vmatpush1.xpose.msra.mxu0 0.0
      %481 = vmatprep.subr.mxu0 0.0
      %482 = vmatpush1.xpose.msra.mxu0 0.0
      %483 = vmatprep.subr.mxu0 0.0
      %484 = vmatpush1.xpose.msra.mxu0 0.0
      %485 = vmatprep.subr.mxu0 0.0
      %486 = vmatpush1.xpose.msra.mxu0 0.0
      %487 = vmatprep.subr.mxu0 0.0
      %488 = vmatpush1.xpose.msra.mxu0 0.0
      %489 = vmatprep.subr.mxu0 0.0
      %490 = vmatpush1.xpose.msra.mxu0 0.0
      %491 = vmatprep.subr.mxu0 0.0
      %492 = vmatpush1.xpose.msra.mxu0 0.0
      %493 = vmatprep.subr.mxu0 0.0
      %494 = vmatpush1.xpose.msra.mxu0 0.0
      %495 = vmatprep.subr.mxu0 0.0
      %496 = vmatpush1.xpose.msra.mxu0 0.0
      %497 = vmatprep.subr.mxu0 0.0
      %498 = vmatpush1.xpose.msra.mxu0 0.0
      %499 = vmatprep.subr.mxu0 0.0
      %500 = vmatpush1.xpose.msra.mxu0 0.0
      %501 = vmatprep.subr.mxu0 0.0
      %502 = vmatpush1.xpose.msra.mxu0 0.0
      %503 = vmatprep.subr.mxu0 0.0
      %504 = vmatpush1.xpose.msra.mxu0 0.0
      %505 = vmatprep.mubr.f32.mxu0 0.0
      %506 = vmatmul.mubr.f32.gmra.mrb[0].mxu0 %v437
      %v507 = vpop.f32.mrb[0].mxu0
      %v508 = vadd.f32 0.0, %v507
      %v509 = vpop.f32.mrb[0].mxu0
      %510 = vdwg.mxu0
      %v511 = vsel %vm348, %v508, -inf
      %512 = vmax.xlane.f32.xlu0 %v511
      %v513 = vpop.xlane.xlu0 %512
      %v514 = vsub.f32 %v508, %v513
      %v515 = vmul.f32 %v514, 1.442695
      %v516 = vpow.pop %v515
      %v517 = vsel %vm348, %v516, 0.0
      %518 = vadd.xlane.f32.xlu0 %v517
      %v519 = vpop.xlane.xlu0 %518
      %v520 = vrcp.pop %v519
      %v521 = vmul.f32 %v516, %v520
      %523 = vrot.lane.b32.xlu0 %v269, 64
      %v524 = vpop.permute.xlu0 %523
      %v527 = vsel %vm348, %v521, 0
      %529 = vmatprep.subr.mxu0 0.0
      %530 = vmatpush1.msra.mxu0 %v524
      %531 = vmatprep.subr.mxu0 0.0
      %532 = vmatpush1.msra.mxu0 0.0
      %533 = vmatprep.subr.mxu0 0.0
      %534 = vmatpush1.msra.mxu0 0.0
      %535 = vmatprep.subr.mxu0 0.0
      %536 = vmatpush1.msra.mxu0 0.0
      %537 = vmatprep.subr.mxu0 0.0
      %538 = vmatpush1.msra.mxu0 0.0
      %539 = vmatprep.subr.mxu0 0.0
      %540 = vmatpush1.msra.mxu0 0.0
      %541 = vmatprep.subr.mxu0 0.0
      %542 = vmatpush1.msra.mxu0 0.0
      %543 = vmatprep.subr.mxu0 0.0
      %544 = vmatpush1.msra.mxu0 0.0
      %545 = vmatprep.subr.mxu0 0.0
      %546 = vmatpush1.msra.mxu0 0.0
      %547 = vmatprep.subr.mxu0 0.0
      %548 = vmatpush1.msra.mxu0 0.0
      %549 = vmatprep.subr.mxu0 0.0
      %550 = vmatpush1.msra.mxu0 0.0
      %551 = vmatprep.subr.mxu0 0.0
      %552 = vmatpush1.msra.mxu0 0.0
      %553 = vmatprep.subr.mxu0 0.0
      %554 = vmatpush1.msra.mxu0 0.0
      %555 = vmatprep.subr.mxu0 0.0
      %556 = vmatpush1.msra.mxu0 0.0
      %557 = vmatprep.subr.mxu0 0.0
      %558 = vmatpush1.msra.mxu0 0.0
      %559 = vmatprep.subr.mxu0 0.0
      %560 = vmatpush1.msra.mxu0 0.0
      %561 = vmatprep.subr.mxu0 0.0
      %562 = vmatpush1.msra.mxu0 0.0
      %563 = vmatprep.subr.mxu0 0.0
      %564 = vmatpush1.msra.mxu0 0.0
      %565 = vmatprep.subr.mxu0 0.0
      %566 = vmatpush1.msra.mxu0 0.0
      %567 = vmatprep.subr.mxu0 0.0
      %568 = vmatpush1.msra.mxu0 0.0
      %569 = vmatprep.subr.mxu0 0.0
      %570 = vmatpush1.msra.mxu0 0.0
      %571 = vmatprep.subr.mxu0 0.0
      %572 = vmatpush1.msra.mxu0 0.0
      %573 = vmatprep.subr.mxu0 0.0
      %574 = vmatpush1.msra.mxu0 0.0
      %575 = vmatprep.subr.mxu0 0.0
      %576 = vmatpush1.msra.mxu0 0.0
      %577 = vmatprep.subr.mxu0 0.0
      %578 = vmatpush1.msra.mxu0 0.0
      %579 = vmatprep.subr.mxu0 0.0
      %580 = vmatpush1.msra.mxu0 0.0
      %581 = vmatprep.subr.mxu0 0.0
      %582 = vmatpush1.msra.mxu0 0.0
      %583 = vmatprep.subr.mxu0 0.0
      %584 = vmatpush1.msra.mxu0 0.0
      %585 = vmatprep.subr.mxu0 0.0
      %586 = vmatpush1.msra.mxu0 0.0
      %587 = vmatprep.subr.mxu0 0.0
      %588 = vmatpush1.msra.mxu0 0.0
      %589 = vmatprep.subr.mxu0 0.0
      %590 = vmatpush1.msra.mxu0 0.0
      %591 = vmatprep.subr.mxu0 0.0
      %592 = vmatpush1.msra.mxu0 0.0
      %593 = vmatprep.mubr.f32.mxu0 0.0
      %594 = vmatmul.mubr.f32.gmra.mrb[0].mxu0 %v527
      %v595 = vpop.f32.mrb[0].mxu0
      %v596 = vadd.f32 0.0, %v595
      %v597 = vpop.f32.mrb[0].mxu0
      %598 = vdwg.mxu0
      %600 = vrot.lane.b32.xlu0 %v596, 64
      %v601 = vpop.permute.xlu0 %600
      %v603 = vsel %vm271, %v430, %v601
      %v604 = vld [vmem:[%s2] sm:$0xff]
      %v605 = vld [vmem:[%s2 + $0x8] sm:$0xff]
      %v606 = vld [vmem:[%s2 + $0x10] sm:$0xff]
      %v607 = vld [vmem:[%s2 + $0x18] sm:$0xff]
      %v608 = vld [vmem:[%s2 + $0x20] sm:$0xff]
      %v609 = vld [vmem:[%s2 + $0x28] sm:$0xff]
      %v610 = vld [vmem:[%s2 + $0x30] sm:$0xff]
      %v611 = vld [vmem:[%s2 + $0x38] sm:$0xff]
      %v612 = vld [vmem:[%s2 + $0x40] sm:$0xff]
      %v613 = vld [vmem:[%s2 + $0x48] sm:$0xff]
      %v614 = vld [vmem:[%s2 + $0x50] sm:$0xff]
      %v615 = vld [vmem:[%s2 + $0x58] sm:$0xff]
      %v616 = vld [vmem:[%s2 + $0x60] sm:$0xff]
      %v617 = vld [vmem:[%s2 + $0x68] sm:$0xff]
      %v618 = vld [vmem:[%s2 + $0x70] sm:$0xff]
      %v619 = vld [vmem:[%s2 + $0x78] sm:$0xff]
      %v620 = vld [vmem:[%s3] sm:$0x1]
      %v622 = vlaneseq
      %v623 = vshrl.u32 %v622, 7
      %v624 = vsub.s32 0, %v623
      %v625 = vrot.slane %v620, %v624
      %627 = vmatprep.subr.mxu0 0.0
      %628 = vmatpush1.msra.mxu0 %v604
      %629 = vmatprep.subr.mxu0 0.0
      %630 = vmatpush1.msra.mxu0 %v605
      %631 = vmatprep.subr.mxu0 0.0
      %632 = vmatpush1.msra.mxu0 %v606
      %633 = vmatprep.subr.mxu0 0.0
      %634 = vmatpush1.msra.mxu0 %v607
      %635 = vmatprep.subr.mxu0 0.0
      %636 = vmatpush1.msra.mxu0 %v608
      %637 = vmatprep.subr.mxu0 0.0
      %638 = vmatpush1.msra.mxu0 %v609
      %639 = vmatprep.subr.mxu0 0.0
      %640 = vmatpush1.msra.mxu0 %v610
      %641 = vmatprep.subr.mxu0 0.0
      %642 = vmatpush1.msra.mxu0 %v611
      %643 = vmatprep.subr.mxu0 0.0
      %644 = vmatpush1.msra.mxu0 %v612
      %645 = vmatprep.subr.mxu0 0.0
      %646 = vmatpush1.msra.mxu0 %v613
      %647 = vmatprep.subr.mxu0 0.0
      %648 = vmatpush1.msra.mxu0 %v614
      %649 = vmatprep.subr.mxu0 0.0
      %650 = vmatpush1.msra.mxu0 %v615
      %651 = vmatprep.subr.mxu0 0.0
      %652 = vmatpush1.msra.mxu0 %v616
      %653 = vmatprep.subr.mxu0 0.0
      %654 = vmatpush1.msra.mxu0 %v617
      %655 = vmatprep.subr.mxu0 0.0
      %656 = vmatpush1.msra.mxu0 %v618
      %657 = vmatprep.subr.mxu0 0.0
      %658 = vmatpush1.msra.mxu0 %v619
      %659 = vmatprep.subr.mxu0 0.0
      %660 = vmatpush1.msra.mxu0 0.0
      %661 = vmatprep.subr.mxu0 0.0
      %662 = vmatpush1.msra.mxu0 0.0
      %663 = vmatprep.subr.mxu0 0.0
      %664 = vmatpush1.msra.mxu0 0.0
      %665 = vmatprep.subr.mxu0 0.0
      %666 = vmatpush1.msra.mxu0 0.0
      %667 = vmatprep.subr.mxu0 0.0
      %668 = vmatpush1.msra.mxu0 0.0
      %669 = vmatprep.subr.mxu0 0.0
      %670 = vmatpush1.msra.mxu0 0.0
      %671 = vmatprep.subr.mxu0 0.0
      %672 = vmatpush1.msra.mxu0 0.0
      %673 = vmatprep.subr.mxu0 0.0
      %674 = vmatpush1.msra.mxu0 0.0
      %675 = vmatprep.subr.mxu0 0.0
      %676 = vmatpush1.msra.mxu0 0.0
      %677 = vmatprep.subr.mxu0 0.0
      %678 = vmatpush1.msra.mxu0 0.0
      %679 = vmatprep.subr.mxu0 0.0
      %680 = vmatpush1.msra.mxu0 0.0
      %681 = vmatprep.subr.mxu0 0.0
      %682 = vmatpush1.msra.mxu0 0.0
      %683 = vmatprep.subr.mxu0 0.0
      %684 = vmatpush1.msra.mxu0 0.0
      %685 = vmatprep.subr.mxu0 0.0
      %686 = vmatpush1.msra.mxu0 0.0
      %687 = vmatprep.subr.mxu0 0.0
      %688 = vmatpush1.msra.mxu0 0.0
      %689 = vmatprep.subr.mxu0 0.0
      %690 = vmatpush1.msra.mxu0 0.0
      %691 = vmatprep.mubr.f32.mxu0 0.0
      %692 = vmatmul.mubr.f32.gmra.mrb[0].mxu0 %v603
      %v693 = vpop.f32.mrb[0].mxu0
      %v694 = vadd.f32 %v625, %v693
      %v695 = vpop.f32.mrb[0].mxu0
      %696 = vdwg.mxu0
      %v697 = vld [vmem:[%s262] sm:$0xff]
      %v698 = vadd.f32 %v694, %v697
      %v699 = vld [vmem:[%s4] sm:$0x1]
      %v700 = vld [vmem:[%s5] sm:$0x1]
      %701 = vadd.xlane.f32.xlu0 %v698
      %v702 = vpop.xlane.xlu0 %701
      %v703 = vrcp.pop 128.0
      %v704 = vmul.f32 %v702, %v703
      %v705 = vsub.f32 %v698, %v704
      %v706 = vmul.f32 %v705, %v705
      %707 = vadd.xlane.f32.xlu0 %v706
      %v708 = vpop.xlane.xlu0 %707
      %v709 = vmul.f32 %v708, %v703
      %v710 = vadd.f32 %v709, 1e-12
      %v711 = vrsqrt.pop %v710
      %v712 = vmul.f32 %v705, %v711
      %v714 = vlaneseq
      %v715 = vshrl.u32 %v714, 7
      %v716 = vsub.s32 0, %v715
      %v717 = vrot.slane %v699, %v716
      %v719 = vmul.f32 %v712, %v717
      %v721 = vlaneseq
      %v722 = vshrl.u32 %v721, 7
      %v723 = vsub.s32 0, %v722
      %v724 = vrot.slane %v700, %v723
      %v726 = vadd.f32 %v719, %v724
      %727 = vst [vmem:[%s266] sm:$0xff] %v726
      %p728 = scmp.lt.s32.totalorder %s17, 1
      %s729 = scalar_select %p728, %s17, 1
      %s730 = smul.addr %s729, 8
      %s731 = scalar_lea.vmem %s6, %s730
      // Predicated region
      $region45: #{bert_lstm_forward.11} parent=43 // pred_check
        %p732 = pneg %p171
      $region46: #{bert_lstm_forward.11} parent=43 // pred_check_branch
        %734 = sbr.rel (%p732) target = $region48
      $region47: #{bert_lstm_forward.11} parent=43 // pred_region
        _
      $region48: #{bert_lstm_forward.11} parent=43 // pred_fallthru
        _
    $region44: #{bert_lstm_forward.11} parent=5 // pred_fallthru
      _
    %p735 = scmp.le.s32.totalorder 2, %s12
    // Predicated region
    $region49: #{bert_lstm_forward.11} parent=5 // pred_check
      %p736 = pneg %p735
    $region50: #{bert_lstm_forward.11} parent=5 // pred_check_branch
      %738 = sbr.rel (%p736) target = $region52
    $region51: #{bert_lstm_forward.11} parent=5 // pred_region
      %s739 = ssub.s32 %s12, 2
      // Predicated region
      $region53: #{bert_lstm_forward.11} parent=51 // pred_check
        %p740 = pneg %p177
      $region54: #{bert_lstm_forward.11} parent=51 // pred_check_branch
        %742 = sbr.rel (%p740) target = $region56
      $region55: #{bert_lstm_forward.11} parent=51 // pred_region
        %p743 = scmp.lt.s32.totalorder %s18, 1
        %s744 = scalar_select %p743, %s18, 1
        %s745 = smul.addr %s744, 8
        %s746 = scalar_lea.vmem %s6, %s745
      $region56: #{bert_lstm_forward.11} parent=51 // pred_fallthru
        _
    $region52: #{bert_lstm_forward.11} parent=5 // pred_fallthru
      _
  $region6: #{bert_lstm_forward.11} parent=0 // loop_footer
    %s16 = sadd.s32 1, %s12
  $region7: #{bert_lstm_forward.11} parent=0 // loop_footer_branch
    %11 = sbr.rel target = $region3
  $region8: #{bert_lstm_forward.11} parent=0 // loop_exit
    _

// kernel: bert_lstm_forward.13
$region0: #{bert_lstm_forward.13}
  #allocation0 [shape = 'u32[]', space=smem, size = 0x4, offset = 0x4, fixed_abs, tag = 'smem constant byte address 0x4 - core index']
  #allocation1 [shape = 'u32[144,128]{1,0:T(1,128)}', space=vmem, size = 0x12000, scoped, tag = 'internal scratch']
  %s0 = inlined_call_operand.vmem [shape: f32[16,128], index: 0, kind: input, shape index: {}]
  %s1 = inlined_call_operand.vmem [shape: f32[128,384], index: 1, kind: input, shape index: {}]
  %s2 = inlined_call_operand.vmem [shape: f32[1,384], index: 2, kind: input, shape index: {}]
  %s3 = inlined_call_operand.vmem [shape: f32[16,384], index: 3, kind: output, shape index: {}]
  %s4 = sld [smem:[#allocation0]]
  $region22: #{bert_lstm_forward.13} parent=0
    _
  %s6 = ssub.s32 1, %s4
  %s7 = scalar_select 0, %s6, %s4
  // Predicated region
  $region2: #{bert_lstm_forward.13} parent=0 // pred_check
    _
  $region3: #{bert_lstm_forward.13} parent=0 // pred_check_branch
    %9 = sbr.rel (0) target = $region5
  $region4: #{bert_lstm_forward.13} parent=0 // pred_region
    _
  $region5: #{bert_lstm_forward.13} parent=0 // pred_fallthru
    _
  // Predicated region
  $region6: #{bert_lstm_forward.13} parent=0 // pred_check
    _
  $region7: #{bert_lstm_forward.13} parent=0 // pred_check_branch
    %11 = sbr.rel (0) target = $region9
  $region8: #{bert_lstm_forward.13} parent=0 // pred_region
    _
  $region9: #{bert_lstm_forward.13} parent=0 // pred_fallthru
    _
  // Predicated region
  $region10: #{bert_lstm_forward.13} parent=0 // pred_check
    _
  $region11: #{bert_lstm_forward.13} parent=0 // pred_check_branch
    %13 = sbr.rel (0) target = $region13
  $region12: #{bert_lstm_forward.13} parent=0 // pred_region
    _
  $region13: #{bert_lstm_forward.13} parent=0 // pred_fallthru
    _
  %v14 = vld [vmem:[%s0] sm:$0xff]
  %v15 = vld [vmem:[%s0 + $0x8] sm:$0xff]
  %v16 = vld [vmem:[%s1] sm:$0xff]
  %v17 = vld [vmem:[%s1 + $0x8] sm:$0xff]
  %v18 = vld [vmem:[%s1 + $0x10] sm:$0xff]
  %v19 = vld [vmem:[%s1 + $0x18] sm:$0xff]
  %v20 = vld [vmem:[%s1 + $0x20] sm:$0xff]
  %v21 = vld [vmem:[%s1 + $0x28] sm:$0xff]
  %v22 = vld [vmem:[%s1 + $0x30] sm:$0xff]
  %v23 = vld [vmem:[%s1 + $0x38] sm:$0xff]
  %v24 = vld [vmem:[%s1 + $0x40] sm:$0xff]
  %v25 = vld [vmem:[%s1 + $0x48] sm:$0xff]
  %v26 = vld [vmem:[%s1 + $0x50] sm:$0xff]
  %v27 = vld [vmem:[%s1 + $0x58] sm:$0xff]
  %v28 = vld [vmem:[%s1 + $0x60] sm:$0xff]
  %v29 = vld [vmem:[%s1 + $0x68] sm:$0xff]
  %v30 = vld [vmem:[%s1 + $0x70] sm:$0xff]
  %v31 = vld [vmem:[%s1 + $0x78] sm:$0xff]
  %v32 = vld [vmem:[%s1 + $0x80] sm:$0xff]
  %v33 = vld [vmem:[%s1 + $0x88] sm:$0xff]
  %v34 = vld [vmem:[%s1 + $0x90] sm:$0xff]
  %v35 = vld [vmem:[%s1 + $0x98] sm:$0xff]
  %v36 = vld [vmem:[%s1 + $0xa0] sm:$0xff]
  %v37 = vld [vmem:[%s1 + $0xa8] sm:$0xff]
  %v38 = vld [vmem:[%s1 + $0xb0] sm:$0xff]
  %v39 = vld [vmem:[%s1 + $0xb8] sm:$0xff]
  %v40 = vld [vmem:[%s1 + $0xc0] sm:$0xff]
  %v41 = vld [vmem:[%s1 + $0xc8] sm:$0xff]
  %v42 = vld [vmem:[%s1 + $0xd0] sm:$0xff]
  %v43 = vld [vmem:[%s1 + $0xd8] sm:$0xff]
  %v44 = vld [vmem:[%s1 + $0xe0] sm:$0xff]
  %v45 = vld [vmem:[%s1 + $0xe8] sm:$0xff]
  %v46 = vld [vmem:[%s1 + $0xf0] sm:$0xff]
  %v47 = vld [vmem:[%s1 + $0xf8] sm:$0xff]
  %v48 = vld [vmem:[%s1 + $0x100] sm:$0xff]
  %v49 = vld [vmem:[%s1 + $0x108] sm:$0xff]
  %v50 = vld [vmem:[%s1 + $0x110] sm:$0xff]
  %v51 = vld [vmem:[%s1 + $0x118] sm:$0xff]
  %v52 = vld [vmem:[%s1 + $0x120] sm:$0xff]
  %v53 = vld [vmem:[%s1 + $0x128] sm:$0xff]
  %v54 = vld [vmem:[%s1 + $0x130] sm:$0xff]
  %v55 = vld [vmem:[%s1 + $0x138] sm:$0xff]
  %v56 = vld [vmem:[%s1 + $0x140] sm:$0xff]
  %v57 = vld [vmem:[%s1 + $0x148] sm:$0xff]
  %v58 = vld [vmem:[%s1 + $0x150] sm:$0xff]
  %v59 = vld [vmem:[%s1 + $0x158] sm:$0xff]
  %v60 = vld [vmem:[%s1 + $0x160] sm:$0xff]
  %v61 = vld [vmem:[%s1 + $0x168] sm:$0xff]
  %v62 = vld [vmem:[%s1 + $0x170] sm:$0xff]
  %v63 = vld [vmem:[%s1 + $0x178] sm:$0xff]
  %v64 = vld [vmem:[%s2] sm:$0x7]
  %v66 = vlaneseq
  %v67 = vshrl.u32 %v66, 7
  %v68 = vsub.s32 0, %v67
  %v69 = vrot.slane %v64, %v68
  %v70 = vlaneseq
  %v71 = vshrl.u32 %v70, 7
  %v72 = vsub.s32 1, %v71
  %v73 = vrot.slane %v64, %v72
  %v74 = vlaneseq
  %v75 = vshrl.u32 %v74, 7
  %v76 = vsub.s32 2, %v75
  %v77 = vrot.slane %v64, %v76
  %81 = vmatprep.subr.mxu0 %v17
  %82 = vmatpush1.msra.mxu0 %v16
  %83 = vmatprep.subr.mxu0 %v20
  %84 = vmatpush1.msra.mxu0 %v19
  %85 = vmatprep.subr.mxu0 %v23
  %86 = vmatpush1.msra.mxu0 %v22
  %87 = vmatprep.subr.mxu0 %v26
  %88 = vmatpush1.msra.mxu0 %v25
  %89 = vmatprep.subr.mxu0 %v29
  %90 = vmatpush1.msra.mxu0 %v28
  %91 = vmatprep.subr.mxu0 %v32
  %92 = vmatpush1.msra.mxu0 %v31
  %93 = vmatprep.subr.mxu0 %v35
  %94 = vmatpush1.msra.mxu0 %v34
  %95 = vmatprep.subr.mxu0 %v38
  %96 = vmatpush1.msra.mxu0 %v37
  %97 = vmatprep.subr.mxu0 %v41
  %98 = vmatpush1.msra.mxu0 %v40
  %99 = vmatprep.subr.mxu0 %v44
  %100 = vmatpush1.msra.mxu0 %v43
  %101 = vmatprep.subr.mxu0 %v47
  %102 = vmatpush1.msra.mxu0 %v46
  %103 = vmatprep.subr.mxu0 %v50
  %104 = vmatpush1.msra.mxu0 %v49
  %105 = vmatprep.subr.mxu0 %v53
  %106 = vmatpush1.msra.mxu0 %v52
  %107 = vmatprep.subr.mxu0 %v56
  %108 = vmatpush1.msra.mxu0 %v55
  %109 = vmatprep.subr.mxu0 %v59
  %110 = vmatpush1.msra.mxu0 %v58
  %111 = vmatprep.subr.mxu0 %v62
  %112 = vmatpush1.msra.mxu0 %v61
  %113 = vmatprep.subr.mxu0 0.0
  %114 = vmatpush1.msra.mxu0 0.0
  %115 = vmatprep.subr.mxu0 0.0
  %116 = vmatpush1.msra.mxu0 0.0
  %117 = vmatprep.subr.mxu0 0.0
  %118 = vmatpush1.msra.mxu0 0.0
  %119 = vmatprep.subr.mxu0 0.0
  %120 = vmatpush1.msra.mxu0 0.0
  %121 = vmatprep.subr.mxu0 0.0
  %122 = vmatpush1.msra.mxu0 0.0
  %123 = vmatprep.subr.mxu0 0.0
  %124 = vmatpush1.msra.mxu0 0.0
  %125 = vmatprep.subr.mxu0 0.0
  %126 = vmatpush1.msra.mxu0 0.0
  %127 = vmatprep.subr.mxu0 0.0
  %128 = vmatpush1.msra.mxu0 0.0
  %129 = vmatprep.subr.mxu0 0.0
  %130 = vmatpush1.msra.mxu0 0.0
  %131 = vmatprep.subr.mxu0 0.0
  %132 = vmatpush1.msra.mxu0 0.0
  %133 = vmatprep.subr.mxu0 0.0
  %134 = vmatpush1.msra.mxu0 0.0
  %135 = vmatprep.subr.mxu0 0.0
  %136 = vmatpush1.msra.mxu0 0.0
  %137 = vmatprep.subr.mxu0 0.0
  %138 = vmatpush1.msra.mxu0 0.0
  %139 = vmatprep.subr.mxu0 0.0
  %140 = vmatpush1.msra.mxu0 0.0
  %141 = vmatprep.subr.mxu0 0.0
  %142 = vmatpush1.msra.mxu0 0.0
  %143 = vmatprep.subr.mxu0 0.0
  %144 = vmatpush1.msra.mxu0 0.0
  %145 = vmatprep.mubr.f32.mxu0 0.0
  %146 = vmatmul.mubr.f32.gmra.mrb[0].mxu0 %v14
  %v147 = vpop.f32.mrb[0].mxu0
  %v148 = vadd.f32 %v69, %v147
  %v149 = vpop.f32.mrb[0].mxu0
  %v150 = vadd.f32 %v73, %v149
  %151 = vmatprep.mubr.f32.mxu0 0.0
  %152 = vmatmul.mubr.f32.gmra.mrb[0].mxu0 %v15
  %v153 = vpop.f32.mrb[0].mxu0
  %v154 = vadd.f32 %v69, %v153
  %v155 = vpop.f32.mrb[0].mxu0
  %v156 = vadd.f32 %v73, %v155
  %157 = vdwg.mxu0
  %158 = vmatprep.subr.mxu0 0.0
  %159 = vmatpush1.msra.mxu0 %v18
  %160 = vmatprep.subr.mxu0 0.0
  %161 = vmatpush1.msra.mxu0 %v21
  %162 = vmatprep.subr.mxu0 0.0
  %163 = vmatpush1.msra.mxu0 %v24
  %164 = vmatprep.subr.mxu0 0.0
  %165 = vmatpush1.msra.mxu0 %v27
  %166 = vmatprep.subr.mxu0 0.0
  %167 = vmatpush1.msra.mxu0 %v30
  %168 = vmatprep.subr.mxu0 0.0
  %169 = vmatpush1.msra.mxu0 %v33
  %170 = vmatprep.subr.mxu0 0.0
  %171 = vmatpush1.msra.mxu0 %v36
  %172 = vmatprep.subr.mxu0 0.0
  %173 = vmatpush1.msra.mxu0 %v39
  %174 = vmatprep.subr.mxu0 0.0
  %175 = vmatpush1.msra.mxu0 %v42
  %176 = vmatprep.subr.mxu0 0.0
  %177 = vmatpush1.msra.mxu0 %v45
  %178 = vmatprep.subr.mxu0 0.0
  %179 = vmatpush1.msra.mxu0 %v48
  %180 = vmatprep.subr.mxu0 0.0
  %181 = vmatpush1.msra.mxu0 %v51
  %182 = vmatprep.subr.mxu0 0.0
  %183 = vmatpush1.msra.mxu0 %v54
  %184 = vmatprep.subr.mxu0 0.0
  %185 = vmatpush1.msra.mxu0 %v57
  %186 = vmatprep.subr.mxu0 0.0
  %187 = vmatpush1.msra.mxu0 %v60
  %188 = vmatprep.subr.mxu0 0.0
  %189 = vmatpush1.msra.mxu0 %v63
  %190 = vmatprep.subr.mxu0 0.0
  %191 = vmatpush1.msra.mxu0 0.0
  %192 = vmatprep.subr.mxu0 0.0
  %193 = vmatpush1.msra.mxu0 0.0
  %194 = vmatprep.subr.mxu0 0.0
  %195 = vmatpush1.msra.mxu0 0.0
  %196 = vmatprep.subr.mxu0 0.0
  %197 = vmatpush1.msra.mxu0 0.0
  %198 = vmatprep.subr.mxu0 0.0
  %199 = vmatpush1.msra.mxu0 0.0
  %200 = vmatprep.subr.mxu0 0.0
  %201 = vmatpush1.msra.mxu0 0.0
  %202 = vmatprep.subr.mxu0 0.0
  %203 = vmatpush1.msra.mxu0 0.0
  %204 = vmatprep.subr.mxu0 0.0
  %205 = vmatpush1.msra.mxu0 0.0
  %206 = vmatprep.subr.mxu0 0.0
  %207 = vmatpush1.msra.mxu0 0.0
  %208 = vmatprep.subr.mxu0 0.0
  %209 = vmatpush1.msra.mxu0 0.0
  %210 = vmatprep.subr.mxu0 0.0
  %211 = vmatpush1.msra.mxu0 0.0
  %212 = vmatprep.subr.mxu0 0.0
  %213 = vmatpush1.msra.mxu0 0.0
  %214 = vmatprep.subr.mxu0 0.0
  %215 = vmatpush1.msra.mxu0 0.0
  %216 = vmatprep.subr.mxu0 0.0
  %217 = vmatpush1.msra.mxu0 0.0
  %218 = vmatprep.subr.mxu0 0.0
  %219 = vmatpush1.msra.mxu0 0.0
  %220 = vmatprep.subr.mxu0 0.0
  %221 = vmatpush1.msra.mxu0 0.0
  %222 = vmatprep.mubr.f32.mxu0 0.0
  %223 = vmatmul.mubr.f32.gmra.mrb[0].mxu0 %v14
  %v224 = vpop.f32.mrb[0].mxu0
  %v225 = vadd.f32 %v77, %v224
  %v226 = vpop.f32.mrb[0].mxu0
  %227 = vmatprep.mubr.f32.mxu0 0.0
  %228 = vmatmul.mubr.f32.gmra.mrb[0].mxu0 %v15
  %v229 = vpop.f32.mrb[0].mxu0
  %v230 = vadd.f32 %v77, %v229
  %v231 = vpop.f32.mrb[0].mxu0
  %232 = vdwg.mxu0
  %233 = vst [vmem:[%s3] sm:$0xff] %v148
  %234 = vst [vmem:[%s3 + $0x8] sm:$0xff] %v150
  %235 = vst [vmem:[%s3 + $0x10] sm:$0xff] %v225
  %236 = vst [vmem:[%s3 + $0x18] sm:$0xff] %v154
  %237 = vst [vmem:[%s3 + $0x20] sm:$0xff] %v156
  %238 = vst [vmem:[%s3 + $0x28] sm:$0xff] %v230
  // Predicated region
  $region14: #{bert_lstm_forward.13} parent=0 // pred_check
    _
  $region15: #{bert_lstm_forward.13} parent=0 // pred_check_branch
    %240 = sbr.rel (0) target = $region17
  $region16: #{bert_lstm_forward.13} parent=0 // pred_region
    _
  $region17: #{bert_lstm_forward.13} parent=0 // pred_fallthru
    _
  // Predicated region
  $region18: #{bert_lstm_forward.13} parent=0 // pred_check
    _
  $region19: #{bert_lstm_forward.13} parent=0 // pred_check_branch
    %242 = sbr.rel (0) target = $region21
  $region20: #{bert_lstm_forward.13} parent=0 // pred_region
    _
  $region21: #{bert_lstm_forward.13} parent=0 // pred_fallthru
    _

// kernel: bert_lstm_forward.16
$region0: #{bert_lstm_forward.16}
  #allocation0 [shape = 'u32[]', space=smem, size = 0x4, offset = 0x4, fixed_abs, tag = 'smem constant byte address 0x4 - core index']
  #allocation1 [shape = 'u32[144,128]{1,0:T(1,128)}', space=vmem, size = 0x12000, scoped, tag = 'internal scratch']
  %s0 = inlined_call_operand.vmem [shape: f32[16,128], index: 0, kind: input, shape index: {}]
  %s1 = inlined_call_operand.vmem [shape: f32[128,512], index: 1, kind: input, shape index: {}]
  %s2 = inlined_call_operand.vmem [shape: f32[1,512], index: 2, kind: input, shape index: {}]
  %s3 = inlined_call_operand.vmem [shape: f32[16,512], index: 3, kind: output, shape index: {}]
  %s4 = sld [smem:[#allocation0]]
  $region22: #{bert_lstm_forward.16} parent=0
    _
  %s6 = ssub.s32 1, %s4
  %s7 = scalar_select 0, %s6, %s4
  // Predicated region
  $region2: #{bert_lstm_forward.16} parent=0 // pred_check
    _
  $region3: #{bert_lstm_forward.16} parent=0 // pred_check_branch
    %9 = sbr.rel (0) target = $region5
  $region4: #{bert_lstm_forward.16} parent=0 // pred_region
    _
  $region5: #{bert_lstm_forward.16} parent=0 // pred_fallthru
    _
  // Predicated region
  $region6: #{bert_lstm_forward.16} parent=0 // pred_check
    _
  $region7: #{bert_lstm_forward.16} parent=0 // pred_check_branch
    %11 = sbr.rel (0) target = $region9
  $region8: #{bert_lstm_forward.16} parent=0 // pred_region
    _
  $region9: #{bert_lstm_forward.16} parent=0 // pred_fallthru
    _
  // Predicated region
  $region10: #{bert_lstm_forward.16} parent=0 // pred_check
    _
  $region11: #{bert_lstm_forward.16} parent=0 // pred_check_branch
    %13 = sbr.rel (0) target = $region13
  $region12: #{bert_lstm_forward.16} parent=0 // pred_region
    _
  $region13: #{bert_lstm_forward.16} parent=0 // pred_fallthru
    _
  %v14 = vld [vmem:[%s0] sm:$0xff]
  %v15 = vld [vmem:[%s0 + $0x8] sm:$0xff]
  %v16 = vld [vmem:[%s1] sm:$0xff]
  %v17 = vld [vmem:[%s1 + $0x8] sm:$0xff]
  %v18 = vld [vmem:[%s1 + $0x10] sm:$0xff]
  %v19 = vld [vmem:[%s1 + $0x18] sm:$0xff]
  %v20 = vld [vmem:[%s1 + $0x20] sm:$0xff]
  %v21 = vld [vmem:[%s1 + $0x28] sm:$0xff]
  %v22 = vld [vmem:[%s1 + $0x30] sm:$0xff]
  %v23 = vld [vmem:[%s1 + $0x38] sm:$0xff]
  %v24 = vld [vmem:[%s1 + $0x40] sm:$0xff]
  %v25 = vld [vmem:[%s1 + $0x48] sm:$0xff]
  %v26 = vld [vmem:[%s1 + $0x50] sm:$0xff]
  %v27 = vld [vmem:[%s1 + $0x58] sm:$0xff]
  %v28 = vld [vmem:[%s1 + $0x60] sm:$0xff]
  %v29 = vld [vmem:[%s1 + $0x68] sm:$0xff]
  %v30 = vld [vmem:[%s1 + $0x70] sm:$0xff]
  %v31 = vld [vmem:[%s1 + $0x78] sm:$0xff]
  %v32 = vld [vmem:[%s1 + $0x80] sm:$0xff]
  %v33 = vld [vmem:[%s1 + $0x88] sm:$0xff]
  %v34 = vld [vmem:[%s1 + $0x90] sm:$0xff]
  %v35 = vld [vmem:[%s1 + $0x98] sm:$0xff]
  %v36 = vld [vmem:[%s1 + $0xa0] sm:$0xff]
  %v37 = vld [vmem:[%s1 + $0xa8] sm:$0xff]
  %v38 = vld [vmem:[%s1 + $0xb0] sm:$0xff]
  %v39 = vld [vmem:[%s1 + $0xb8] sm:$0xff]
  %v40 = vld [vmem:[%s1 + $0xc0] sm:$0xff]
  %v41 = vld [vmem:[%s1 + $0xc8] sm:$0xff]
  %v42 = vld [vmem:[%s1 + $0xd0] sm:$0xff]
  %v43 = vld [vmem:[%s1 + $0xd8] sm:$0xff]
  %v44 = vld [vmem:[%s1 + $0xe0] sm:$0xff]
  %v45 = vld [vmem:[%s1 + $0xe8] sm:$0xff]
  %v46 = vld [vmem:[%s1 + $0xf0] sm:$0xff]
  %v47 = vld [vmem:[%s1 + $0xf8] sm:$0xff]
  %v48 = vld [vmem:[%s1 + $0x100] sm:$0xff]
  %v49 = vld [vmem:[%s1 + $0x108] sm:$0xff]
  %v50 = vld [vmem:[%s1 + $0x110] sm:$0xff]
  %v51 = vld [vmem:[%s1 + $0x118] sm:$0xff]
  %v52 = vld [vmem:[%s1 + $0x120] sm:$0xff]
  %v53 = vld [vmem:[%s1 + $0x128] sm:$0xff]
  %v54 = vld [vmem:[%s1 + $0x130] sm:$0xff]
  %v55 = vld [vmem:[%s1 + $0x138] sm:$0xff]
  %v56 = vld [vmem:[%s1 + $0x140] sm:$0xff]
  %v57 = vld [vmem:[%s1 + $0x148] sm:$0xff]
  %v58 = vld [vmem:[%s1 + $0x150] sm:$0xff]
  %v59 = vld [vmem:[%s1 + $0x158] sm:$0xff]
  %v60 = vld [vmem:[%s1 + $0x160] sm:$0xff]
  %v61 = vld [vmem:[%s1 + $0x168] sm:$0xff]
  %v62 = vld [vmem:[%s1 + $0x170] sm:$0xff]
  %v63 = vld [vmem:[%s1 + $0x178] sm:$0xff]
  %v64 = vld [vmem:[%s1 + $0x180] sm:$0xff]
  %v65 = vld [vmem:[%s1 + $0x188] sm:$0xff]
  %v66 = vld [vmem:[%s1 + $0x190] sm:$0xff]
  %v67 = vld [vmem:[%s1 + $0x198] sm:$0xff]
  %v68 = vld [vmem:[%s1 + $0x1a0] sm:$0xff]
  %v69 = vld [vmem:[%s1 + $0x1a8] sm:$0xff]
  %v70 = vld [vmem:[%s1 + $0x1b0] sm:$0xff]
  %v71 = vld [vmem:[%s1 + $0x1b8] sm:$0xff]
  %v72 = vld [vmem:[%s1 + $0x1c0] sm:$0xff]
  %v73 = vld [vmem:[%s1 + $0x1c8] sm:$0xff]
  %v74 = vld [vmem:[%s1 + $0x1d0] sm:$0xff]
  %v75 = vld [vmem:[%s1 + $0x1d8] sm:$0xff]
  %v76 = vld [vmem:[%s1 + $0x1e0] sm:$0xff]
  %v77 = vld [vmem:[%s1 + $0x1e8] sm:$0xff]
  %v78 = vld [vmem:[%s1 + $0x1f0] sm:$0xff]
  %v79 = vld [vmem:[%s1 + $0x1f8] sm:$0xff]
  %v80 = vld [vmem:[%s2] sm:$0xf]
  %v82 = vlaneseq
  %v83 = vshrl.u32 %v82, 7
  %v84 = vsub.s32 0, %v83
  %v85 = vrot.slane %v80, %v84
  %v86 = vlaneseq
  %v87 = vshrl.u32 %v86, 7
  %v88 = vsub.s32 1, %v87
  %v89 = vrot.slane %v80, %v88
  %v90 = vlaneseq
  %v91 = vshrl.u32 %v90, 7
  %v92 = vsub.s32 2, %v91
  %v93 = vrot.slane %v80, %v92
  %v94 = vlaneseq
  %v95 = vshrl.u32 %v94, 7
  %v96 = vsub.s32 3, %v95
  %v97 = vrot.slane %v80, %v96
  %102 = vmatprep.subr.mxu0 %v17
  %103 = vmatpush1.msra.mxu0 %v16
  %104 = vmatprep.subr.mxu0 %v21
  %105 = vmatpush1.msra.mxu0 %v20
  %106 = vmatprep.subr.mxu0 %v25
  %107 = vmatpush1.msra.mxu0 %v24
  %108 = vmatprep.subr.mxu0 %v29
  %109 = vmatpush1.msra.mxu0 %v28
  %110 = vmatprep.subr.mxu0 %v33
  %111 = vmatpush1.msra.mxu0 %v32
  %112 = vmatprep.subr.mxu0 %v37
  %113 = vmatpush1.msra.mxu0 %v36
  %114 = vmatprep.subr.mxu0 %v41
  %115 = vmatpush1.msra.mxu0 %v40
  %116 = vmatprep.subr.mxu0 %v45
  %117 = vmatpush1.msra.mxu0 %v44
  %118 = vmatprep.subr.mxu0 %v49
  %119 = vmatpush1.msra.mxu0 %v48
  %120 = vmatprep.subr.mxu0 %v53
  %121 = vmatpush1.msra.mxu0 %v52
  %122 = vmatprep.subr.mxu0 %v57
  %123 = vmatpush1.msra.mxu0 %v56
  %124 = vmatprep.subr.mxu0 %v61
  %125 = vmatpush1.msra.mxu0 %v60
  %126 = vmatprep.subr.mxu0 %v65
  %127 = vmatpush1.msra.mxu0 %v64
  %128 = vmatprep.subr.mxu0 %v69
  %129 = vmatpush1.msra.mxu0 %v68
  %130 = vmatprep.subr.mxu0 %v73
  %131 = vmatpush1.msra.mxu0 %v72
  %132 = vmatprep.subr.mxu0 %v77
  %133 = vmatpush1.msra.mxu0 %v76
  %134 = vmatprep.subr.mxu0 0.0
  %135 = vmatpush1.msra.mxu0 0.0
  %136 = vmatprep.subr.mxu0 0.0
  %137 = vmatpush1.msra.mxu0 0.0
  %138 = vmatprep.subr.mxu0 0.0
  %139 = vmatpush1.msra.mxu0 0.0
  %140 = vmatprep.subr.mxu0 0.0
  %141 = vmatpush1.msra.mxu0 0.0
  %142 = vmatprep.subr.mxu0 0.0
  %143 = vmatpush1.msra.mxu0 0.0
  %144 = vmatprep.subr.mxu0 0.0
  %145 = vmatpush1.msra.mxu0 0.0
  %146 = vmatprep.subr.mxu0 0.0
  %147 = vmatpush1.msra.mxu0 0.0
  %148 = vmatprep.subr.mxu0 0.0
  %149 = vmatpush1.msra.mxu0 0.0
  %150 = vmatprep.subr.mxu0 0.0
  %151 = vmatpush1.msra.mxu0 0.0
  %152 = vmatprep.subr.mxu0 0.0
  %153 = vmatpush1.msra.mxu0 0.0
  %154 = vmatprep.subr.mxu0 0.0
  %155 = vmatpush1.msra.mxu0 0.0
  %156 = vmatprep.subr.mxu0 0.0
  %157 = vmatpush1.msra.mxu0 0.0
  %158 = vmatprep.subr.mxu0 0.0
  %159 = vmatpush1.msra.mxu0 0.0
  %160 = vmatprep.subr.mxu0 0.0
  %161 = vmatpush1.msra.mxu0 0.0
  %162 = vmatprep.subr.mxu0 0.0
  %163 = vmatpush1.msra.mxu0 0.0
  %164 = vmatprep.subr.mxu0 0.0
  %165 = vmatpush1.msra.mxu0 0.0
  %166 = vmatprep.mubr.f32.mxu0 0.0
  %167 = vmatmul.mubr.f32.gmra.mrb[0].mxu0 %v14
  %v168 = vpop.f32.mrb[0].mxu0
  %v169 = vadd.f32 %v85, %v168
  %v170 = vpop.f32.mrb[0].mxu0
  %v171 = vadd.f32 %v89, %v170
  %172 = vmatprep.mubr.f32.mxu0 0.0
  %173 = vmatmul.mubr.f32.gmra.mrb[0].mxu0 %v15
  %v174 = vpop.f32.mrb[0].mxu0
  %v175 = vadd.f32 %v85, %v174
  %v176 = vpop.f32.mrb[0].mxu0
  %v177 = vadd.f32 %v89, %v176
  %178 = vdwg.mxu0
  %179 = vmatprep.subr.mxu0 %v19
  %180 = vmatpush1.msra.mxu0 %v18
  %181 = vmatprep.subr.mxu0 %v23
  %182 = vmatpush1.msra.mxu0 %v22
  %183 = vmatprep.subr.mxu0 %v27
  %184 = vmatpush1.msra.mxu0 %v26
  %185 = vmatprep.subr.mxu0 %v31
  %186 = vmatpush1.msra.mxu0 %v30
  %187 = vmatprep.subr.mxu0 %v35
  %188 = vmatpush1.msra.mxu0 %v34
  %189 = vmatprep.subr.mxu0 %v39
  %190 = vmatpush1.msra.mxu0 %v38
  %191 = vmatprep.subr.mxu0 %v43
  %192 = vmatpush1.msra.mxu0 %v42
  %193 = vmatprep.subr.mxu0 %v47
  %194 = vmatpush1.msra.mxu0 %v46
  %195 = vmatprep.subr.mxu0 %v51
  %196 = vmatpush1.msra.mxu0 %v50
  %197 = vmatprep.subr.mxu0 %v55
  %198 = vmatpush1.msra.mxu0 %v54
  %199 = vmatprep.subr.mxu0 %v59
  %200 = vmatpush1.msra.mxu0 %v58
  %201 = vmatprep.subr.mxu0 %v63
  %202 = vmatpush1.msra.mxu0 %v62
  %203 = vmatprep.subr.mxu0 %v67
  %204 = vmatpush1.msra.mxu0 %v66
  %205 = vmatprep.subr.mxu0 %v71
  %206 = vmatpush1.msra.mxu0 %v70
  %207 = vmatprep.subr.mxu0 %v75
  %208 = vmatpush1.msra.mxu0 %v74
  %209 = vmatprep.subr.mxu0 %v79
  %210 = vmatpush1.msra.mxu0 %v78
  %211 = vmatprep.subr.mxu0 0.0
  %212 = vmatpush1.msra.mxu0 0.0
  %213 = vmatprep.subr.mxu0 0.0
  %214 = vmatpush1.msra.mxu0 0.0
  %215 = vmatprep.subr.mxu0 0.0
  %216 = vmatpush1.msra.mxu0 0.0
  %217 = vmatprep.subr.mxu0 0.0
  %218 = vmatpush1.msra.mxu0 0.0
  %219 = vmatprep.subr.mxu0 0.0
  %220 = vmatpush1.msra.mxu0 0.0
  %221 = vmatprep.subr.mxu0 0.0
  %222 = vmatpush1.msra.mxu0 0.0
  %223 = vmatprep.subr.mxu0 0.0
  %224 = vmatpush1.msra.mxu0 0.0
  %225 = vmatprep.subr.mxu0 0.0
  %226 = vmatpush1.msra.mxu0 0.0
  %227 = vmatprep.subr.mxu0 0.0
  %228 = vmatpush1.msra.mxu0 0.0
  %229 = vmatprep.subr.mxu0 0.0
  %230 = vmatpush1.msra.mxu0 0.0
  %231 = vmatprep.subr.mxu0 0.0
  %232 = vmatpush1.msra.mxu0 0.0
  %233 = vmatprep.subr.mxu0 0.0
  %234 = vmatpush1.msra.mxu0 0.0
  %235 = vmatprep.subr.mxu0 0.0
  %236 = vmatpush1.msra.mxu0 0.0
  %237 = vmatprep.subr.mxu0 0.0
  %238 = vmatpush1.msra.mxu0 0.0
  %239 = vmatprep.subr.mxu0 0.0
  %240 = vmatpush1.msra.mxu0 0.0
  %241 = vmatprep.subr.mxu0 0.0
  %242 = vmatpush1.msra.mxu0 0.0
  %243 = vmatprep.mubr.f32.mxu0 0.0
  %244 = vmatmul.mubr.f32.gmra.mrb[0].mxu0 %v14
  %v245 = vpop.f32.mrb[0].mxu0
  %v246 = vadd.f32 %v93, %v245
  %v247 = vpop.f32.mrb[0].mxu0
  %v248 = vadd.f32 %v97, %v247
  %249 = vmatprep.mubr.f32.mxu0 0.0
  %250 = vmatmul.mubr.f32.gmra.mrb[0].mxu0 %v15
  %v251 = vpop.f32.mrb[0].mxu0
  %v252 = vadd.f32 %v93, %v251
  %v253 = vpop.f32.mrb[0].mxu0
  %v254 = vadd.f32 %v97, %v253
  %255 = vdwg.mxu0
  %256 = vst [vmem:[%s3] sm:$0xff] %v169
  %257 = vst [vmem:[%s3 + $0x8] sm:$0xff] %v171
  %258 = vst [vmem:[%s3 + $0x10] sm:$0xff] %v246
  %259 = vst [vmem:[%s3 + $0x18] sm:$0xff] %v248
  %260 = vst [vmem:[%s3 + $0x20] sm:$0xff] %v175
  %261 = vst [vmem:[%s3 + $0x28] sm:$0xff] %v177
  %262 = vst [vmem:[%s3 + $0x30] sm:$0xff] %v252
  %263 = vst [vmem:[%s3 + $0x38] sm:$0xff] %v254
  // Predicated region
  $region14: #{bert_lstm_forward.16} parent=0 // pred_check
    _
  $region15: #{bert_lstm_forward.16} parent=0 // pred_check_branch
    %265 = sbr.rel (0) target = $region17
  $region16: #{bert_lstm_forward.16} parent=0 // pred_region
    _
  $region17: #{bert_lstm_forward.16} parent=0 // pred_fallthru
    _
  // Predicated region
  $region18: #{bert_lstm_forward.16} parent=0 // pred_check
    _
  $region19: #{bert_lstm_forward.16} parent=0 // pred_check_branch
    %267 = sbr.rel (0) target = $region21
  $region20: #{bert_lstm_forward.16} parent=0 // pred_region
    _
  $region21: #{bert_lstm_forward.16} parent=0 // pred_fallthru
    _

// kernel: bert_lstm_forward.17
$region0: #{bert_lstm_forward.17}
  #allocation0 [shape = 'u32[]', space=smem, size = 0x4, offset = 0x4, fixed_abs, tag = 'smem constant byte address 0x4 - core index']
  #allocation1 [shape = 'u32[144,128]{1,0:T(1,128)}', space=vmem, size = 0x12000, scoped, tag = 'internal scratch']
  %s0 = inlined_call_operand.vmem [shape: f32[16,512], index: 0, kind: input, shape index: {}]
  %s1 = inlined_call_operand.vmem [shape: f32[128,512], index: 1, kind: input, shape index: {}]
  %s2 = inlined_call_operand.vmem [shape: f32[16,128], index: 2, kind: output, shape index: {}]
  %s3 = sld [smem:[#allocation0]]
  $region18: #{bert_lstm_forward.17} parent=0
    _
  %s5 = ssub.s32 1, %s3
  %s6 = scalar_select 0, %s5, %s3
  // Predicated region
  $region2: #{bert_lstm_forward.17} parent=0 // pred_check
    _
  $region3: #{bert_lstm_forward.17} parent=0 // pred_check_branch
    %8 = sbr.rel (0) target = $region5
  $region4: #{bert_lstm_forward.17} parent=0 // pred_region
    _
  $region5: #{bert_lstm_forward.17} parent=0 // pred_fallthru
    _
  // Predicated region
  $region6: #{bert_lstm_forward.17} parent=0 // pred_check
    _
  $region7: #{bert_lstm_forward.17} parent=0 // pred_check_branch
    %10 = sbr.rel (0) target = $region9
  $region8: #{bert_lstm_forward.17} parent=0 // pred_region
    _
  $region9: #{bert_lstm_forward.17} parent=0 // pred_fallthru
    _
  %v11 = vld [vmem:[%s1] sm:$0xff]
  %v12 = vld [vmem:[%s1 + $0x8] sm:$0xff]
  %v13 = vld [vmem:[%s1 + $0x10] sm:$0xff]
  %v14 = vld [vmem:[%s1 + $0x18] sm:$0xff]
  %v15 = vld [vmem:[%s1 + $0x20] sm:$0xff]
  %v16 = vld [vmem:[%s1 + $0x28] sm:$0xff]
  %v17 = vld [vmem:[%s1 + $0x30] sm:$0xff]
  %v18 = vld [vmem:[%s1 + $0x38] sm:$0xff]
  %v19 = vld [vmem:[%s1 + $0x40] sm:$0xff]
  %v20 = vld [vmem:[%s1 + $0x48] sm:$0xff]
  %v21 = vld [vmem:[%s1 + $0x50] sm:$0xff]
  %v22 = vld [vmem:[%s1 + $0x58] sm:$0xff]
  %v23 = vld [vmem:[%s1 + $0x60] sm:$0xff]
  %v24 = vld [vmem:[%s1 + $0x68] sm:$0xff]
  %v25 = vld [vmem:[%s1 + $0x70] sm:$0xff]
  %v26 = vld [vmem:[%s1 + $0x78] sm:$0xff]
  %v27 = vld [vmem:[%s1 + $0x80] sm:$0xff]
  %v28 = vld [vmem:[%s1 + $0x88] sm:$0xff]
  %v29 = vld [vmem:[%s1 + $0x90] sm:$0xff]
  %v30 = vld [vmem:[%s1 + $0x98] sm:$0xff]
  %v31 = vld [vmem:[%s1 + $0xa0] sm:$0xff]
  %v32 = vld [vmem:[%s1 + $0xa8] sm:$0xff]
  %v33 = vld [vmem:[%s1 + $0xb0] sm:$0xff]
  %v34 = vld [vmem:[%s1 + $0xb8] sm:$0xff]
  %v35 = vld [vmem:[%s1 + $0xc0] sm:$0xff]
  %v36 = vld [vmem:[%s1 + $0xc8] sm:$0xff]
  %v37 = vld [vmem:[%s1 + $0xd0] sm:$0xff]
  %v38 = vld [vmem:[%s1 + $0xd8] sm:$0xff]
  %v39 = vld [vmem:[%s1 + $0xe0] sm:$0xff]
  %v40 = vld [vmem:[%s1 + $0xe8] sm:$0xff]
  %v41 = vld [vmem:[%s1 + $0xf0] sm:$0xff]
  %v42 = vld [vmem:[%s1 + $0xf8] sm:$0xff]
  %v43 = vld [vmem:[%s1 + $0x100] sm:$0xff]
  %v44 = vld [vmem:[%s1 + $0x108] sm:$0xff]
  %v45 = vld [vmem:[%s1 + $0x110] sm:$0xff]
  %v46 = vld [vmem:[%s1 + $0x118] sm:$0xff]
  %v47 = vld [vmem:[%s1 + $0x120] sm:$0xff]
  %v48 = vld [vmem:[%s1 + $0x128] sm:$0xff]
  %v49 = vld [vmem:[%s1 + $0x130] sm:$0xff]
  %v50 = vld [vmem:[%s1 + $0x138] sm:$0xff]
  %v51 = vld [vmem:[%s1 + $0x140] sm:$0xff]
  %v52 = vld [vmem:[%s1 + $0x148] sm:$0xff]
  %v53 = vld [vmem:[%s1 + $0x150] sm:$0xff]
  %v54 = vld [vmem:[%s1 + $0x158] sm:$0xff]
  %v55 = vld [vmem:[%s1 + $0x160] sm:$0xff]
  %v56 = vld [vmem:[%s1 + $0x168] sm:$0xff]
  %v57 = vld [vmem:[%s1 + $0x170] sm:$0xff]
  %v58 = vld [vmem:[%s1 + $0x178] sm:$0xff]
  %v59 = vld [vmem:[%s1 + $0x180] sm:$0xff]
  %v60 = vld [vmem:[%s1 + $0x188] sm:$0xff]
  %v61 = vld [vmem:[%s1 + $0x190] sm:$0xff]
  %v62 = vld [vmem:[%s1 + $0x198] sm:$0xff]
  %v63 = vld [vmem:[%s1 + $0x1a0] sm:$0xff]
  %v64 = vld [vmem:[%s1 + $0x1a8] sm:$0xff]
  %v65 = vld [vmem:[%s1 + $0x1b0] sm:$0xff]
  %v66 = vld [vmem:[%s1 + $0x1b8] sm:$0xff]
  %v67 = vld [vmem:[%s1 + $0x1c0] sm:$0xff]
  %v68 = vld [vmem:[%s1 + $0x1c8] sm:$0xff]
  %v69 = vld [vmem:[%s1 + $0x1d0] sm:$0xff]
  %v70 = vld [vmem:[%s1 + $0x1d8] sm:$0xff]
  %v71 = vld [vmem:[%s1 + $0x1e0] sm:$0xff]
  %v72 = vld [vmem:[%s1 + $0x1e8] sm:$0xff]
  %v73 = vld [vmem:[%s1 + $0x1f0] sm:$0xff]
  %v74 = vld [vmem:[%s1 + $0x1f8] sm:$0xff]
  %v75 = vld [vmem:[%s0] sm:$0xff]
  %v76 = vld [vmem:[%s0 + $0x8] sm:$0xff]
  %v77 = vld [vmem:[%s0 + $0x10] sm:$0xff]
  %v78 = vld [vmem:[%s0 + $0x18] sm:$0xff]
  %v79 = vld [vmem:[%s0 + $0x20] sm:$0xff]
  %v80 = vld [vmem:[%s0 + $0x28] sm:$0xff]
  %v81 = vld [vmem:[%s0 + $0x30] sm:$0xff]
  %v82 = vld [vmem:[%s0 + $0x38] sm:$0xff]
  %83 = vmatprep.subr.mxu0 %v12
  %84 = vmatpush1.msra.mxu0 %v11
  %85 = vmatprep.subr.mxu0 %v16
  %86 = vmatpush1.msra.mxu0 %v15
  %87 = vmatprep.subr.mxu0 %v20
  %88 = vmatpush1.msra.mxu0 %v19
  %89 = vmatprep.subr.mxu0 %v24
  %90 = vmatpush1.msra.mxu0 %v23
  %91 = vmatprep.subr.mxu0 %v28
  %92 = vmatpush1.msra.mxu0 %v27
  %93 = vmatprep.subr.mxu0 %v32
  %94 = vmatpush1.msra.mxu0 %v31
  %95 = vmatprep.subr.mxu0 %v36
  %96 = vmatpush1.msra.mxu0 %v35
  %97 = vmatprep.subr.mxu0 %v40
  %98 = vmatpush1.msra.mxu0 %v39
  %99 = vmatprep.subr.mxu0 %v44
  %100 = vmatpush1.msra.mxu0 %v43
  %101 = vmatprep.subr.mxu0 %v48
  %102 = vmatpush1.msra.mxu0 %v47
  %103 = vmatprep.subr.mxu0 %v52
  %104 = vmatpush1.msra.mxu0 %v51
  %105 = vmatprep.subr.mxu0 %v56
  %106 = vmatpush1.msra.mxu0 %v55
  %107 = vmatprep.subr.mxu0 %v60
  %108 = vmatpush1.msra.mxu0 %v59
  %109 = vmatprep.subr.mxu0 %v64
  %110 = vmatpush1.msra.mxu0 %v63
  %111 = vmatprep.subr.mxu0 %v68
  %112 = vmatpush1.msra.mxu0 %v67
  %113 = vmatprep.subr.mxu0 %v72
  %114 = vmatpush1.msra.mxu0 %v71
  %115 = vmatprep.subr.mxu0 0.0
  %116 = vmatpush1.msra.mxu0 0.0
  %117 = vmatprep.subr.mxu0 0.0
  %118 = vmatpush1.msra.mxu0 0.0
  %119 = vmatprep.subr.mxu0 0.0
  %120 = vmatpush1.msra.mxu0 0.0
  %121 = vmatprep.subr.mxu0 0.0
  %122 = vmatpush1.msra.mxu0 0.0
  %123 = vmatprep.subr.mxu0 0.0
  %124 = vmatpush1.msra.mxu0 0.0
  %125 = vmatprep.subr.mxu0 0.0
  %126 = vmatpush1.msra.mxu0 0.0
  %127 = vmatprep.subr.mxu0 0.0
  %128 = vmatpush1.msra.mxu0 0.0
  %129 = vmatprep.subr.mxu0 0.0
  %130 = vmatpush1.msra.mxu0 0.0
  %131 = vmatprep.subr.mxu0 0.0
  %132 = vmatpush1.msra.mxu0 0.0
  %133 = vmatprep.subr.mxu0 0.0
  %134 = vmatpush1.msra.mxu0 0.0
  %135 = vmatprep.subr.mxu0 0.0
  %136 = vmatpush1.msra.mxu0 0.0
  %137 = vmatprep.subr.mxu0 0.0
  %138 = vmatpush1.msra.mxu0 0.0
  %139 = vmatprep.subr.mxu0 0.0
  %140 = vmatpush1.msra.mxu0 0.0
  %141 = vmatprep.subr.mxu0 0.0
  %142 = vmatpush1.msra.mxu0 0.0
  %143 = vmatprep.subr.mxu0 0.0
  %144 = vmatpush1.msra.mxu0 0.0
  %145 = vmatprep.subr.mxu0 0.0
  %146 = vmatpush1.msra.mxu0 0.0
  %147 = vmatprep.mubr.f32.mxu0 0.0
  %148 = vmatmul.mubr.f32.gmra.mrb[0].mxu0 0.0
  %v149 = vpop.f32.mrb[0].mxu0
  %v150 = vadd.f32 0.0, %v149
  %v151 = vpop.f32.mrb[0].mxu0
  %v152 = vadd.f32 0.0, %v151
  %153 = vdwg.mxu0
  %154 = vmatprep.subr.mxu0 %v14
  %155 = vmatpush1.msra.mxu0 %v13
  %156 = vmatprep.subr.mxu0 %v18
  %157 = vmatpush1.msra.mxu0 %v17
  %158 = vmatprep.subr.mxu0 %v22
  %159 = vmatpush1.msra.mxu0 %v21
  %160 = vmatprep.subr.mxu0 %v26
  %161 = vmatpush1.msra.mxu0 %v25
  %162 = vmatprep.subr.mxu0 %v30
  %163 = vmatpush1.msra.mxu0 %v29
  %164 = vmatprep.subr.mxu0 %v34
  %165 = vmatpush1.msra.mxu0 %v33
  %166 = vmatprep.subr.mxu0 %v38
  %167 = vmatpush1.msra.mxu0 %v37
  %168 = vmatprep.subr.mxu0 %v42
  %169 = vmatpush1.msra.mxu0 %v41
  %170 = vmatprep.subr.mxu0 %v46
  %171 = vmatpush1.msra.mxu0 %v45
  %172 = vmatprep.subr.mxu0 %v50
  %173 = vmatpush1.msra.mxu0 %v49
  %174 = vmatprep.subr.mxu0 %v54
  %175 = vmatpush1.msra.mxu0 %v53
  %176 = vmatprep.subr.mxu0 %v58
  %177 = vmatpush1.msra.mxu0 %v57
  %178 = vmatprep.subr.mxu0 %v62
  %179 = vmatpush1.msra.mxu0 %v61
  %180 = vmatprep.subr.mxu0 %v66
  %181 = vmatpush1.msra.mxu0 %v65
  %182 = vmatprep.subr.mxu0 %v70
  %183 = vmatpush1.msra.mxu0 %v69
  %184 = vmatprep.subr.mxu0 %v74
  %185 = vmatpush1.msra.mxu0 %v73
  %186 = vmatprep.subr.mxu0 0.0
  %187 = vmatpush1.msra.mxu0 0.0
  %188 = vmatprep.subr.mxu0 0.0
  %189 = vmatpush1.msra.mxu0 0.0
  %190 = vmatprep.subr.mxu0 0.0
  %191 = vmatpush1.msra.mxu0 0.0
  %192 = vmatprep.subr.mxu0 0.0
  %193 = vmatpush1.msra.mxu0 0.0
  %194 = vmatprep.subr.mxu0 0.0
  %195 = vmatpush1.msra.mxu0 0.0
  %196 = vmatprep.subr.mxu0 0.0
  %197 = vmatpush1.msra.mxu0 0.0
  %198 = vmatprep.subr.mxu0 0.0
  %199 = vmatpush1.msra.mxu0 0.0
  %200 = vmatprep.subr.mxu0 0.0
  %201 = vmatpush1.msra.mxu0 0.0
  %202 = vmatprep.subr.mxu0 0.0
  %203 = vmatpush1.msra.mxu0 0.0
  %204 = vmatprep.subr.mxu0 0.0
  %205 = vmatpush1.msra.mxu0 0.0
  %206 = vmatprep.subr.mxu0 0.0
  %207 = vmatpush1.msra.mxu0 0.0
  %208 = vmatprep.subr.mxu0 0.0
  %209 = vmatpush1.msra.mxu0 0.0
  %210 = vmatprep.subr.mxu0 0.0
  %211 = vmatpush1.msra.mxu0 0.0
  %212 = vmatprep.subr.mxu0 0.0
  %213 = vmatpush1.msra.mxu0 0.0
  %214 = vmatprep.subr.mxu0 0.0
  %215 = vmatpush1.msra.mxu0 0.0
  %216 = vmatprep.subr.mxu0 0.0
  %217 = vmatpush1.msra.mxu0 0.0
  %218 = vmatprep.mubr.f32.mxu0 0.0
  %219 = vmatmul.mubr.f32.gmra.mrb[0].mxu0 0.0
  %v220 = vpop.f32.mrb[0].mxu0
  %v221 = vadd.f32 0.0, %v220
  %v222 = vpop.f32.mrb[0].mxu0
  %v223 = vadd.f32 0.0, %v222
  %224 = vdwg.mxu0
  %v225 = vadd.f32 %v75, %v150
  %v226 = vadd.f32 %v76, %v152
  %v227 = vadd.f32 %v77, %v221
  %v228 = vadd.f32 %v78, %v223
  %v229 = vsub.f32 0.0, %v225
  %v230 = vmul.f32 %v229, 1.442695
  %v231 = vpow.pop %v230
  %v232 = vadd.f32 %v231, 1.0
  %v233 = vrcp.pop %v232
  %v234 = vmul.f32 1.0, %v233
  %v235 = vsub.f32 0.0, %v226
  %v236 = vmul.f32 %v235, 1.442695
  %v237 = vpow.pop %v236
  %v238 = vadd.f32 %v237, 1.0
  %v239 = vrcp.pop %v238
  %v240 = vmul.f32 1.0, %v239
  %v241 = vtanh.pop %v227
  %v242 = vsub.f32 0.0, %v228
  %v243 = vmul.f32 %v242, 1.442695
  %v244 = vpow.pop %v243
  %v245 = vadd.f32 %v244, 1.0
  %v246 = vrcp.pop %v245
  %v247 = vmul.f32 1.0, %v246
  %v248 = vmul.f32 %v240, 0.0
  %v249 = vmul.f32 %v234, %v241
  %v250 = vadd.f32 %v248, %v249
  %v251 = vtanh.pop %v250
  %v252 = vmul.f32 %v247, %v251
  %253 = vmatprep.subr.mxu0 %v12
  %254 = vmatpush1.msra.mxu0 %v11
  %255 = vmatprep.subr.mxu0 %v16
  %256 = vmatpush1.msra.mxu0 %v15
  %257 = vmatprep.subr.mxu0 %v20
  %258 = vmatpush1.msra.mxu0 %v19
  %259 = vmatprep.subr.mxu0 %v24
  %260 = vmatpush1.msra.mxu0 %v23
  %261 = vmatprep.subr.mxu0 %v28
  %262 = vmatpush1.msra.mxu0 %v27
  %263 = vmatprep.subr.mxu0 %v32
  %264 = vmatpush1.msra.mxu0 %v31
  %265 = vmatprep.subr.mxu0 %v36
  %266 = vmatpush1.msra.mxu0 %v35
  %267 = vmatprep.subr.mxu0 %v40
  %268 = vmatpush1.msra.mxu0 %v39
  %269 = vmatprep.subr.mxu0 %v44
  %270 = vmatpush1.msra.mxu0 %v43
  %271 = vmatprep.subr.mxu0 %v48
  %272 = vmatpush1.msra.mxu0 %v47
  %273 = vmatprep.subr.mxu0 %v52
  %274 = vmatpush1.msra.mxu0 %v51
  %275 = vmatprep.subr.mxu0 %v56
  %276 = vmatpush1.msra.mxu0 %v55
  %277 = vmatprep.subr.mxu0 %v60
  %278 = vmatpush1.msra.mxu0 %v59
  %279 = vmatprep.subr.mxu0 %v64
  %280 = vmatpush1.msra.mxu0 %v63
  %281 = vmatprep.subr.mxu0 %v68
  %282 = vmatpush1.msra.mxu0 %v67
  %283 = vmatprep.subr.mxu0 %v72
  %284 = vmatpush1.msra.mxu0 %v71
  %285 = vmatprep.subr.mxu0 0.0
  %286 = vmatpush1.msra.mxu0 0.0
  %287 = vmatprep.subr.mxu0 0.0
  %288 = vmatpush1.msra.mxu0 0.0
  %289 = vmatprep.subr.mxu0 0.0
  %290 = vmatpush1.msra.mxu0 0.0
  %291 = vmatprep.subr.mxu0 0.0
  %292 = vmatpush1.msra.mxu0 0.0
  %293 = vmatprep.subr.mxu0 0.0
  %294 = vmatpush1.msra.mxu0 0.0
  %295 = vmatprep.subr.mxu0 0.0
  %296 = vmatpush1.msra.mxu0 0.0
  %297 = vmatprep.subr.mxu0 0.0
  %298 = vmatpush1.msra.mxu0 0.0
  %299 = vmatprep.subr.mxu0 0.0
  %300 = vmatpush1.msra.mxu0 0.0
  %301 = vmatprep.subr.mxu0 0.0
  %302 = vmatpush1.msra.mxu0 0.0
  %303 = vmatprep.subr.mxu0 0.0
  %304 = vmatpush1.msra.mxu0 0.0
  %305 = vmatprep.subr.mxu0 0.0
  %306 = vmatpush1.msra.mxu0 0.0
  %307 = vmatprep.subr.mxu0 0.0
  %308 = vmatpush1.msra.mxu0 0.0
  %309 = vmatprep.subr.mxu0 0.0
  %310 = vmatpush1.msra.mxu0 0.0
  %311 = vmatprep.subr.mxu0 0.0
  %312 = vmatpush1.msra.mxu0 0.0
  %313 = vmatprep.subr.mxu0 0.0
  %314 = vmatpush1.msra.mxu0 0.0
  %315 = vmatprep.subr.mxu0 0.0
  %316 = vmatpush1.msra.mxu0 0.0
  %317 = vmatprep.mubr.f32.mxu0 0.0
  %318 = vmatmul.mubr.f32.gmra.mrb[0].mxu0 %v252
  %v319 = vpop.f32.mrb[0].mxu0
  %v320 = vadd.f32 0.0, %v319
  %v321 = vpop.f32.mrb[0].mxu0
  %v322 = vadd.f32 0.0, %v321
  %323 = vdwg.mxu0
  %324 = vmatprep.subr.mxu0 %v14
  %325 = vmatpush1.msra.mxu0 %v13
  %326 = vmatprep.subr.mxu0 %v18
  %327 = vmatpush1.msra.mxu0 %v17
  %328 = vmatprep.subr.mxu0 %v22
  %329 = vmatpush1.msra.mxu0 %v21
  %330 = vmatprep.subr.mxu0 %v26
  %331 = vmatpush1.msra.mxu0 %v25
  %332 = vmatprep.subr.mxu0 %v30
  %333 = vmatpush1.msra.mxu0 %v29
  %334 = vmatprep.subr.mxu0 %v34
  %335 = vmatpush1.msra.mxu0 %v33
  %336 = vmatprep.subr.mxu0 %v38
  %337 = vmatpush1.msra.mxu0 %v37
  %338 = vmatprep.subr.mxu0 %v42
  %339 = vmatpush1.msra.mxu0 %v41
  %340 = vmatprep.subr.mxu0 %v46
  %341 = vmatpush1.msra.mxu0 %v45
  %342 = vmatprep.subr.mxu0 %v50
  %343 = vmatpush1.msra.mxu0 %v49
  %344 = vmatprep.subr.mxu0 %v54
  %345 = vmatpush1.msra.mxu0 %v53
  %346 = vmatprep.subr.mxu0 %v58
  %347 = vmatpush1.msra.mxu0 %v57
  %348 = vmatprep.subr.mxu0 %v62
  %349 = vmatpush1.msra.mxu0 %v61
  %350 = vmatprep.subr.mxu0 %v66
  %351 = vmatpush1.msra.mxu0 %v65
  %352 = vmatprep.subr.mxu0 %v70
  %353 = vmatpush1.msra.mxu0 %v69
  %354 = vmatprep.subr.mxu0 %v74
  %355 = vmatpush1.msra.mxu0 %v73
  %356 = vmatprep.subr.mxu0 0.0
  %357 = vmatpush1.msra.mxu0 0.0
  %358 = vmatprep.subr.mxu0 0.0
  %359 = vmatpush1.msra.mxu0 0.0
  %360 = vmatprep.subr.mxu0 0.0
  %361 = vmatpush1.msra.mxu0 0.0
  %362 = vmatprep.subr.mxu0 0.0
  %363 = vmatpush1.msra.mxu0 0.0
  %364 = vmatprep.subr.mxu0 0.0
  %365 = vmatpush1.msra.mxu0 0.0
  %366 = vmatprep.subr.mxu0 0.0
  %367 = vmatpush1.msra.mxu0 0.0
  %368 = vmatprep.subr.mxu0 0.0
  %369 = vmatpush1.msra.mxu0 0.0
  %370 = vmatprep.subr.mxu0 0.0
  %371 = vmatpush1.msra.mxu0 0.0
  %372 = vmatprep.subr.mxu0 0.0
  %373 = vmatpush1.msra.mxu0 0.0
  %374 = vmatprep.subr.mxu0 0.0
  %375 = vmatpush1.msra.mxu0 0.0
  %376 = vmatprep.subr.mxu0 0.0
  %377 = vmatpush1.msra.mxu0 0.0
  %378 = vmatprep.subr.mxu0 0.0
  %379 = vmatpush1.msra.mxu0 0.0
  %380 = vmatprep.subr.mxu0 0.0
  %381 = vmatpush1.msra.mxu0 0.0
  %382 = vmatprep.subr.mxu0 0.0
  %383 = vmatpush1.msra.mxu0 0.0
  %384 = vmatprep.subr.mxu0 0.0
  %385 = vmatpush1.msra.mxu0 0.0
  %386 = vmatprep.subr.mxu0 0.0
  %387 = vmatpush1.msra.mxu0 0.0
  %388 = vmatprep.mubr.f32.mxu0 0.0
  %389 = vmatmul.mubr.f32.gmra.mrb[0].mxu0 %v252
  %v390 = vpop.f32.mrb[0].mxu0
  %v391 = vadd.f32 0.0, %v390
  %v392 = vpop.f32.mrb[0].mxu0
  %v393 = vadd.f32 0.0, %v392
  %394 = vdwg.mxu0
  %v399 = vrot.slane %v320, 6
  %v400 = vrot.slane %v322, 6
  %v401 = vrot.slane %v391, 6
  %v402 = vrot.slane %v393, 6
  %v407 = vadd.f32 %v75, %v399
  %v408 = vadd.f32 %v76, %v400
  %v409 = vadd.f32 %v77, %v401
  %v410 = vadd.f32 %v78, %v402
  %v411 = vsub.f32 0.0, %v407
  %v412 = vmul.f32 %v411, 1.442695
  %v413 = vpow.pop %v412
  %v414 = vadd.f32 %v413, 1.0
  %v415 = vrcp.pop %v414
  %v416 = vmul.f32 1.0, %v415
  %v417 = vsub.f32 0.0, %v408
  %v418 = vmul.f32 %v417, 1.442695
  %v419 = vpow.pop %v418
  %v420 = vadd.f32 %v419, 1.0
  %v421 = vrcp.pop %v420
  %v422 = vmul.f32 1.0, %v421
  %v423 = vtanh.pop %v409
  %v424 = vsub.f32 0.0, %v410
  %v425 = vmul.f32 %v424, 1.442695
  %v426 = vpow.pop %v425
  %v427 = vadd.f32 %v426, 1.0
  %v428 = vrcp.pop %v427
  %v429 = vmul.f32 1.0, %v428
  %v431 = vrot.slane %v250, 6
  %v433 = vmul.f32 %v422, %v431
  %v434 = vmul.f32 %v416, %v423
  %v435 = vadd.f32 %v433, %v434
  %v436 = vtanh.pop %v435
  %v437 = vmul.f32 %v429, %v436
  %v439 = vrot.slane %v437, 2
  %441 = vmatprep.subr.mxu0 %v12
  %442 = vmatpush1.msra.mxu0 %v11
  %443 = vmatprep.subr.mxu0 %v16
  %444 = vmatpush1.msra.mxu0 %v15
  %445 = vmatprep.subr.mxu0 %v20
  %446 = vmatpush1.msra.mxu0 %v19
  %447 = vmatprep.subr.mxu0 %v24
  %448 = vmatpush1.msra.mxu0 %v23
  %449 = vmatprep.subr.mxu0 %v28
  %450 = vmatpush1.msra.mxu0 %v27
  %451 = vmatprep.subr.mxu0 %v32
  %452 = vmatpush1.msra.mxu0 %v31
  %453 = vmatprep.subr.mxu0 %v36
  %454 = vmatpush1.msra.mxu0 %v35
  %455 = vmatprep.subr.mxu0 %v40
  %456 = vmatpush1.msra.mxu0 %v39
  %457 = vmatprep.subr.mxu0 %v44
  %458 = vmatpush1.msra.mxu0 %v43
  %459 = vmatprep.subr.mxu0 %v48
  %460 = vmatpush1.msra.mxu0 %v47
  %461 = vmatprep.subr.mxu0 %v52
  %462 = vmatpush1.msra.mxu0 %v51
  %463 = vmatprep.subr.mxu0 %v56
  %464 = vmatpush1.msra.mxu0 %v55
  %465 = vmatprep.subr.mxu0 %v60
  %466 = vmatpush1.msra.mxu0 %v59
  %467 = vmatprep.subr.mxu0 %v64
  %468 = vmatpush1.msra.mxu0 %v63
  %469 = vmatprep.subr.mxu0 %v68
  %470 = vmatpush1.msra.mxu0 %v67
  %471 = vmatprep.subr.mxu0 %v72
  %472 = vmatpush1.msra.mxu0 %v71
  %473 = vmatprep.subr.mxu0 0.0
  %474 = vmatpush1.msra.mxu0 0.0
  %475 = vmatprep.subr.mxu0 0.0
  %476 = vmatpush1.msra.mxu0 0.0
  %477 = vmatprep.subr.mxu0 0.0
  %478 = vmatpush1.msra.mxu0 0.0
  %479 = vmatprep.subr.mxu0 0.0
  %480 = vmatpush1.msra.mxu0 0.0
  %481 = vmatprep.subr.mxu0 0.0
  %482 = vmatpush1.msra.mxu0 0.0
  %483 = vmatprep.subr.mxu0 0.0
  %484 = vmatpush1.msra.mxu0 0.0
  %485 = vmatprep.subr.mxu0 0.0
  %486 = vmatpush1.msra.mxu0 0.0
  %487 = vmatprep.subr.mxu0 0.0
  %488 = vmatpush1.msra.mxu0 0.0
  %489 = vmatprep.subr.mxu0 0.0
  %490 = vmatpush1.msra.mxu0 0.0
  %491 = vmatprep.subr.mxu0 0.0
  %492 = vmatpush1.msra.mxu0 0.0
  %493 = vmatprep.subr.mxu0 0.0
  %494 = vmatpush1.msra.mxu0 0.0
  %495 = vmatprep.subr.mxu0 0.0
  %496 = vmatpush1.msra.mxu0 0.0
  %497 = vmatprep.subr.mxu0 0.0
  %498 = vmatpush1.msra.mxu0 0.0
  %499 = vmatprep.subr.mxu0 0.0
  %500 = vmatpush1.msra.mxu0 0.0
  %501 = vmatprep.subr.mxu0 0.0
  %502 = vmatpush1.msra.mxu0 0.0
  %503 = vmatprep.subr.mxu0 0.0
  %504 = vmatpush1.msra.mxu0 0.0
  %505 = vmatprep.mubr.f32.mxu0 0.0
  %506 = vmatmul.mubr.f32.gmra.mrb[0].mxu0 %v439
  %v507 = vpop.f32.mrb[0].mxu0
  %v508 = vadd.f32 0.0, %v507
  %v509 = vpop.f32.mrb[0].mxu0
  %v510 = vadd.f32 0.0, %v509
  %511 = vdwg.mxu0
  %512 = vmatprep.subr.mxu0 %v14
  %513 = vmatpush1.msra.mxu0 %v13
  %514 = vmatprep.subr.mxu0 %v18
  %515 = vmatpush1.msra.mxu0 %v17
  %516 = vmatprep.subr.mxu0 %v22
  %517 = vmatpush1.msra.mxu0 %v21
  %518 = vmatprep.subr.mxu0 %v26
  %519 = vmatpush1.msra.mxu0 %v25
  %520 = vmatprep.subr.mxu0 %v30
  %521 = vmatpush1.msra.mxu0 %v29
  %522 = vmatprep.subr.mxu0 %v34
  %523 = vmatpush1.msra.mxu0 %v33
  %524 = vmatprep.subr.mxu0 %v38
  %525 = vmatpush1.msra.mxu0 %v37
  %526 = vmatprep.subr.mxu0 %v42
  %527 = vmatpush1.msra.mxu0 %v41
  %528 = vmatprep.subr.mxu0 %v46
  %529 = vmatpush1.msra.mxu0 %v45
  %530 = vmatprep.subr.mxu0 %v50
  %531 = vmatpush1.msra.mxu0 %v49
  %532 = vmatprep.subr.mxu0 %v54
  %533 = vmatpush1.msra.mxu0 %v53
  %534 = vmatprep.subr.mxu0 %v58
  %535 = vmatpush1.msra.mxu0 %v57
  %536 = vmatprep.subr.mxu0 %v62
  %537 = vmatpush1.msra.mxu0 %v61
  %538 = vmatprep.subr.mxu0 %v66
  %539 = vmatpush1.msra.mxu0 %v65
  %540 = vmatprep.subr.mxu0 %v70
  %541 = vmatpush1.msra.mxu0 %v69
  %542 = vmatprep.subr.mxu0 %v74
  %543 = vmatpush1.msra.mxu0 %v73
  %544 = vmatprep.subr.mxu0 0.0
  %545 = vmatpush1.msra.mxu0 0.0
  %546 = vmatprep.subr.mxu0 0.0
  %547 = vmatpush1.msra.mxu0 0.0
  %548 = vmatprep.subr.mxu0 0.0
  %549 = vmatpush1.msra.mxu0 0.0
  %550 = vmatprep.subr.mxu0 0.0
  %551 = vmatpush1.msra.mxu0 0.0
  %552 = vmatprep.subr.mxu0 0.0
  %553 = vmatpush1.msra.mxu0 0.0
  %554 = vmatprep.subr.mxu0 0.0
  %555 = vmatpush1.msra.mxu0 0.0
  %556 = vmatprep.subr.mxu0 0.0
  %557 = vmatpush1.msra.mxu0 0.0
  %558 = vmatprep.subr.mxu0 0.0
  %559 = vmatpush1.msra.mxu0 0.0
  %560 = vmatprep.subr.mxu0 0.0
  %561 = vmatpush1.msra.mxu0 0.0
  %562 = vmatprep.subr.mxu0 0.0
  %563 = vmatpush1.msra.mxu0 0.0
  %564 = vmatprep.subr.mxu0 0.0
  %565 = vmatpush1.msra.mxu0 0.0
  %566 = vmatprep.subr.mxu0 0.0
  %567 = vmatpush1.msra.mxu0 0.0
  %568 = vmatprep.subr.mxu0 0.0
  %569 = vmatpush1.msra.mxu0 0.0
  %570 = vmatprep.subr.mxu0 0.0
  %571 = vmatpush1.msra.mxu0 0.0
  %572 = vmatprep.subr.mxu0 0.0
  %573 = vmatpush1.msra.mxu0 0.0
  %574 = vmatprep.subr.mxu0 0.0
  %575 = vmatpush1.msra.mxu0 0.0
  %576 = vmatprep.mubr.f32.mxu0 0.0
  %577 = vmatmul.mubr.f32.gmra.mrb[0].mxu0 %v439
  %v578 = vpop.f32.mrb[0].mxu0
  %v579 = vadd.f32 0.0, %v578
  %v580 = vpop.f32.mrb[0].mxu0
  %v581 = vadd.f32 0.0, %v580
  %582 = vdwg.mxu0
  %v587 = vrot.slane %v508, 4
  %v588 = vrot.slane %v510, 4
  %v589 = vrot.slane %v579, 4
  %v590 = vrot.slane %v581, 4
  %v595 = vadd.f32 %v75, %v587
  %v596 = vadd.f32 %v76, %v588
  %v597 = vadd.f32 %v77, %v589
  %v598 = vadd.f32 %v78, %v590
  %v599 = vsub.f32 0.0, %v595
  %v600 = vmul.f32 %v599, 1.442695
  %v601 = vpow.pop %v600
  %v602 = vadd.f32 %v601, 1.0
  %v603 = vrcp.pop %v602
  %v604 = vmul.f32 1.0, %v603
  %v605 = vsub.f32 0.0, %v596
  %v606 = vmul.f32 %v605, 1.442695
  %v607 = vpow.pop %v606
  %v608 = vadd.f32 %v607, 1.0
  %v609 = vrcp.pop %v608
  %v610 = vmul.f32 1.0, %v609
  %v611 = vtanh.pop %v597
  %v612 = vsub.f32 0.0, %v598
  %v613 = vmul.f32 %v612, 1.442695
  %v614 = vpow.pop %v613
  %v615 = vadd.f32 %v614, 1.0
  %v616 = vrcp.pop %v615
  %v617 = vmul.f32 1.0, %v616
  %v619 = vrot.slane %v435, 6
  %v621 = vmul.f32 %v610, %v619
  %v622 = vmul.f32 %v604, %v611
  %v623 = vadd.f32 %v621, %v622
  %v624 = vtanh.pop %v623
  %v625 = vmul.f32 %v617, %v624
  %v627 = vrot.slane %v625, 4
  %629 = vmatprep.subr.mxu0 %v12
  %630 = vmatpush1.msra.mxu0 %v11
  %631 = vmatprep.subr.mxu0 %v16
  %632 = vmatpush1.msra.mxu0 %v15
  %633 = vmatprep.subr.mxu0 %v20
  %634 = vmatpush1.msra.mxu0 %v19
  %635 = vmatprep.subr.mxu0 %v24
  %636 = vmatpush1.msra.mxu0 %v23
  %637 = vmatprep.subr.mxu0 %v28
  %638 = vmatpush1.msra.mxu0 %v27
  %639 = vmatprep.subr.mxu0 %v32
  %640 = vmatpush1.msra.mxu0 %v31
  %641 = vmatprep.subr.mxu0 %v36
  %642 = vmatpush1.msra.mxu0 %v35
  %643 = vmatprep.subr.mxu0 %v40
  %644 = vmatpush1.msra.mxu0 %v39
  %645 = vmatprep.subr.mxu0 %v44
  %646 = vmatpush1.msra.mxu0 %v43
  %647 = vmatprep.subr.mxu0 %v48
  %648 = vmatpush1.msra.mxu0 %v47
  %649 = vmatprep.subr.mxu0 %v52
  %650 = vmatpush1.msra.mxu0 %v51
  %651 = vmatprep.subr.mxu0 %v56
  %652 = vmatpush1.msra.mxu0 %v55
  %653 = vmatprep.subr.mxu0 %v60
  %654 = vmatpush1.msra.mxu0 %v59
  %655 = vmatprep.subr.mxu0 %v64
  %656 = vmatpush1.msra.mxu0 %v63
  %657 = vmatprep.subr.mxu0 %v68
  %658 = vmatpush1.msra.mxu0 %v67
  %659 = vmatprep.subr.mxu0 %v72
  %660 = vmatpush1.msra.mxu0 %v71
  %661 = vmatprep.subr.mxu0 0.0
  %662 = vmatpush1.msra.mxu0 0.0
  %663 = vmatprep.subr.mxu0 0.0
  %664 = vmatpush1.msra.mxu0 0.0
  %665 = vmatprep.subr.mxu0 0.0
  %666 = vmatpush1.msra.mxu0 0.0
  %667 = vmatprep.subr.mxu0 0.0
  %668 = vmatpush1.msra.mxu0 0.0
  %669 = vmatprep.subr.mxu0 0.0
  %670 = vmatpush1.msra.mxu0 0.0
  %671 = vmatprep.subr.mxu0 0.0
  %672 = vmatpush1.msra.mxu0 0.0
  %673 = vmatprep.subr.mxu0 0.0
  %674 = vmatpush1.msra.mxu0 0.0
  %675 = vmatprep.subr.mxu0 0.0
  %676 = vmatpush1.msra.mxu0 0.0
  %677 = vmatprep.subr.mxu0 0.0
  %678 = vmatpush1.msra.mxu0 0.0
  %679 = vmatprep.subr.mxu0 0.0
  %680 = vmatpush1.msra.mxu0 0.0
  %681 = vmatprep.subr.mxu0 0.0
  %682 = vmatpush1.msra.mxu0 0.0
  %683 = vmatprep.subr.mxu0 0.0
  %684 = vmatpush1.msra.mxu0 0.0
  %685 = vmatprep.subr.mxu0 0.0
  %686 = vmatpush1.msra.mxu0 0.0
  %687 = vmatprep.subr.mxu0 0.0
  %688 = vmatpush1.msra.mxu0 0.0
  %689 = vmatprep.subr.mxu0 0.0
  %690 = vmatpush1.msra.mxu0 0.0
  %691 = vmatprep.subr.mxu0 0.0
  %692 = vmatpush1.msra.mxu0 0.0
  %693 = vmatprep.mubr.f32.mxu0 0.0
  %694 = vmatmul.mubr.f32.gmra.mrb[0].mxu0 %v627
  %v695 = vpop.f32.mrb[0].mxu0
  %v696 = vadd.f32 0.0, %v695
  %v697 = vpop.f32.mrb[0].mxu0
  %v698 = vadd.f32 0.0, %v697
  %699 = vdwg.mxu0
  %700 = vmatprep.subr.mxu0 %v14
  %701 = vmatpush1.msra.mxu0 %v13
  %702 = vmatprep.subr.mxu0 %v18
  %703 = vmatpush1.msra.mxu0 %v17
  %704 = vmatprep.subr.mxu0 %v22
  %705 = vmatpush1.msra.mxu0 %v21
  %706 = vmatprep.subr.mxu0 %v26
  %707 = vmatpush1.msra.mxu0 %v25
  %708 = vmatprep.subr.mxu0 %v30
  %709 = vmatpush1.msra.mxu0 %v29
  %710 = vmatprep.subr.mxu0 %v34
  %711 = vmatpush1.msra.mxu0 %v33
  %712 = vmatprep.subr.mxu0 %v38
  %713 = vmatpush1.msra.mxu0 %v37
  %714 = vmatprep.subr.mxu0 %v42
  %715 = vmatpush1.msra.mxu0 %v41
  %716 = vmatprep.subr.mxu0 %v46
  %717 = vmatpush1.msra.mxu0 %v45
  %718 = vmatprep.subr.mxu0 %v50
  %719 = vmatpush1.msra.mxu0 %v49
  %720 = vmatprep.subr.mxu0 %v54
  %721 = vmatpush1.msra.mxu0 %v53
  %722 = vmatprep.subr.mxu0 %v58
  %723 = vmatpush1.msra.mxu0 %v57
  %724 = vmatprep.subr.mxu0 %v62
  %725 = vmatpush1.msra.mxu0 %v61
  %726 = vmatprep.subr.mxu0 %v66
  %727 = vmatpush1.msra.mxu0 %v65
  %728 = vmatprep.subr.mxu0 %v70
  %729 = vmatpush1.msra.mxu0 %v69
  %730 = vmatprep.subr.mxu0 %v74
  %731 = vmatpush1.msra.mxu0 %v73
  %732 = vmatprep.subr.mxu0 0.0
  %733 = vmatpush1.msra.mxu0 0.0
  %734 = vmatprep.subr.mxu0 0.0
  %735 = vmatpush1.msra.mxu0 0.0
  %736 = vmatprep.subr.mxu0 0.0
  %737 = vmatpush1.msra.mxu0 0.0
  %738 = vmatprep.subr.mxu0 0.0
  %739 = vmatpush1.msra.mxu0 0.0
  %740 = vmatprep.subr.mxu0 0.0
  %741 = vmatpush1.msra.mxu0 0.0
  %742 = vmatprep.subr.mxu0 0.0
  %743 = vmatpush1.msra.mxu0 0.0
  %744 = vmatprep.subr.mxu0 0.0
  %745 = vmatpush1.msra.mxu0 0.0
  %746 = vmatprep.subr.mxu0 0.0
  %747 = vmatpush1.msra.mxu0 0.0
  %748 = vmatprep.subr.mxu0 0.0
  %749 = vmatpush1.msra.mxu0 0.0
  %750 = vmatprep.subr.mxu0 0.0
  %751 = vmatpush1.msra.mxu0 0.0
  %752 = vmatprep.subr.mxu0 0.0
  %753 = vmatpush1.msra.mxu0 0.0
  %754 = vmatprep.subr.mxu0 0.0
  %755 = vmatpush1.msra.mxu0 0.0
  %756 = vmatprep.subr.mxu0 0.0
  %757 = vmatpush1.msra.mxu0 0.0
  %758 = vmatprep.subr.mxu0 0.0
  %759 = vmatpush1.msra.mxu0 0.0
  %760 = vmatprep.subr.mxu0 0.0
  %761 = vmatpush1.msra.mxu0 0.0
  %762 = vmatprep.subr.mxu0 0.0
  %763 = vmatpush1.msra.mxu0 0.0
  %764 = vmatprep.mubr.f32.mxu0 0.0
  %765 = vmatmul.mubr.f32.gmra.mrb[0].mxu0 %v627
  %v766 = vpop.f32.mrb[0].mxu0
  %v767 = vadd.f32 0.0, %v766
  %v768 = vpop.f32.mrb[0].mxu0
  %v769 = vadd.f32 0.0, %v768
  %770 = vdwg.mxu0
  %v775 = vrot.slane %v696, 2
  %v776 = vrot.slane %v698, 2
  %v777 = vrot.slane %v767, 2
  %v778 = vrot.slane %v769, 2
  %v783 = vadd.f32 %v75, %v775
  %v784 = vadd.f32 %v76, %v776
  %v785 = vadd.f32 %v77, %v777
  %v786 = vadd.f32 %v78, %v778
  %v787 = vsub.f32 0.0, %v783
  %v788 = vmul.f32 %v787, 1.442695
  %v789 = vpow.pop %v788
  %v790 = vadd.f32 %v789, 1.0
  %v791 = vrcp.pop %v790
  %v792 = vmul.f32 1.0, %v791
  %v793 = vsub.f32 0.0, %v784
  %v794 = vmul.f32 %v793, 1.442695
  %v795 = vpow.pop %v794
  %v796 = vadd.f32 %v795, 1.0
  %v797 = vrcp.pop %v796
  %v798 = vmul.f32 1.0, %v797
  %v799 = vtanh.pop %v785
  %v800 = vsub.f32 0.0, %v786
  %v801 = vmul.f32 %v800, 1.442695
  %v802 = vpow.pop %v801
  %v803 = vadd.f32 %v802, 1.0
  %v804 = vrcp.pop %v803
  %v805 = vmul.f32 1.0, %v804
  %v807 = vrot.slane %v623, 6
  %v809 = vmul.f32 %v798, %v807
  %v810 = vmul.f32 %v792, %v799
  %v811 = vadd.f32 %v809, %v810
  %v812 = vtanh.pop %v811
  %v813 = vmul.f32 %v805, %v812
  %v815 = vrot.slane %v813, 6
  %817 = vmatprep.subr.mxu0 %v12
  %818 = vmatpush1.msra.mxu0 %v11
  %819 = vmatprep.subr.mxu0 %v16
  %820 = vmatpush1.msra.mxu0 %v15
  %821 = vmatprep.subr.mxu0 %v20
  %822 = vmatpush1.msra.mxu0 %v19
  %823 = vmatprep.subr.mxu0 %v24
  %824 = vmatpush1.msra.mxu0 %v23
  %825 = vmatprep.subr.mxu0 %v28
  %826 = vmatpush1.msra.mxu0 %v27
  %827 = vmatprep.subr.mxu0 %v32
  %828 = vmatpush1.msra.mxu0 %v31
  %829 = vmatprep.subr.mxu0 %v36
  %830 = vmatpush1.msra.mxu0 %v35
  %831 = vmatprep.subr.mxu0 %v40
  %832 = vmatpush1.msra.mxu0 %v39
  %833 = vmatprep.subr.mxu0 %v44
  %834 = vmatpush1.msra.mxu0 %v43
  %835 = vmatprep.subr.mxu0 %v48
  %836 = vmatpush1.msra.mxu0 %v47
  %837 = vmatprep.subr.mxu0 %v52
  %838 = vmatpush1.msra.mxu0 %v51
  %839 = vmatprep.subr.mxu0 %v56
  %840 = vmatpush1.msra.mxu0 %v55
  %841 = vmatprep.subr.mxu0 %v60
  %842 = vmatpush1.msra.mxu0 %v59
  %843 = vmatprep.subr.mxu0 %v64
  %844 = vmatpush1.msra.mxu0 %v63
  %845 = vmatprep.subr.mxu0 %v68
  %846 = vmatpush1.msra.mxu0 %v67
  %847 = vmatprep.subr.mxu0 %v72
  %848 = vmatpush1.msra.mxu0 %v71
  %849 = vmatprep.subr.mxu0 0.0
  %850 = vmatpush1.msra.mxu0 0.0
  %851 = vmatprep.subr.mxu0 0.0
  %852 = vmatpush1.msra.mxu0 0.0
  %853 = vmatprep.subr.mxu0 0.0
  %854 = vmatpush1.msra.mxu0 0.0
  %855 = vmatprep.subr.mxu0 0.0
  %856 = vmatpush1.msra.mxu0 0.0
  %857 = vmatprep.subr.mxu0 0.0
  %858 = vmatpush1.msra.mxu0 0.0
  %859 = vmatprep.subr.mxu0 0.0
  %860 = vmatpush1.msra.mxu0 0.0
  %861 = vmatprep.subr.mxu0 0.0
  %862 = vmatpush1.msra.mxu0 0.0
  %863 = vmatprep.subr.mxu0 0.0
  %864 = vmatpush1.msra.mxu0 0.0
  %865 = vmatprep.subr.mxu0 0.0
  %866 = vmatpush1.msra.mxu0 0.0
  %867 = vmatprep.subr.mxu0 0.0
  %868 = vmatpush1.msra.mxu0 0.0
  %869 = vmatprep.subr.mxu0 0.0
  %870 = vmatpush1.msra.mxu0 0.0
  %871 = vmatprep.subr.mxu0 0.0
  %872 = vmatpush1.msra.mxu0 0.0
  %873 = vmatprep.subr.mxu0 0.0
  %874 = vmatpush1.msra.mxu0 0.0
  %875 = vmatprep.subr.mxu0 0.0
  %876 = vmatpush1.msra.mxu0 0.0
  %877 = vmatprep.subr.mxu0 0.0
  %878 = vmatpush1.msra.mxu0 0.0
  %879 = vmatprep.subr.mxu0 0.0
  %880 = vmatpush1.msra.mxu0 0.0
  %881 = vmatprep.mubr.f32.mxu0 0.0
  %882 = vmatmul.mubr.f32.gmra.mrb[0].mxu0 %v815
  %v883 = vpop.f32.mrb[0].mxu0
  %v884 = vadd.f32 0.0, %v883
  %v885 = vpop.f32.mrb[0].mxu0
  %v886 = vadd.f32 0.0, %v885
  %887 = vdwg.mxu0
  %888 = vmatprep.subr.mxu0 %v14
  %889 = vmatpush1.msra.mxu0 %v13
  %890 = vmatprep.subr.mxu0 %v18
  %891 = vmatpush1.msra.mxu0 %v17
  %892 = vmatprep.subr.mxu0 %v22
  %893 = vmatpush1.msra.mxu0 %v21
  %894 = vmatprep.subr.mxu0 %v26
  %895 = vmatpush1.msra.mxu0 %v25
  %896 = vmatprep.subr.mxu0 %v30
  %897 = vmatpush1.msra.mxu0 %v29
  %898 = vmatprep.subr.mxu0 %v34
  %899 = vmatpush1.msra.mxu0 %v33
  %900 = vmatprep.subr.mxu0 %v38
  %901 = vmatpush1.msra.mxu0 %v37
  %902 = vmatprep.subr.mxu0 %v42
  %903 = vmatpush1.msra.mxu0 %v41
  %904 = vmatprep.subr.mxu0 %v46
  %905 = vmatpush1.msra.mxu0 %v45
  %906 = vmatprep.subr.mxu0 %v50
  %907 = vmatpush1.msra.mxu0 %v49
  %908 = vmatprep.subr.mxu0 %v54
  %909 = vmatpush1.msra.mxu0 %v53
  %910 = vmatprep.subr.mxu0 %v58
  %911 = vmatpush1.msra.mxu0 %v57
  %912 = vmatprep.subr.mxu0 %v62
  %913 = vmatpush1.msra.mxu0 %v61
  %914 = vmatprep.subr.mxu0 %v66
  %915 = vmatpush1.msra.mxu0 %v65
  %916 = vmatprep.subr.mxu0 %v70
  %917 = vmatpush1.msra.mxu0 %v69
  %918 = vmatprep.subr.mxu0 %v74
  %919 = vmatpush1.msra.mxu0 %v73
  %920 = vmatprep.subr.mxu0 0.0
  %921 = vmatpush1.msra.mxu0 0.0
  %922 = vmatprep.subr.mxu0 0.0
  %923 = vmatpush1.msra.mxu0 0.0
  %924 = vmatprep.subr.mxu0 0.0
  %925 = vmatpush1.msra.mxu0 0.0
  %926 = vmatprep.subr.mxu0 0.0
  %927 = vmatpush1.msra.mxu0 0.0
  %928 = vmatprep.subr.mxu0 0.0
  %929 = vmatpush1.msra.mxu0 0.0
  %930 = vmatprep.subr.mxu0 0.0
  %931 = vmatpush1.msra.mxu0 0.0
  %932 = vmatprep.subr.mxu0 0.0
  %933 = vmatpush1.msra.mxu0 0.0
  %934 = vmatprep.subr.mxu0 0.0
  %935 = vmatpush1.msra.mxu0 0.0
  %936 = vmatprep.subr.mxu0 0.0
  %937 = vmatpush1.msra.mxu0 0.0
  %938 = vmatprep.subr.mxu0 0.0
  %939 = vmatpush1.msra.mxu0 0.0
  %940 = vmatprep.subr.mxu0 0.0
  %941 = vmatpush1.msra.mxu0 0.0
  %942 = vmatprep.subr.mxu0 0.0
  %943 = vmatpush1.msra.mxu0 0.0
  %944 = vmatprep.subr.mxu0 0.0
  %945 = vmatpush1.msra.mxu0 0.0
  %946 = vmatprep.subr.mxu0 0.0
  %947 = vmatpush1.msra.mxu0 0.0
  %948 = vmatprep.subr.mxu0 0.0
  %949 = vmatpush1.msra.mxu0 0.0
  %950 = vmatprep.subr.mxu0 0.0
  %951 = vmatpush1.msra.mxu0 0.0
  %952 = vmatprep.mubr.f32.mxu0 0.0
  %953 = vmatmul.mubr.f32.gmra.mrb[0].mxu0 %v815
  %v954 = vpop.f32.mrb[0].mxu0
  %v955 = vadd.f32 0.0, %v954
  %v956 = vpop.f32.mrb[0].mxu0
  %v957 = vadd.f32 0.0, %v956
  %958 = vdwg.mxu0
  %v959 = vadd.f32 %v79, %v884
  %v960 = vadd.f32 %v80, %v886
  %v961 = vadd.f32 %v81, %v955
  %v962 = vadd.f32 %v82, %v957
  %v963 = vsub.f32 0.0, %v959
  %v964 = vmul.f32 %v963, 1.442695
  %v965 = vpow.pop %v964
  %v966 = vadd.f32 %v965, 1.0
  %v967 = vrcp.pop %v966
  %v968 = vmul.f32 1.0, %v967
  %v969 = vsub.f32 0.0, %v960
  %v970 = vmul.f32 %v969, 1.442695
  %v971 = vpow.pop %v970
  %v972 = vadd.f32 %v971, 1.0
  %v973 = vrcp.pop %v972
  %v974 = vmul.f32 1.0, %v973
  %v975 = vtanh.pop %v961
  %v976 = vsub.f32 0.0, %v962
  %v977 = vmul.f32 %v976, 1.442695
  %v978 = vpow.pop %v977
  %v979 = vadd.f32 %v978, 1.0
  %v980 = vrcp.pop %v979
  %v981 = vmul.f32 1.0, %v980
  %v983 = vrot.slane %v811, 6
  %v985 = vmul.f32 %v974, %v983
  %v986 = vmul.f32 %v968, %v975
  %v987 = vadd.f32 %v985, %v986
  %v988 = vtanh.pop %v987
  %v989 = vmul.f32 %v981, %v988
  %990 = vmatprep.subr.mxu0 %v12
  %991 = vmatpush1.msra.mxu0 %v11
  %992 = vmatprep.subr.mxu0 %v16
  %993 = vmatpush1.msra.mxu0 %v15
  %994 = vmatprep.subr.mxu0 %v20
  %995 = vmatpush1.msra.mxu0 %v19
  %996 = vmatprep.subr.mxu0 %v24
  %997 = vmatpush1.msra.mxu0 %v23
  %998 = vmatprep.subr.mxu0 %v28
  %999 = vmatpush1.msra.mxu0 %v27
  %1000 = vmatprep.subr.mxu0 %v32
  %1001 = vmatpush1.msra.mxu0 %v31
  %1002 = vmatprep.subr.mxu0 %v36
  %1003 = vmatpush1.msra.mxu0 %v35
  %1004 = vmatprep.subr.mxu0 %v40
  %1005 = vmatpush1.msra.mxu0 %v39
  %1006 = vmatprep.subr.mxu0 %v44
  %1007 = vmatpush1.msra.mxu0 %v43
  %1008 = vmatprep.subr.mxu0 %v48
  %1009 = vmatpush1.msra.mxu0 %v47
  %1010 = vmatprep.subr.mxu0 %v52
  %1011 = vmatpush1.msra.mxu0 %v51
  %1012 = vmatprep.subr.mxu0 %v56
  %1013 = vmatpush1.msra.mxu0 %v55
  %1014 = vmatprep.subr.mxu0 %v60
  %1015 = vmatpush1.msra.mxu0 %v59
  %1016 = vmatprep.subr.mxu0 %v64
  %1017 = vmatpush1.msra.mxu0 %v63
  %1018 = vmatprep.subr.mxu0 %v68
  %1019 = vmatpush1.msra.mxu0 %v67
  %1020 = vmatprep.subr.mxu0 %v72
  %1021 = vmatpush1.msra.mxu0 %v71
  %1022 = vmatprep.subr.mxu0 0.0
  %1023 = vmatpush1.msra.mxu0 0.0
  %1024 = vmatprep.subr.mxu0 0.0
  %1025 = vmatpush1.msra.mxu0 0.0
  %1026 = vmatprep.subr.mxu0 0.0
  %1027 = vmatpush1.msra.mxu0 0.0
  %1028 = vmatprep.subr.mxu0 0.0
  %1029 = vmatpush1.msra.mxu0 0.0
  %1030 = vmatprep.subr.mxu0 0.0
  %1031 = vmatpush1.msra.mxu0 0.0
  %1032 = vmatprep.subr.mxu0 0.0
  %1033 = vmatpush1.msra.mxu0 0.0
  %1034 = vmatprep.subr.mxu0 0.0
  %1035 = vmatpush1.msra.mxu0 0.0
  %1036 = vmatprep.subr.mxu0 0.0
  %1037 = vmatpush1.msra.mxu0 0.0
  %1038 = vmatprep.subr.mxu0 0.0
  %1039 = vmatpush1.msra.mxu0 0.0
  %1040 = vmatprep.subr.mxu0 0.0
  %1041 = vmatpush1.msra.mxu0 0.0
  %1042 = vmatprep.subr.mxu0 0.0
  %1043 = vmatpush1.msra.mxu0 0.0
  %1044 = vmatprep.subr.mxu0 0.0
  %1045 = vmatpush1.msra.mxu0 0.0
  %1046 = vmatprep.subr.mxu0 0.0
  %1047 = vmatpush1.msra.mxu0 0.0
  %1048 = vmatprep.subr.mxu0 0.0
  %1049 = vmatpush1.msra.mxu0 0.0
  %1050 = vmatprep.subr.mxu0 0.0
  %1051 = vmatpush1.msra.mxu0 0.0
  %1052 = vmatprep.subr.mxu0 0.0
  %1053 = vmatpush1.msra.mxu0 0.0
  %1054 = vmatprep.mubr.f32.mxu0 0.0
  %1055 = vmatmul.mubr.f32.gmra.mrb[0].mxu0 %v989
  %v1056 = vpop.f32.mrb[0].mxu0
  %v1057 = vadd.f32 0.0, %v1056
  %v1058 = vpop.f32.mrb[0].mxu0
  %v1059 = vadd.f32 0.0, %v1058
  %1060 = vdwg.mxu0
  %1061 = vmatprep.subr.mxu0 %v14
  %1062 = vmatpush1.msra.mxu0 %v13
  %1063 = vmatprep.subr.mxu0 %v18
  %1064 = vmatpush1.msra.mxu0 %v17
  %1065 = vmatprep.subr.mxu0 %v22
  %1066 = vmatpush1.msra.mxu0 %v21
  %1067 = vmatprep.subr.mxu0 %v26
  %1068 = vmatpush1.msra.mxu0 %v25
  %1069 = vmatprep.subr.mxu0 %v30
  %1070 = vmatpush1.msra.mxu0 %v29
  %1071 = vmatprep.subr.mxu0 %v34
  %1072 = vmatpush1.msra.mxu0 %v33
  %1073 = vmatprep.subr.mxu0 %v38
  %1074 = vmatpush1.msra.mxu0 %v37
  %1075 = vmatprep.subr.mxu0 %v42
  %1076 = vmatpush1.msra.mxu0 %v41
  %1077 = vmatprep.subr.mxu0 %v46
  %1078 = vmatpush1.msra.mxu0 %v45
  %1079 = vmatprep.subr.mxu0 %v50
  %1080 = vmatpush1.msra.mxu0 %v49
  %1081 = vmatprep.subr.mxu0 %v54
  %1082 = vmatpush1.msra.mxu0 %v53
  %1083 = vmatprep.subr.mxu0 %v58
  %1084 = vmatpush1.msra.mxu0 %v57
  %1085 = vmatprep.subr.mxu0 %v62
  %1086 = vmatpush1.msra.mxu0 %v61
  %1087 = vmatprep.subr.mxu0 %v66
  %1088 = vmatpush1.msra.mxu0 %v65
  %1089 = vmatprep.subr.mxu0 %v70
  %1090 = vmatpush1.msra.mxu0 %v69
  %1091 = vmatprep.subr.mxu0 %v74
  %1092 = vmatpush1.msra.mxu0 %v73
  %1093 = vmatprep.subr.mxu0 0.0
  %1094 = vmatpush1.msra.mxu0 0.0
  %1095 = vmatprep.subr.mxu0 0.0
  %1096 = vmatpush1.msra.mxu0 0.0
  %1097 = vmatprep.subr.mxu0 0.0
  %1098 = vmatpush1.msra.mxu0 0.0
  %1099 = vmatprep.subr.mxu0 0.0
  %1100 = vmatpush1.msra.mxu0 0.0
  %1101 = vmatprep.subr.mxu0 0.0
  %1102 = vmatpush1.msra.mxu0 0.0
  %1103 = vmatprep.subr.mxu0 0.0
  %1104 = vmatpush1.msra.mxu0 0.0
  %1105 = vmatprep.subr.mxu0 0.0
  %1106 = vmatpush1.msra.mxu0 0.0
  %1107 = vmatprep.subr.mxu0 0.0
  %1108 = vmatpush1.msra.mxu0 0.0
  %1109 = vmatprep.subr.mxu0 0.0
  %1110 = vmatpush1.msra.mxu0 0.0
  %1111 = vmatprep.subr.mxu0 0.0
  %1112 = vmatpush1.msra.mxu0 0.0
  %1113 = vmatprep.subr.mxu0 0.0
  %1114 = vmatpush1.msra.mxu0 0.0
  %1115 = vmatprep.subr.mxu0 0.0
  %1116 = vmatpush1.msra.mxu0 0.0
  %1117 = vmatprep.subr.mxu0 0.0
  %1118 = vmatpush1.msra.mxu0 0.0
  %1119 = vmatprep.subr.mxu0 0.0
  %1120 = vmatpush1.msra.mxu0 0.0
  %1121 = vmatprep.subr.mxu0 0.0
  %1122 = vmatpush1.msra.mxu0 0.0
  %1123 = vmatprep.subr.mxu0 0.0
  %1124 = vmatpush1.msra.mxu0 0.0
  %1125 = vmatprep.mubr.f32.mxu0 0.0
  %1126 = vmatmul.mubr.f32.gmra.mrb[0].mxu0 %v989
  %v1127 = vpop.f32.mrb[0].mxu0
  %v1128 = vadd.f32 0.0, %v1127
  %v1129 = vpop.f32.mrb[0].mxu0
  %v1130 = vadd.f32 0.0, %v1129
  %1131 = vdwg.mxu0
  %v1136 = vrot.slane %v1057, 6
  %v1137 = vrot.slane %v1059, 6
  %v1138 = vrot.slane %v1128, 6
  %v1139 = vrot.slane %v1130, 6
  %v1144 = vadd.f32 %v79, %v1136
  %v1145 = vadd.f32 %v80, %v1137
  %v1146 = vadd.f32 %v81, %v1138
  %v1147 = vadd.f32 %v82, %v1139
  %v1148 = vsub.f32 0.0, %v1144
  %v1149 = vmul.f32 %v1148, 1.442695
  %v1150 = vpow.pop %v1149
  %v1151 = vadd.f32 %v1150, 1.0
  %v1152 = vrcp.pop %v1151
  %v1153 = vmul.f32 1.0, %v1152
  %v1154 = vsub.f32 0.0, %v1145
  %v1155 = vmul.f32 %v1154, 1.442695
  %v1156 = vpow.pop %v1155
  %v1157 = vadd.f32 %v1156, 1.0
  %v1158 = vrcp.pop %v1157
  %v1159 = vmul.f32 1.0, %v1158
  %v1160 = vtanh.pop %v1146
  %v1161 = vsub.f32 0.0, %v1147
  %v1162 = vmul.f32 %v1161, 1.442695
  %v1163 = vpow.pop %v1162
  %v1164 = vadd.f32 %v1163, 1.0
  %v1165 = vrcp.pop %v1164
  %v1166 = vmul.f32 1.0, %v1165
  %v1168 = vrot.slane %v987, 6
  %v1170 = vmul.f32 %v1159, %v1168
  %v1171 = vmul.f32 %v1153, %v1160
  %v1172 = vadd.f32 %v1170, %v1171
  %v1173 = vtanh.pop %v1172
  %v1174 = vmul.f32 %v1166, %v1173
  %v1176 = vrot.slane %v1174, 2
  %1178 = vmatprep.subr.mxu0 %v12
  %1179 = vmatpush1.msra.mxu0 %v11
  %1180 = vmatprep.subr.mxu0 %v16
  %1181 = vmatpush1.msra.mxu0 %v15
  %1182 = vmatprep.subr.mxu0 %v20
  %1183 = vmatpush1.msra.mxu0 %v19
  %1184 = vmatprep.subr.mxu0 %v24
  %1185 = vmatpush1.msra.mxu0 %v23
  %1186 = vmatprep.subr.mxu0 %v28
  %1187 = vmatpush1.msra.mxu0 %v27
  %1188 = vmatprep.subr.mxu0 %v32
  %1189 = vmatpush1.msra.mxu0 %v31
  %1190 = vmatprep.subr.mxu0 %v36
  %1191 = vmatpush1.msra.mxu0 %v35
  %1192 = vmatprep.subr.mxu0 %v40
  %1193 = vmatpush1.msra.mxu0 %v39
  %1194 = vmatprep.subr.mxu0 %v44
  %1195 = vmatpush1.msra.mxu0 %v43
  %1196 = vmatprep.subr.mxu0 %v48
  %1197 = vmatpush1.msra.mxu0 %v47
  %1198 = vmatprep.subr.mxu0 %v52
  %1199 = vmatpush1.msra.mxu0 %v51
  %1200 = vmatprep.subr.mxu0 %v56
  %1201 = vmatpush1.msra.mxu0 %v55
  %1202 = vmatprep.subr.mxu0 %v60
  %1203 = vmatpush1.msra.mxu0 %v59
  %1204 = vmatprep.subr.mxu0 %v64
  %1205 = vmatpush1.msra.mxu0 %v63
  %1206 = vmatprep.subr.mxu0 %v68
  %1207 = vmatpush1.msra.mxu0 %v67
  %1208 = vmatprep.subr.mxu0 %v72
  %1209 = vmatpush1.msra.mxu0 %v71
  %1210 = vmatprep.subr.mxu0 0.0
  %1211 = vmatpush1.msra.mxu0 0.0
  %1212 = vmatprep.subr.mxu0 0.0
  %1213 = vmatpush1.msra.mxu0 0.0
  %1214 = vmatprep.subr.mxu0 0.0
  %1215 = vmatpush1.msra.mxu0 0.0
  %1216 = vmatprep.subr.mxu0 0.0
  %1217 = vmatpush1.msra.mxu0 0.0
  %1218 = vmatprep.subr.mxu0 0.0
  %1219 = vmatpush1.msra.mxu0 0.0
  %1220 = vmatprep.subr.mxu0 0.0
  %1221 = vmatpush1.msra.mxu0 0.0
  %1222 = vmatprep.subr.mxu0 0.0
  %1223 = vmatpush1.msra.mxu0 0.0
  %1224 = vmatprep.subr.mxu0 0.0
  %1225 = vmatpush1.msra.mxu0 0.0
  %1226 = vmatprep.subr.mxu0 0.0
  %1227 = vmatpush1.msra.mxu0 0.0
  %1228 = vmatprep.subr.mxu0 0.0
  %1229 = vmatpush1.msra.mxu0 0.0
  %1230 = vmatprep.subr.mxu0 0.0
  %1231 = vmatpush1.msra.mxu0 0.0
  %1232 = vmatprep.subr.mxu0 0.0
  %1233 = vmatpush1.msra.mxu0 0.0
  %1234 = vmatprep.subr.mxu0 0.0
  %1235 = vmatpush1.msra.mxu0 0.0
  %1236 = vmatprep.subr.mxu0 0.0
  %1237 = vmatpush1.msra.mxu0 0.0
  %1238 = vmatprep.subr.mxu0 0.0
  %1239 = vmatpush1.msra.mxu0 0.0
  %1240 = vmatprep.subr.mxu0 0.0
  %1241 = vmatpush1.msra.mxu0 0.0
  %1242 = vmatprep.mubr.f32.mxu0 0.0
  %1243 = vmatmul.mubr.f32.gmra.mrb[0].mxu0 %v1176
  %v1244 = vpop.f32.mrb[0].mxu0
  %v1245 = vadd.f32 0.0, %v1244
  %v1246 = vpop.f32.mrb[0].mxu0
  %v1247 = vadd.f32 0.0, %v1246
  %1248 = vdwg.mxu0
  %1249 = vmatprep.subr.mxu0 %v14
  %1250 = vmatpush1.msra.mxu0 %v13
  %1251 = vmatprep.subr.mxu0 %v18
  %1252 = vmatpush1.msra.mxu0 %v17
  %1253 = vmatprep.subr.mxu0 %v22
  %1254 = vmatpush1.msra.mxu0 %v21
  %1255 = vmatprep.subr.mxu0 %v26
  %1256 = vmatpush1.msra.mxu0 %v25
  %1257 = vmatprep.subr.mxu0 %v30
  %1258 = vmatpush1.msra.mxu0 %v29
  %1259 = vmatprep.subr.mxu0 %v34
  %1260 = vmatpush1.msra.mxu0 %v33
  %1261 = vmatprep.subr.mxu0 %v38
  %1262 = vmatpush1.msra.mxu0 %v37
  %1263 = vmatprep.subr.mxu0 %v42
  %1264 = vmatpush1.msra.mxu0 %v41
  %1265 = vmatprep.subr.mxu0 %v46
  %1266 = vmatpush1.msra.mxu0 %v45
  %1267 = vmatprep.subr.mxu0 %v50
  %1268 = vmatpush1.msra.mxu0 %v49
  %1269 = vmatprep.subr.mxu0 %v54
  %1270 = vmatpush1.msra.mxu0 %v53
  %1271 = vmatprep.subr.mxu0 %v58
  %1272 = vmatpush1.msra.mxu0 %v57
  %1273 = vmatprep.subr.mxu0 %v62
  %1274 = vmatpush1.msra.mxu0 %v61
  %1275 = vmatprep.subr.mxu0 %v66
  %1276 = vmatpush1.msra.mxu0 %v65
  %1277 = vmatprep.subr.mxu0 %v70
  %1278 = vmatpush1.msra.mxu0 %v69
  %1279 = vmatprep.subr.mxu0 %v74
  %1280 = vmatpush1.msra.mxu0 %v73
  %1281 = vmatprep.subr.mxu0 0.0
  %1282 = vmatpush1.msra.mxu0 0.0
  %1283 = vmatprep.subr.mxu0 0.0
  %1284 = vmatpush1.msra.mxu0 0.0
  %1285 = vmatprep.subr.mxu0 0.0
  %1286 = vmatpush1.msra.mxu0 0.0
  %1287 = vmatprep.subr.mxu0 0.0
  %1288 = vmatpush1.msra.mxu0 0.0
  %1289 = vmatprep.subr.mxu0 0.0
  %1290 = vmatpush1.msra.mxu0 0.0
  %1291 = vmatprep.subr.mxu0 0.0
  %1292 = vmatpush1.msra.mxu0 0.0
  %1293 = vmatprep.subr.mxu0 0.0
  %1294 = vmatpush1.msra.mxu0 0.0
  %1295 = vmatprep.subr.mxu0 0.0
  %1296 = vmatpush1.msra.mxu0 0.0
  %1297 = vmatprep.subr.mxu0 0.0
  %1298 = vmatpush1.msra.mxu0 0.0
  %1299 = vmatprep.subr.mxu0 0.0
  %1300 = vmatpush1.msra.mxu0 0.0
  %1301 = vmatprep.subr.mxu0 0.0
  %1302 = vmatpush1.msra.mxu0 0.0
  %1303 = vmatprep.subr.mxu0 0.0
  %1304 = vmatpush1.msra.mxu0 0.0
  %1305 = vmatprep.subr.mxu0 0.0
  %1306 = vmatpush1.msra.mxu0 0.0
  %1307 = vmatprep.subr.mxu0 0.0
  %1308 = vmatpush1.msra.mxu0 0.0
  %1309 = vmatprep.subr.mxu0 0.0
  %1310 = vmatpush1.msra.mxu0 0.0
  %1311 = vmatprep.subr.mxu0 0.0
  %1312 = vmatpush1.msra.mxu0 0.0
  %1313 = vmatprep.mubr.f32.mxu0 0.0
  %1314 = vmatmul.mubr.f32.gmra.mrb[0].mxu0 %v1176
  %v1315 = vpop.f32.mrb[0].mxu0
  %v1316 = vadd.f32 0.0, %v1315
  %v1317 = vpop.f32.mrb[0].mxu0
  %v1318 = vadd.f32 0.0, %v1317
  %1319 = vdwg.mxu0
  %v1324 = vrot.slane %v1245, 4
  %v1325 = vrot.slane %v1247, 4
  %v1326 = vrot.slane %v1316, 4
  %v1327 = vrot.slane %v1318, 4
  %v1332 = vadd.f32 %v79, %v1324
  %v1333 = vadd.f32 %v80, %v1325
  %v1334 = vadd.f32 %v81, %v1326
  %v1335 = vadd.f32 %v82, %v1327
  %v1336 = vsub.f32 0.0, %v1332
  %v1337 = vmul.f32 %v1336, 1.442695
  %v1338 = vpow.pop %v1337
  %v1339 = vadd.f32 %v1338, 1.0
  %v1340 = vrcp.pop %v1339
  %v1341 = vmul.f32 1.0, %v1340
  %v1342 = vsub.f32 0.0, %v1333
  %v1343 = vmul.f32 %v1342, 1.442695
  %v1344 = vpow.pop %v1343
  %v1345 = vadd.f32 %v1344, 1.0
  %v1346 = vrcp.pop %v1345
  %v1347 = vmul.f32 1.0, %v1346
  %v1348 = vtanh.pop %v1334
  %v1349 = vsub.f32 0.0, %v1335
  %v1350 = vmul.f32 %v1349, 1.442695
  %v1351 = vpow.pop %v1350
  %v1352 = vadd.f32 %v1351, 1.0
  %v1353 = vrcp.pop %v1352
  %v1354 = vmul.f32 1.0, %v1353
  %v1356 = vrot.slane %v1172, 6
  %v1358 = vmul.f32 %v1347, %v1356
  %v1359 = vmul.f32 %v1341, %v1348
  %v1360 = vadd.f32 %v1358, %v1359
  %v1361 = vtanh.pop %v1360
  %v1362 = vmul.f32 %v1354, %v1361
  %v1364 = vrot.slane %v1362, 4
  %1366 = vmatprep.subr.mxu0 %v12
  %1367 = vmatpush1.msra.mxu0 %v11
  %1368 = vmatprep.subr.mxu0 %v16
  %1369 = vmatpush1.msra.mxu0 %v15
  %1370 = vmatprep.subr.mxu0 %v20
  %1371 = vmatpush1.msra.mxu0 %v19
  %1372 = vmatprep.subr.mxu0 %v24
  %1373 = vmatpush1.msra.mxu0 %v23
  %1374 = vmatprep.subr.mxu0 %v28
  %1375 = vmatpush1.msra.mxu0 %v27
  %1376 = vmatprep.subr.mxu0 %v32
  %1377 = vmatpush1.msra.mxu0 %v31
  %1378 = vmatprep.subr.mxu0 %v36
  %1379 = vmatpush1.msra.mxu0 %v35
  %1380 = vmatprep.subr.mxu0 %v40
  %1381 = vmatpush1.msra.mxu0 %v39
  %1382 = vmatprep.subr.mxu0 %v44
  %1383 = vmatpush1.msra.mxu0 %v43
  %1384 = vmatprep.subr.mxu0 %v48
  %1385 = vmatpush1.msra.mxu0 %v47
  %1386 = vmatprep.subr.mxu0 %v52
  %1387 = vmatpush1.msra.mxu0 %v51
  %1388 = vmatprep.subr.mxu0 %v56
  %1389 = vmatpush1.msra.mxu0 %v55
  %1390 = vmatprep.subr.mxu0 %v60
  %1391 = vmatpush1.msra.mxu0 %v59
  %1392 = vmatprep.subr.mxu0 %v64
  %1393 = vmatpush1.msra.mxu0 %v63
  %1394 = vmatprep.subr.mxu0 %v68
  %1395 = vmatpush1.msra.mxu0 %v67
  %1396 = vmatprep.subr.mxu0 %v72
  %1397 = vmatpush1.msra.mxu0 %v71
  %1398 = vmatprep.subr.mxu0 0.0
  %1399 = vmatpush1.msra.mxu0 0.0
  %1400 = vmatprep.subr.mxu0 0.0
  %1401 = vmatpush1.msra.mxu0 0.0
  %1402 = vmatprep.subr.mxu0 0.0
  %1403 = vmatpush1.msra.mxu0 0.0
  %1404 = vmatprep.subr.mxu0 0.0
  %1405 = vmatpush1.msra.mxu0 0.0
  %1406 = vmatprep.subr.mxu0 0.0
  %1407 = vmatpush1.msra.mxu0 0.0
  %1408 = vmatprep.subr.mxu0 0.0
  %1409 = vmatpush1.msra.mxu0 0.0
  %1410 = vmatprep.subr.mxu0 0.0
  %1411 = vmatpush1.msra.mxu0 0.0
  %1412 = vmatprep.subr.mxu0 0.0
  %1413 = vmatpush1.msra.mxu0 0.0
  %1414 = vmatprep.subr.mxu0 0.0
  %1415 = vmatpush1.msra.mxu0 0.0
  %1416 = vmatprep.subr.mxu0 0.0
  %1417 = vmatpush1.msra.mxu0 0.0
  %1418 = vmatprep.subr.mxu0 0.0
  %1419 = vmatpush1.msra.mxu0 0.0
  %1420 = vmatprep.subr.mxu0 0.0
  %1421 = vmatpush1.msra.mxu0 0.0
  %1422 = vmatprep.subr.mxu0 0.0
  %1423 = vmatpush1.msra.mxu0 0.0
  %1424 = vmatprep.subr.mxu0 0.0
  %1425 = vmatpush1.msra.mxu0 0.0
  %1426 = vmatprep.subr.mxu0 0.0
  %1427 = vmatpush1.msra.mxu0 0.0
  %1428 = vmatprep.subr.mxu0 0.0
  %1429 = vmatpush1.msra.mxu0 0.0
  %1430 = vmatprep.mubr.f32.mxu0 0.0
  %1431 = vmatmul.mubr.f32.gmra.mrb[0].mxu0 %v1364
  %v1432 = vpop.f32.mrb[0].mxu0
  %v1433 = vadd.f32 0.0, %v1432
  %v1434 = vpop.f32.mrb[0].mxu0
  %v1435 = vadd.f32 0.0, %v1434
  %1436 = vdwg.mxu0
  %1437 = vmatprep.subr.mxu0 %v14
  %1438 = vmatpush1.msra.mxu0 %v13
  %1439 = vmatprep.subr.mxu0 %v18
  %1440 = vmatpush1.msra.mxu0 %v17
  %1441 = vmatprep.subr.mxu0 %v22
  %1442 = vmatpush1.msra.mxu0 %v21
  %1443 = vmatprep.subr.mxu0 %v26
  %1444 = vmatpush1.msra.mxu0 %v25
  %1445 = vmatprep.subr.mxu0 %v30
  %1446 = vmatpush1.msra.mxu0 %v29
  %1447 = vmatprep.subr.mxu0 %v34
  %1448 = vmatpush1.msra.mxu0 %v33
  %1449 = vmatprep.subr.mxu0 %v38
  %1450 = vmatpush1.msra.mxu0 %v37
  %1451 = vmatprep.subr.mxu0 %v42
  %1452 = vmatpush1.msra.mxu0 %v41
  %1453 = vmatprep.subr.mxu0 %v46
  %1454 = vmatpush1.msra.mxu0 %v45
  %1455 = vmatprep.subr.mxu0 %v50
  %1456 = vmatpush1.msra.mxu0 %v49
  %1457 = vmatprep.subr.mxu0 %v54
  %1458 = vmatpush1.msra.mxu0 %v53
  %1459 = vmatprep.subr.mxu0 %v58
  %1460 = vmatpush1.msra.mxu0 %v57
  %1461 = vmatprep.subr.mxu0 %v62
  %1462 = vmatpush1.msra.mxu0 %v61
  %1463 = vmatprep.subr.mxu0 %v66
  %1464 = vmatpush1.msra.mxu0 %v65
  %1465 = vmatprep.subr.mxu0 %v70
  %1466 = vmatpush1.msra.mxu0 %v69
  %1467 = vmatprep.subr.mxu0 %v74
  %1468 = vmatpush1.msra.mxu0 %v73
  %1469 = vmatprep.subr.mxu0 0.0
  %1470 = vmatpush1.msra.mxu0 0.0
  %1471 = vmatprep.subr.mxu0 0.0
  %1472 = vmatpush1.msra.mxu0 0.0
  %1473 = vmatprep.subr.mxu0 0.0
  %1474 = vmatpush1.msra.mxu0 0.0
  %1475 = vmatprep.subr.mxu0 0.0
  %1476 = vmatpush1.msra.mxu0 0.0
  %1477 = vmatprep.subr.mxu0 0.0
  %1478 = vmatpush1.msra.mxu0 0.0
  %1479 = vmatprep.subr.mxu0 0.0
  %1480 = vmatpush1.msra.mxu0 0.0
  %1481 = vmatprep.subr.mxu0 0.0
  %1482 = vmatpush1.msra.mxu0 0.0
  %1483 = vmatprep.subr.mxu0 0.0
  %1484 = vmatpush1.msra.mxu0 0.0
  %1485 = vmatprep.subr.mxu0 0.0
  %1486 = vmatpush1.msra.mxu0 0.0
  %1487 = vmatprep.subr.mxu0 0.0
  %1488 = vmatpush1.msra.mxu0 0.0
  %1489 = vmatprep.subr.mxu0 0.0
  %1490 = vmatpush1.msra.mxu0 0.0
  %1491 = vmatprep.subr.mxu0 0.0
  %1492 = vmatpush1.msra.mxu0 0.0
  %1493 = vmatprep.subr.mxu0 0.0
  %1494 = vmatpush1.msra.mxu0 0.0
  %1495 = vmatprep.subr.mxu0 0.0
  %1496 = vmatpush1.msra.mxu0 0.0
  %1497 = vmatprep.subr.mxu0 0.0
  %1498 = vmatpush1.msra.mxu0 0.0
  %1499 = vmatprep.subr.mxu0 0.0
  %1500 = vmatpush1.msra.mxu0 0.0
  %1501 = vmatprep.mubr.f32.mxu0 0.0
  %1502 = vmatmul.mubr.f32.gmra.mrb[0].mxu0 %v1364
  %v1503 = vpop.f32.mrb[0].mxu0
  %v1504 = vadd.f32 0.0, %v1503
  %v1505 = vpop.f32.mrb[0].mxu0
  %v1506 = vadd.f32 0.0, %v1505
  %1507 = vdwg.mxu0
  %v1512 = vrot.slane %v1433, 2
  %v1513 = vrot.slane %v1435, 2
  %v1514 = vrot.slane %v1504, 2
  %v1515 = vrot.slane %v1506, 2
  %v1520 = vadd.f32 %v79, %v1512
  %v1521 = vadd.f32 %v80, %v1513
  %v1522 = vadd.f32 %v81, %v1514
  %v1523 = vadd.f32 %v82, %v1515
  %v1524 = vsub.f32 0.0, %v1520
  %v1525 = vmul.f32 %v1524, 1.442695
  %v1526 = vpow.pop %v1525
  %v1527 = vadd.f32 %v1526, 1.0
  %v1528 = vrcp.pop %v1527
  %v1529 = vmul.f32 1.0, %v1528
  %v1530 = vsub.f32 0.0, %v1521
  %v1531 = vmul.f32 %v1530, 1.442695
  %v1532 = vpow.pop %v1531
  %v1533 = vadd.f32 %v1532, 1.0
  %v1534 = vrcp.pop %v1533
  %v1535 = vmul.f32 1.0, %v1534
  %v1536 = vtanh.pop %v1522
  %v1537 = vsub.f32 0.0, %v1523
  %v1538 = vmul.f32 %v1537, 1.442695
  %v1539 = vpow.pop %v1538
  %v1540 = vadd.f32 %v1539, 1.0
  %v1541 = vrcp.pop %v1540
  %v1542 = vmul.f32 1.0, %v1541
  %v1544 = vrot.slane %v1360, 6
  %v1546 = vmul.f32 %v1535, %v1544
  %v1547 = vmul.f32 %v1529, %v1536
  %v1548 = vadd.f32 %v1546, %v1547
  %v1549 = vtanh.pop %v1548
  %v1550 = vmul.f32 %v1542, %v1549
  %vm1551 = vcmask 1041408
  %v1552 = vsel %vm1551, %v252, %v437
  %vm1553 = vcmask 1043456
  %v1554 = vsel %vm1553, %v1552, %v625
  %vm1555 = vcmask 1045504
  %v1556 = vsel %vm1555, %v1554, %v813
  %v1557 = vsel %vm1551, %v989, %v1174
  %v1558 = vsel %vm1553, %v1557, %v1362
  %v1559 = vsel %vm1555, %v1558, %v1550
  %1560 = vst [vmem:[%s2] sm:$0xff] %v1556
  %1561 = vst [vmem:[%s2 + $0x8] sm:$0xff] %v1559
  // Predicated region
  $region10: #{bert_lstm_forward.17} parent=0 // pred_check
    _
  $region11: #{bert_lstm_forward.17} parent=0 // pred_check_branch
    %1563 = sbr.rel (0) target = $region13
  $region12: #{bert_lstm_forward.17} parent=0 // pred_region
    _
  $region13: #{bert_lstm_forward.17} parent=0 // pred_fallthru
    _
  // Predicated region
  $region14: #{bert_lstm_forward.17} parent=0 // pred_check
    _
  $region15: #{bert_lstm_forward.17} parent=0 // pred_check_branch
    %1565 = sbr.rel (0) target = $region17
  $region16: #{bert_lstm_forward.17} parent=0 // pred_region
    _
  $region17: #{bert_lstm_forward.17} parent=0 // pred_fallthru
    _

</llo_original>
